<compile_context>
chip_gen: v6e
topology: v6e:2x2x1
jax: 0.10.0
libtpu: 0.0.40
codegen_flags: <defaults>
</compile_context>

<pallas_src>
import jax
import jax.numpy as jnp
from jax import lax
from jax.experimental import pallas as pl
from jax.experimental.pallas import tpu as pltpu

C = 720        # channels (depthwise: groups == channels)
K = 5          # kernel size
KK = K * K
STRIDE = 2
PAD = 2

CP = 768       # channels padded up to 6 * 128 (lane-dense)
TC_C = 384     # channels per grid step: 2 blocks -> even split on v7x's 2 TCs,
               # minimal step count on v5e/v6e, 21-vreg f32 accumulator.


def _make_kernel(ho, wo):
    def kernel(x_ref, w_ref, o_ref):
        # x_ref: [2, 2, HP//2, WP//2, TC_C]  stride-2 phase-split padded input
        # w_ref: [KK, TC_C]                  per-tap weights (flat rows)
        # o_ref: [HO, WO, TC_C]
        acc = jnp.zeros((ho, wo, TC_C), jnp.float32)
        for kh in range(K):
            ph, dh = kh % STRIDE, kh // STRIDE
            for kw in range(K):
                pw, dw = kw % STRIDE, kw // STRIDE
                # tap[i, j, c] = x_pad[STRIDE*i + kh, STRIDE*j + kw, c]
                tap = x_ref[ph, pw, dh:dh + ho, dw:dw + wo, :]
                wt = w_ref[kh * K + kw]            # [TC_C]
                acc = acc + tap.astype(jnp.float32) * wt.astype(jnp.float32)
        o_ref[...] = acc.astype(o_ref.dtype)
    return kernel


def depthwise_conv2d(x_nchw, w_oihw):
    """x_nchw: [N, C, H, W]; w_oihw: [C, 1, K, K] (PyTorch depthwise layout)."""
    n, c, h, w = x_nchw.shape
    assert c == C
    ho = (h + 2 * PAD - K) // STRIDE + 1
    wo = (w + 2 * PAD - K) // STRIDE + 1
    hp, wp = h + 2 * PAD, w + 2 * PAD
    assert hp % STRIDE == 0 and wp % STRIDE == 0
    hph, wph = hp // STRIDE, wp // STRIDE
    assert (K - 1) // STRIDE + ho <= hph and (K - 1) // STRIDE + wo <= wph

    # NCHW -> NHWC; pad spatial dims and channels (720 -> 768) in one pad op.
    x = jnp.transpose(x_nchw, (0, 2, 3, 1))
    x = jnp.pad(x, ((0, 0), (PAD, PAD), (PAD, PAD), (0, CP - c)))

    # Stride-2 phase split (pure relabeling, no duplication):
    #   x_phase[n, ph, pw, i, j, ch] = x_pad[n, STRIDE*i + ph, STRIDE*j + pw, ch]
    x_phase = jnp.transpose(
        x.reshape(n, hph, STRIDE, wph, STRIDE, CP), (0, 2, 4, 1, 3, 5))

    # weights [C, 1, K, K] -> [KK, CP]  (tap-major, channel-padded, flat rows)
    w_t = jnp.transpose(w_oihw.reshape(c, KK), (1, 0))
    w_t = jnp.pad(w_t, ((0, 0), (0, CP - c)))

    cost = pl.CostEstimate(
        flops=2 * n * ho * wo * c * KK,
        transcendentals=0,
        bytes_accessed=4 * (x_phase.size + w_t.size + n * ho * wo * CP))

    out = pl.pallas_call(
        _make_kernel(ho, wo),
        out_shape=jax.ShapeDtypeStruct((n, ho, wo, CP), x_nchw.dtype),
        grid=(n, CP // TC_C),
        in_specs=[
            pl.BlockSpec((None, STRIDE, STRIDE, hph, wph, TC_C),
                         lambda b, cb: (b, 0, 0, 0, 0, cb)),
            pl.BlockSpec((KK, TC_C), lambda b, cb: (0, cb)),
        ],
        out_specs=pl.BlockSpec((None, ho, wo, TC_C),
                               lambda b, cb: (b, 0, 0, cb)),
        compiler_params=pltpu.CompilerParams(
            dimension_semantics=("parallel", "parallel")),
        cost_estimate=cost,
    )(x_phase, w_t)

    # drop channel padding, back to NCHW to match the PyTorch module interface.
    # TODO(synk): if the consumer accepts NHWC, skip this relayout entirely.
    return jnp.transpose(out[..., :c], (0, 3, 1, 2))


if __name__ == "__main__":
    key = jax.random.PRNGKey(0)
    kx, kw = jax.random.split(key)
    # shapes from the module's forward: x246 = [1, 720, 14, 14]
    x = jax.random.normal(kx, (1, C, 14, 14), dtype=jnp.float32)
    w = jax.random.normal(kw, (C, 1, K, K), dtype=jnp.float32) * 0.1

    out = jax.block_until_ready(depthwise_conv2d(x, w))

    # reference check against XLA's grouped conv
    ref = lax.conv_general_dilated(
        x, w, window_strides=(STRIDE, STRIDE),
        padding=((PAD, PAD), (PAD, PAD)),
        dimension_numbers=("NCHW", "OIHW", "NCHW"),
        feature_group_count=C)

    assert out.shape == (1, C, 7, 7), out.shape
    assert jnp.allclose(out, ref, atol=1e-4, rtol=1e-4), "mismatch vs reference"
    print("KERNEL_OK")
</pallas_src>

<mosaic_0001>
module attributes {stable_mosaic.version = 11 : i64} {
  func.func @kernel(%arg0: i32, %arg1: i32, %arg2: memref<1x2x2x9x9x384xf32, #tpu.memory_space<vmem>>, %arg3: memref<25x384xf32, #tpu.memory_space<vmem>>, %arg4: memref<1x7x7x384xf32, #tpu.memory_space<vmem>>) attributes {dimension_semantics = [#tpu.dimension_semantics<parallel>, #tpu.dimension_semantics<parallel>], iteration_bounds = array<i64: 1, 2>, scalar_prefetch = 0 : i64, scratch_operands = 0 : i64, tpu.core_type = #tpu.core_type<tc>, window_params = [{transform_indices = @transform_0, window_bounds = array<i64: 1, 2, 2, 9, 9, 384>}, {transform_indices = @transform_1, window_bounds = array<i64: 25, 384>}, {transform_indices = @transform_2, window_bounds = array<i64: 1, 7, 7, 384>}]} {
    %cst = arith.constant 0.000000e+00 : f32
    %0 = vector.broadcast %cst : f32 to vector<7x7x384xf32>
    %c0 = arith.constant 0 : index
    %c0_0 = arith.constant 0 : index
    %c0_1 = arith.constant 0 : index
    %c0_2 = arith.constant 0 : index
    %c0_3 = arith.constant 0 : index
    %c0_4 = arith.constant 0 : index
    %1 = vector.load %arg2[%c0, %c0_0, %c0_1, %c0_2, %c0_3, %c0_4] : memref<1x2x2x9x9x384xf32, #tpu.memory_space<vmem>>, vector<1x1x1x7x7x384xf32>
    %2 = vector.shape_cast %1 : vector<1x1x1x7x7x384xf32> to vector<7x7x384xf32>
    %c0_5 = arith.constant 0 : index
    %c0_6 = arith.constant 0 : index
    %3 = vector.load %arg3[%c0_5, %c0_6] : memref<25x384xf32, #tpu.memory_space<vmem>>, vector<1x384xf32>
    %4 = vector.shape_cast %3 : vector<1x384xf32> to vector<384xf32>
    %5 = vector.shape_cast %4 : vector<384xf32> to vector<1x1x384xf32>
    %6 = vector.broadcast %5 : vector<1x1x384xf32> to vector<7x7x384xf32>
    %7 = arith.mulf %2, %6 : vector<7x7x384xf32>
    %8 = arith.addf %0, %7 : vector<7x7x384xf32>
    %c0_7 = arith.constant 0 : index
    %c0_8 = arith.constant 0 : index
    %c1 = arith.constant 1 : index
    %c0_9 = arith.constant 0 : index
    %c0_10 = arith.constant 0 : index
    %c0_11 = arith.constant 0 : index
    %9 = vector.load %arg2[%c0_7, %c0_8, %c1, %c0_9, %c0_10, %c0_11] : memref<1x2x2x9x9x384xf32, #tpu.memory_space<vmem>>, vector<1x1x1x7x7x384xf32>
    %10 = vector.shape_cast %9 : vector<1x1x1x7x7x384xf32> to vector<7x7x384xf32>
    %c1_12 = arith.constant 1 : index
    %c0_13 = arith.constant 0 : index
    %11 = vector.load %arg3[%c1_12, %c0_13] : memref<25x384xf32, #tpu.memory_space<vmem>>, vector<1x384xf32>
    %12 = vector.shape_cast %11 : vector<1x384xf32> to vector<384xf32>
    %13 = vector.shape_cast %12 : vector<384xf32> to vector<1x1x384xf32>
    %14 = vector.broadcast %13 : vector<1x1x384xf32> to vector<7x7x384xf32>
    %15 = arith.mulf %10, %14 : vector<7x7x384xf32>
    %16 = arith.addf %8, %15 : vector<7x7x384xf32>
    %c0_14 = arith.constant 0 : index
    %c0_15 = arith.constant 0 : index
    %c0_16 = arith.constant 0 : index
    %c0_17 = arith.constant 0 : index
    %c1_18 = arith.constant 1 : index
    %c0_19 = arith.constant 0 : index
    %17 = vector.load %arg2[%c0_14, %c0_15, %c0_16, %c0_17, %c1_18, %c0_19] : memref<1x2x2x9x9x384xf32, #tpu.memory_space<vmem>>, vector<1x1x1x7x7x384xf32>
    %18 = vector.shape_cast %17 : vector<1x1x1x7x7x384xf32> to vector<7x7x384xf32>
    %c2 = arith.constant 2 : index
    %c0_20 = arith.constant 0 : index
    %19 = vector.load %arg3[%c2, %c0_20] : memref<25x384xf32, #tpu.memory_space<vmem>>, vector<1x384xf32>
    %20 = vector.shape_cast %19 : vector<1x384xf32> to vector<384xf32>
    %21 = vector.shape_cast %20 : vector<384xf32> to vector<1x1x384xf32>
    %22 = vector.broadcast %21 : vector<1x1x384xf32> to vector<7x7x384xf32>
    %23 = arith.mulf %18, %22 : vector<7x7x384xf32>
    %24 = arith.addf %16, %23 : vector<7x7x384xf32>
    %c0_21 = arith.constant 0 : index
    %c0_22 = arith.constant 0 : index
    %c1_23 = arith.constant 1 : index
    %c0_24 = arith.constant 0 : index
    %c1_25 = arith.constant 1 : index
    %c0_26 = arith.constant 0 : index
    %25 = vector.load %arg2[%c0_21, %c0_22, %c1_23, %c0_24, %c1_25, %c0_26] : memref<1x2x2x9x9x384xf32, #tpu.memory_space<vmem>>, vector<1x1x1x7x7x384xf32>
    %26 = vector.shape_cast %25 : vector<1x1x1x7x7x384xf32> to vector<7x7x384xf32>
    %c3 = arith.constant 3 : index
    %c0_27 = arith.constant 0 : index
    %27 = vector.load %arg3[%c3, %c0_27] : memref<25x384xf32, #tpu.memory_space<vmem>>, vector<1x384xf32>
    %28 = vector.shape_cast %27 : vector<1x384xf32> to vector<384xf32>
    %29 = vector.shape_cast %28 : vector<384xf32> to vector<1x1x384xf32>
    %30 = vector.broadcast %29 : vector<1x1x384xf32> to vector<7x7x384xf32>
    %31 = arith.mulf %26, %30 : vector<7x7x384xf32>
    %32 = arith.addf %24, %31 : vector<7x7x384xf32>
    %c0_28 = arith.constant 0 : index
    %c0_29 = arith.constant 0 : index
    %c0_30 = arith.constant 0 : index
    %c0_31 = arith.constant 0 : index
    %c2_32 = arith.constant 2 : index
    %c0_33 = arith.constant 0 : index
    %33 = vector.load %arg2[%c0_28, %c0_29, %c0_30, %c0_31, %c2_32, %c0_33] : memref<1x2x2x9x9x384xf32, #tpu.memory_space<vmem>>, vector<1x1x1x7x7x384xf32>
    %34 = vector.shape_cast %33 : vector<1x1x1x7x7x384xf32> to vector<7x7x384xf32>
    %c4 = arith.constant 4 : index
    %c0_34 = arith.constant 0 : index
    %35 = vector.load %arg3[%c4, %c0_34] : memref<25x384xf32, #tpu.memory_space<vmem>>, vector<1x384xf32>
    %36 = vector.shape_cast %35 : vector<1x384xf32> to vector<384xf32>
    %37 = vector.shape_cast %36 : vector<384xf32> to vector<1x1x384xf32>
    %38 = vector.broadcast %37 : vector<1x1x384xf32> to vector<7x7x384xf32>
    %39 = arith.mulf %34, %38 : vector<7x7x384xf32>
    %40 = arith.addf %32, %39 : vector<7x7x384xf32>
    %c0_35 = arith.constant 0 : index
    %c1_36 = arith.constant 1 : index
    %c0_37 = arith.constant 0 : index
    %c0_38 = arith.constant 0 : index
    %c0_39 = arith.constant 0 : index
    %c0_40 = arith.constant 0 : index
    %41 = vector.load %arg2[%c0_35, %c1_36, %c0_37, %c0_38, %c0_39, %c0_40] : memref<1x2x2x9x9x384xf32, #tpu.memory_space<vmem>>, vector<1x1x1x7x7x384xf32>
    %42 = vector.shape_cast %41 : vector<1x1x1x7x7x384xf32> to vector<7x7x384xf32>
    %c5 = arith.constant 5 : index
    %c0_41 = arith.constant 0 : index
    %43 = vector.load %arg3[%c5, %c0_41] : memref<25x384xf32, #tpu.memory_space<vmem>>, vector<1x384xf32>
    %44 = vector.shape_cast %43 : vector<1x384xf32> to vector<384xf32>
    %45 = vector.shape_cast %44 : vector<384xf32> to vector<1x1x384xf32>
    %46 = vector.broadcast %45 : vector<1x1x384xf32> to vector<7x7x384xf32>
    %47 = arith.mulf %42, %46 : vector<7x7x384xf32>
    %48 = arith.addf %40, %47 : vector<7x7x384xf32>
    %c0_42 = arith.constant 0 : index
    %c1_43 = arith.constant 1 : index
    %c1_44 = arith.constant 1 : index
    %c0_45 = arith.constant 0 : index
    %c0_46 = arith.constant 0 : index
    %c0_47 = arith.constant 0 : index
    %49 = vector.load %arg2[%c0_42, %c1_43, %c1_44, %c0_45, %c0_46, %c0_47] : memref<1x2x2x9x9x384xf32, #tpu.memory_space<vmem>>, vector<1x1x1x7x7x384xf32>
    %50 = vector.shape_cast %49 : vector<1x1x1x7x7x384xf32> to vector<7x7x384xf32>
    %c6 = arith.constant 6 : index
    %c0_48 = arith.constant 0 : index
    %51 = vector.load %arg3[%c6, %c0_48] : memref<25x384xf32, #tpu.memory_space<vmem>>, vector<1x384xf32>
    %52 = vector.shape_cast %51 : vector<1x384xf32> to vector<384xf32>
    %53 = vector.shape_cast %52 : vector<384xf32> to vector<1x1x384xf32>
    %54 = vector.broadcast %53 : vector<1x1x384xf32> to vector<7x7x384xf32>
    %55 = arith.mulf %50, %54 : vector<7x7x384xf32>
    %56 = arith.addf %48, %55 : vector<7x7x384xf32>
    %c0_49 = arith.constant 0 : index
    %c1_50 = arith.constant 1 : index
    %c0_51 = arith.constant 0 : index
    %c0_52 = arith.constant 0 : index
    %c1_53 = arith.constant 1 : index
    %c0_54 = arith.constant 0 : index
    %57 = vector.load %arg2[%c0_49, %c1_50, %c0_51, %c0_52, %c1_53, %c0_54] : memref<1x2x2x9x9x384xf32, #tpu.memory_space<vmem>>, vector<1x1x1x7x7x384xf32>
    %58 = vector.shape_cast %57 : vector<1x1x1x7x7x384xf32> to vector<7x7x384xf32>
    %c7 = arith.constant 7 : index
    %c0_55 = arith.constant 0 : index
    %59 = vector.load %arg3[%c7, %c0_55] : memref<25x384xf32, #tpu.memory_space<vmem>>, vector<1x384xf32>
    %60 = vector.shape_cast %59 : vector<1x384xf32> to vector<384xf32>
    %61 = vector.shape_cast %60 : vector<384xf32> to vector<1x1x384xf32>
    %62 = vector.broadcast %61 : vector<1x1x384xf32> to vector<7x7x384xf32>
    %63 = arith.mulf %58, %62 : vector<7x7x384xf32>
    %64 = arith.addf %56, %63 : vector<7x7x384xf32>
    %c0_56 = arith.constant 0 : index
    %c1_57 = arith.constant 1 : index
    %c1_58 = arith.constant 1 : index
    %c0_59 = arith.constant 0 : index
    %c1_60 = arith.constant 1 : index
    %c0_61 = arith.constant 0 : index
    %65 = vector.load %arg2[%c0_56, %c1_57, %c1_58, %c0_59, %c1_60, %c0_61] : memref<1x2x2x9x9x384xf32, #tpu.memory_space<vmem>>, vector<1x1x1x7x7x384xf32>
    %66 = vector.shape_cast %65 : vector<1x1x1x7x7x384xf32> to vector<7x7x384xf32>
    %c8 = arith.constant 8 : index
    %c0_62 = arith.constant 0 : index
    %67 = vector.load %arg3[%c8, %c0_62] : memref<25x384xf32, #tpu.memory_space<vmem>>, vector<1x384xf32>
    %68 = vector.shape_cast %67 : vector<1x384xf32> to vector<384xf32>
    %69 = vector.shape_cast %68 : vector<384xf32> to vector<1x1x384xf32>
    %70 = vector.broadcast %69 : vector<1x1x384xf32> to vector<7x7x384xf32>
    %71 = arith.mulf %66, %70 : vector<7x7x384xf32>
    %72 = arith.addf %64, %71 : vector<7x7x384xf32>
    %c0_63 = arith.constant 0 : index
    %c1_64 = arith.constant 1 : index
    %c0_65 = arith.constant 0 : index
    %c0_66 = arith.constant 0 : index
    %c2_67 = arith.constant 2 : index
    %c0_68 = arith.constant 0 : index
    %73 = vector.load %arg2[%c0_63, %c1_64, %c0_65, %c0_66, %c2_67, %c0_68] : memref<1x2x2x9x9x384xf32, #tpu.memory_space<vmem>>, vector<1x1x1x7x7x384xf32>
    %74 = vector.shape_cast %73 : vector<1x1x1x7x7x384xf32> to vector<7x7x384xf32>
    %c9 = arith.constant 9 : index
    %c0_69 = arith.constant 0 : index
    %75 = vector.load %arg3[%c9, %c0_69] : memref<25x384xf32, #tpu.memory_space<vmem>>, vector<1x384xf32>
    %76 = vector.shape_cast %75 : vector<1x384xf32> to vector<384xf32>
    %77 = vector.shape_cast %76 : vector<384xf32> to vector<1x1x384xf32>
    %78 = vector.broadcast %77 : vector<1x1x384xf32> to vector<7x7x384xf32>
    %79 = arith.mulf %74, %78 : vector<7x7x384xf32>
    %80 = arith.addf %72, %79 : vector<7x7x384xf32>
    %c0_70 = arith.constant 0 : index
    %c0_71 = arith.constant 0 : index
    %c0_72 = arith.constant 0 : index
    %c1_73 = arith.constant 1 : index
    %c0_74 = arith.constant 0 : index
    %c0_75 = arith.constant 0 : index
    %81 = vector.load %arg2[%c0_70, %c0_71, %c0_72, %c1_73, %c0_74, %c0_75] : memref<1x2x2x9x9x384xf32, #tpu.memory_space<vmem>>, vector<1x1x1x7x7x384xf32>
    %82 = vector.shape_cast %81 : vector<1x1x1x7x7x384xf32> to vector<7x7x384xf32>
    %c10 = arith.constant 10 : index
    %c0_76 = arith.constant 0 : index
    %83 = vector.load %arg3[%c10, %c0_76] : memref<25x384xf32, #tpu.memory_space<vmem>>, vector<1x384xf32>
    %84 = vector.shape_cast %83 : vector<1x384xf32> to vector<384xf32>
    %85 = vector.shape_cast %84 : vector<384xf32> to vector<1x1x384xf32>
    %86 = vector.broadcast %85 : vector<1x1x384xf32> to vector<7x7x384xf32>
    %87 = arith.mulf %82, %86 : vector<7x7x384xf32>
    %88 = arith.addf %80, %87 : vector<7x7x384xf32>
    %c0_77 = arith.constant 0 : index
    %c0_78 = arith.constant 0 : index
    %c1_79 = arith.constant 1 : index
    %c1_80 = arith.constant 1 : index
    %c0_81 = arith.constant 0 : index
    %c0_82 = arith.constant 0 : index
    %89 = vector.load %arg2[%c0_77, %c0_78, %c1_79, %c1_80, %c0_81, %c0_82] : memref<1x2x2x9x9x384xf32, #tpu.memory_space<vmem>>, vector<1x1x1x7x7x384xf32>
    %90 = vector.shape_cast %89 : vector<1x1x1x7x7x384xf32> to vector<7x7x384xf32>
    %c11 = arith.constant 11 : index
    %c0_83 = arith.constant 0 : index
    %91 = vector.load %arg3[%c11, %c0_83] : memref<25x384xf32, #tpu.memory_space<vmem>>, vector<1x384xf32>
    %92 = vector.shape_cast %91 : vector<1x384xf32> to vector<384xf32>
    %93 = vector.shape_cast %92 : vector<384xf32> to vector<1x1x384xf32>
    %94 = vector.broadcast %93 : vector<1x1x384xf32> to vector<7x7x384xf32>
    %95 = arith.mulf %90, %94 : vector<7x7x384xf32>
    %96 = arith.addf %88, %95 : vector<7x7x384xf32>
    %c0_84 = arith.constant 0 : index
    %c0_85 = arith.constant 0 : index
    %c0_86 = arith.constant 0 : index
    %c1_87 = arith.constant 1 : index
    %c1_88 = arith.constant 1 : index
    %c0_89 = arith.constant 0 : index
    %97 = vector.load %arg2[%c0_84, %c0_85, %c0_86, %c1_87, %c1_88, %c0_89] : memref<1x2x2x9x9x384xf32, #tpu.memory_space<vmem>>, vector<1x1x1x7x7x384xf32>
    %98 = vector.shape_cast %97 : vector<1x1x1x7x7x384xf32> to vector<7x7x384xf32>
    %c12 = arith.constant 12 : index
    %c0_90 = arith.constant 0 : index
    %99 = vector.load %arg3[%c12, %c0_90] : memref<25x384xf32, #tpu.memory_space<vmem>>, vector<1x384xf32>
    %100 = vector.shape_cast %99 : vector<1x384xf32> to vector<384xf32>
    %101 = vector.shape_cast %100 : vector<384xf32> to vector<1x1x384xf32>
    %102 = vector.broadcast %101 : vector<1x1x384xf32> to vector<7x7x384xf32>
    %103 = arith.mulf %98, %102 : vector<7x7x384xf32>
    %104 = arith.addf %96, %103 : vector<7x7x384xf32>
    %c0_91 = arith.constant 0 : index
    %c0_92 = arith.constant 0 : index
    %c1_93 = arith.constant 1 : index
    %c1_94 = arith.constant 1 : index
    %c1_95 = arith.constant 1 : index
    %c0_96 = arith.constant 0 : index
    %105 = vector.load %arg2[%c0_91, %c0_92, %c1_93, %c1_94, %c1_95, %c0_96] : memref<1x2x2x9x9x384xf32, #tpu.memory_space<vmem>>, vector<1x1x1x7x7x384xf32>
    %106 = vector.shape_cast %105 : vector<1x1x1x7x7x384xf32> to vector<7x7x384xf32>
    %c13 = arith.constant 13 : index
    %c0_97 = arith.constant 0 : index
    %107 = vector.load %arg3[%c13, %c0_97] : memref<25x384xf32, #tpu.memory_space<vmem>>, vector<1x384xf32>
    %108 = vector.shape_cast %107 : vector<1x384xf32> to vector<384xf32>
    %109 = vector.shape_cast %108 : vector<384xf32> to vector<1x1x384xf32>
    %110 = vector.broadcast %109 : vector<1x1x384xf32> to vector<7x7x384xf32>
    %111 = arith.mulf %106, %110 : vector<7x7x384xf32>
    %112 = arith.addf %104, %111 : vector<7x7x384xf32>
    %c0_98 = arith.constant 0 : index
    %c0_99 = arith.constant 0 : index
    %c0_100 = arith.constant 0 : index
    %c1_101 = arith.constant 1 : index
    %c2_102 = arith.constant 2 : index
    %c0_103 = arith.constant 0 : index
    %113 = vector.load %arg2[%c0_98, %c0_99, %c0_100, %c1_101, %c2_102, %c0_103] : memref<1x2x2x9x9x384xf32, #tpu.memory_space<vmem>>, vector<1x1x1x7x7x384xf32>
    %114 = vector.shape_cast %113 : vector<1x1x1x7x7x384xf32> to vector<7x7x384xf32>
    %c14 = arith.constant 14 : index
    %c0_104 = arith.constant 0 : index
    %115 = vector.load %arg3[%c14, %c0_104] : memref<25x384xf32, #tpu.memory_space<vmem>>, vector<1x384xf32>
    %116 = vector.shape_cast %115 : vector<1x384xf32> to vector<384xf32>
    %117 = vector.shape_cast %116 : vector<384xf32> to vector<1x1x384xf32>
    %118 = vector.broadcast %117 : vector<1x1x384xf32> to vector<7x7x384xf32>
    %119 = arith.mulf %114, %118 : vector<7x7x384xf32>
    %120 = arith.addf %112, %119 : vector<7x7x384xf32>
    %c0_105 = arith.constant 0 : index
    %c1_106 = arith.constant 1 : index
    %c0_107 = arith.constant 0 : index
    %c1_108 = arith.constant 1 : index
    %c0_109 = arith.constant 0 : index
    %c0_110 = arith.constant 0 : index
    %121 = vector.load %arg2[%c0_105, %c1_106, %c0_107, %c1_108, %c0_109, %c0_110] : memref<1x2x2x9x9x384xf32, #tpu.memory_space<vmem>>, vector<1x1x1x7x7x384xf32>
    %122 = vector.shape_cast %121 : vector<1x1x1x7x7x384xf32> to vector<7x7x384xf32>
    %c15 = arith.constant 15 : index
    %c0_111 = arith.constant 0 : index
    %123 = vector.load %arg3[%c15, %c0_111] : memref<25x384xf32, #tpu.memory_space<vmem>>, vector<1x384xf32>
    %124 = vector.shape_cast %123 : vector<1x384xf32> to vector<384xf32>
    %125 = vector.shape_cast %124 : vector<384xf32> to vector<1x1x384xf32>
    %126 = vector.broadcast %125 : vector<1x1x384xf32> to vector<7x7x384xf32>
    %127 = arith.mulf %122, %126 : vector<7x7x384xf32>
    %128 = arith.addf %120, %127 : vector<7x7x384xf32>
    %c0_112 = arith.constant 0 : index
    %c1_113 = arith.constant 1 : index
    %c1_114 = arith.constant 1 : index
    %c1_115 = arith.constant 1 : index
    %c0_116 = arith.constant 0 : index
    %c0_117 = arith.constant 0 : index
    %129 = vector.load %arg2[%c0_112, %c1_113, %c1_114, %c1_115, %c0_116, %c0_117] : memref<1x2x2x9x9x384xf32, #tpu.memory_space<vmem>>, vector<1x1x1x7x7x384xf32>
    %130 = vector.shape_cast %129 : vector<1x1x1x7x7x384xf32> to vector<7x7x384xf32>
    %c16 = arith.constant 16 : index
    %c0_118 = arith.constant 0 : index
    %131 = vector.load %arg3[%c16, %c0_118] : memref<25x384xf32, #tpu.memory_space<vmem>>, vector<1x384xf32>
    %132 = vector.shape_cast %131 : vector<1x384xf32> to vector<384xf32>
    %133 = vector.shape_cast %132 : vector<384xf32> to vector<1x1x384xf32>
    %134 = vector.broadcast %133 : vector<1x1x384xf32> to vector<7x7x384xf32>
    %135 = arith.mulf %130, %134 : vector<7x7x384xf32>
    %136 = arith.addf %128, %135 : vector<7x7x384xf32>
    %c0_119 = arith.constant 0 : index
    %c1_120 = arith.constant 1 : index
    %c0_121 = arith.constant 0 : index
    %c1_122 = arith.constant 1 : index
    %c1_123 = arith.constant 1 : index
    %c0_124 = arith.constant 0 : index
    %137 = vector.load %arg2[%c0_119, %c1_120, %c0_121, %c1_122, %c1_123, %c0_124] : memref<1x2x2x9x9x384xf32, #tpu.memory_space<vmem>>, vector<1x1x1x7x7x384xf32>
    %138 = vector.shape_cast %137 : vector<1x1x1x7x7x384xf32> to vector<7x7x384xf32>
    %c17 = arith.constant 17 : index
    %c0_125 = arith.constant 0 : index
    %139 = vector.load %arg3[%c17, %c0_125] : memref<25x384xf32, #tpu.memory_space<vmem>>, vector<1x384xf32>
    %140 = vector.shape_cast %139 : vector<1x384xf32> to vector<384xf32>
    %141 = vector.shape_cast %140 : vector<384xf32> to vector<1x1x384xf32>
    %142 = vector.broadcast %141 : vector<1x1x384xf32> to vector<7x7x384xf32>
    %143 = arith.mulf %138, %142 : vector<7x7x384xf32>
    %144 = arith.addf %136, %143 : vector<7x7x384xf32>
    %c0_126 = arith.constant 0 : index
    %c1_127 = arith.constant 1 : index
    %c1_128 = arith.constant 1 : index
    %c1_129 = arith.constant 1 : index
    %c1_130 = arith.constant 1 : index
    %c0_131 = arith.constant 0 : index
    %145 = vector.load %arg2[%c0_126, %c1_127, %c1_128, %c1_129, %c1_130, %c0_131] : memref<1x2x2x9x9x384xf32, #tpu.memory_space<vmem>>, vector<1x1x1x7x7x384xf32>
    %146 = vector.shape_cast %145 : vector<1x1x1x7x7x384xf32> to vector<7x7x384xf32>
    %c18 = arith.constant 18 : index
    %c0_132 = arith.constant 0 : index
    %147 = vector.load %arg3[%c18, %c0_132] : memref<25x384xf32, #tpu.memory_space<vmem>>, vector<1x384xf32>
    %148 = vector.shape_cast %147 : vector<1x384xf32> to vector<384xf32>
    %149 = vector.shape_cast %148 : vector<384xf32> to vector<1x1x384xf32>
    %150 = vector.broadcast %149 : vector<1x1x384xf32> to vector<7x7x384xf32>
    %151 = arith.mulf %146, %150 : vector<7x7x384xf32>
    %152 = arith.addf %144, %151 : vector<7x7x384xf32>
    %c0_133 = arith.constant 0 : index
    %c1_134 = arith.constant 1 : index
    %c0_135 = arith.constant 0 : index
    %c1_136 = arith.constant 1 : index
    %c2_137 = arith.constant 2 : index
    %c0_138 = arith.constant 0 : index
    %153 = vector.load %arg2[%c0_133, %c1_134, %c0_135, %c1_136, %c2_137, %c0_138] : memref<1x2x2x9x9x384xf32, #tpu.memory_space<vmem>>, vector<1x1x1x7x7x384xf32>
    %154 = vector.shape_cast %153 : vector<1x1x1x7x7x384xf32> to vector<7x7x384xf32>
    %c19 = arith.constant 19 : index
    %c0_139 = arith.constant 0 : index
    %155 = vector.load %arg3[%c19, %c0_139] : memref<25x384xf32, #tpu.memory_space<vmem>>, vector<1x384xf32>
    %156 = vector.shape_cast %155 : vector<1x384xf32> to vector<384xf32>
    %157 = vector.shape_cast %156 : vector<384xf32> to vector<1x1x384xf32>
    %158 = vector.broadcast %157 : vector<1x1x384xf32> to vector<7x7x384xf32>
    %159 = arith.mulf %154, %158 : vector<7x7x384xf32>
    %160 = arith.addf %152, %159 : vector<7x7x384xf32>
    %c0_140 = arith.constant 0 : index
    %c0_141 = arith.constant 0 : index
    %c0_142 = arith.constant 0 : index
    %c2_143 = arith.constant 2 : index
    %c0_144 = arith.constant 0 : index
    %c0_145 = arith.constant 0 : index
    %161 = vector.load %arg2[%c0_140, %c0_141, %c0_142, %c2_143, %c0_144, %c0_145] : memref<1x2x2x9x9x384xf32, #tpu.memory_space<vmem>>, vector<1x1x1x7x7x384xf32>
    %162 = vector.shape_cast %161 : vector<1x1x1x7x7x384xf32> to vector<7x7x384xf32>
    %c20 = arith.constant 20 : index
    %c0_146 = arith.constant 0 : index
    %163 = vector.load %arg3[%c20, %c0_146] : memref<25x384xf32, #tpu.memory_space<vmem>>, vector<1x384xf32>
    %164 = vector.shape_cast %163 : vector<1x384xf32> to vector<384xf32>
    %165 = vector.shape_cast %164 : vector<384xf32> to vector<1x1x384xf32>
    %166 = vector.broadcast %165 : vector<1x1x384xf32> to vector<7x7x384xf32>
    %167 = arith.mulf %162, %166 : vector<7x7x384xf32>
    %168 = arith.addf %160, %167 : vector<7x7x384xf32>
    %c0_147 = arith.constant 0 : index
    %c0_148 = arith.constant 0 : index
    %c1_149 = arith.constant 1 : index
    %c2_150 = arith.constant 2 : index
    %c0_151 = arith.constant 0 : index
    %c0_152 = arith.constant 0 : index
    %169 = vector.load %arg2[%c0_147, %c0_148, %c1_149, %c2_150, %c0_151, %c0_152] : memref<1x2x2x9x9x384xf32, #tpu.memory_space<vmem>>, vector<1x1x1x7x7x384xf32>
    %170 = vector.shape_cast %169 : vector<1x1x1x7x7x384xf32> to vector<7x7x384xf32>
    %c21 = arith.constant 21 : index
    %c0_153 = arith.constant 0 : index
    %171 = vector.load %arg3[%c21, %c0_153] : memref<25x384xf32, #tpu.memory_space<vmem>>, vector<1x384xf32>
    %172 = vector.shape_cast %171 : vector<1x384xf32> to vector<384xf32>
    %173 = vector.shape_cast %172 : vector<384xf32> to vector<1x1x384xf32>
    %174 = vector.broadcast %173 : vector<1x1x384xf32> to vector<7x7x384xf32>
    %175 = arith.mulf %170, %174 : vector<7x7x384xf32>
    %176 = arith.addf %168, %175 : vector<7x7x384xf32>
    %c0_154 = arith.constant 0 : index
    %c0_155 = arith.constant 0 : index
    %c0_156 = arith.constant 0 : index
    %c2_157 = arith.constant 2 : index
    %c1_158 = arith.constant 1 : index
    %c0_159 = arith.constant 0 : index
    %177 = vector.load %arg2[%c0_154, %c0_155, %c0_156, %c2_157, %c1_158, %c0_159] : memref<1x2x2x9x9x384xf32, #tpu.memory_space<vmem>>, vector<1x1x1x7x7x384xf32>
    %178 = vector.shape_cast %177 : vector<1x1x1x7x7x384xf32> to vector<7x7x384xf32>
    %c22 = arith.constant 22 : index
    %c0_160 = arith.constant 0 : index
    %179 = vector.load %arg3[%c22, %c0_160] : memref<25x384xf32, #tpu.memory_space<vmem>>, vector<1x384xf32>
    %180 = vector.shape_cast %179 : vector<1x384xf32> to vector<384xf32>
    %181 = vector.shape_cast %180 : vector<384xf32> to vector<1x1x384xf32>
    %182 = vector.broadcast %181 : vector<1x1x384xf32> to vector<7x7x384xf32>
    %183 = arith.mulf %178, %182 : vector<7x7x384xf32>
    %184 = arith.addf %176, %183 : vector<7x7x384xf32>
    %c0_161 = arith.constant 0 : index
    %c0_162 = arith.constant 0 : index
    %c1_163 = arith.constant 1 : index
    %c2_164 = arith.constant 2 : index
    %c1_165 = arith.constant 1 : index
    %c0_166 = arith.constant 0 : index
    %185 = vector.load %arg2[%c0_161, %c0_162, %c1_163, %c2_164, %c1_165, %c0_166] : memref<1x2x2x9x9x384xf32, #tpu.memory_space<vmem>>, vector<1x1x1x7x7x384xf32>
    %186 = vector.shape_cast %185 : vector<1x1x1x7x7x384xf32> to vector<7x7x384xf32>
    %c23 = arith.constant 23 : index
    %c0_167 = arith.constant 0 : index
    %187 = vector.load %arg3[%c23, %c0_167] : memref<25x384xf32, #tpu.memory_space<vmem>>, vector<1x384xf32>
    %188 = vector.shape_cast %187 : vector<1x384xf32> to vector<384xf32>
    %189 = vector.shape_cast %188 : vector<384xf32> to vector<1x1x384xf32>
    %190 = vector.broadcast %189 : vector<1x1x384xf32> to vector<7x7x384xf32>
    %191 = arith.mulf %186, %190 : vector<7x7x384xf32>
    %192 = arith.addf %184, %191 : vector<7x7x384xf32>
    %c0_168 = arith.constant 0 : index
    %c0_169 = arith.constant 0 : index
    %c0_170 = arith.constant 0 : index
    %c2_171 = arith.constant 2 : index
    %c2_172 = arith.constant 2 : index
    %c0_173 = arith.constant 0 : index
    %193 = vector.load %arg2[%c0_168, %c0_169, %c0_170, %c2_171, %c2_172, %c0_173] : memref<1x2x2x9x9x384xf32, #tpu.memory_space<vmem>>, vector<1x1x1x7x7x384xf32>
    %194 = vector.shape_cast %193 : vector<1x1x1x7x7x384xf32> to vector<7x7x384xf32>
    %c24 = arith.constant 24 : index
    %c0_174 = arith.constant 0 : index
    %195 = vector.load %arg3[%c24, %c0_174] : memref<25x384xf32, #tpu.memory_space<vmem>>, vector<1x384xf32>
    %196 = vector.shape_cast %195 : vector<1x384xf32> to vector<384xf32>
    %197 = vector.shape_cast %196 : vector<384xf32> to vector<1x1x384xf32>
    %198 = vector.broadcast %197 : vector<1x1x384xf32> to vector<7x7x384xf32>
    %199 = arith.mulf %194, %198 : vector<7x7x384xf32>
    %200 = arith.addf %192, %199 : vector<7x7x384xf32>
    %c0_175 = arith.constant 0 : index
    %c0_176 = arith.constant 0 : index
    %c0_177 = arith.constant 0 : index
    %c0_178 = arith.constant 0 : index
    %201 = vector.load %arg4[%c0_175, %c0_176, %c0_177, %c0_178] : memref<1x7x7x384xf32, #tpu.memory_space<vmem>>, vector<1x7x7x384xf32>
    %202 = vector.shape_cast %201 : vector<1x7x7x384xf32> to vector<7x7x384xf32>
    %203 = vector.shape_cast %200 : vector<7x7x384xf32> to vector<1x7x7x384xf32>
    tpu.vector_store %arg4[%c0_175, %c0_176, %c0_177, %c0_178], %203 {strides = array<i32>} : memref<1x7x7x384xf32, #tpu.memory_space<vmem>>, vector<1x7x7x384xf32>,
    return
  }
  func.func @transform_0(%arg0: i32, %arg1: i32) -> (i32, i32, i32, i32, i32, i32) {
    %c0_i32 = arith.constant 0 : i32
    %c0_i32_0 = arith.constant 0 : i32
    %c0_i32_1 = arith.constant 0 : i32
    %c0_i32_2 = arith.constant 0 : i32
    %c0_i32_3 = arith.constant 0 : i32
    return %arg0, %c0_i32, %c0_i32_0, %c0_i32_1, %c0_i32_2, %arg1 : i32, i32, i32, i32, i32, i32
  }
  func.func @transform_1(%arg0: i32, %arg1: i32) -> (i32, i32) {
    %c0_i32 = arith.constant 0 : i32
    %c0_i32_0 = arith.constant 0 : i32
    return %c0_i32, %arg1 : i32, i32
  }
  func.func @transform_2(%arg0: i32, %arg1: i32) -> (i32, i32, i32, i32) {
    %c0_i32 = arith.constant 0 : i32
    %c0_i32_0 = arith.constant 0 : i32
    %c0_i32_1 = arith.constant 0 : i32
    return %arg0, %c0_i32, %c0_i32_0, %arg1 : i32, i32, i32, i32
  }
}

</mosaic_0001>

<llo_original>
// kernel: tpu_custom_call.1
$region0: #{tpu_custom_call.1}
  #allocation0 [shape = 'u32[]', space=smem, size = 0x4, offset = 0x4, fixed_abs, tag = 'smem constant byte address 0x4 - core index']
  #allocation1 [shape = 'u32[144,128]{1,0:T(1,128)}', space=vmem, size = 0x12000, scoped, tag = 'internal scratch']
  %s0 = inlined_call_operand.vmem [shape: f32[1,2,2,9,9,768], index: 0, kind: input, shape index: {}]
  %s1 = inlined_call_operand.vmem [shape: f32[25,768], index: 1, kind: input, shape index: {}]
  %s2 = inlined_call_operand.vmem [shape: f32[1,7,7,768], index: 2, kind: output, shape index: {}]
  %s3 = sld [smem:[#allocation0]]
  $region106: #{tpu_custom_call.1} parent=0
    _
  %s5 = ssub.s32 1, %s3
  %s6 = scalar_select 0, %s5, %s3
  $region1: #{tpu_custom_call.1} parent=0
    #allocation2 [shape = 'u8[1769472]{0}', space=vmem, size = 0x1b0000, scoped, tag = 'input window, operand 0']
    #allocation3 [shape = 'u8[98304]{0}', space=vmem, size = 0x18000, scoped, tag = 'input window, operand 1']
    #allocation4 [shape = 'u8[172032]{0}', space=vmem, size = 0x2a000, scoped, tag = 'output window, operand 0']
    loop: start=0, step=1, limit=4
    $region2: #{tpu_custom_call.1} parent=1 // loop_pre_header
      _
    $region3: #{tpu_custom_call.1} parent=1 // loop_header
      %s8 = sphi 0, %s12
      %p9 = scmp.ge.s32.totalorder %s8, 4
      %s15 = sphi 0, %s27
      %s16 = sphi 0, %s23
      %s17 = sphi 0, %s15
      %s18 = sphi 0, %s16
      %s19 = sphi 0, %s17
      %s20 = sphi 0, %s18
      %s32 = sphi 0, %s34
      %s35 = sphi 0, %s32
      %s36 = sphi 0, %s35
      %s52 = sphi 0, %s36
      %s58 = sphi 0, %s60
      %s61 = sphi 0, %s58
      %s62 = sphi 0, %s61
      %s78 = sphi 0, %s62
      %s86 = sphi 0, %s88
      %s89 = sphi 0, %s86
      %s90 = sphi 0, %s89
      %s106 = sphi 0, %s90
    $region4: #{tpu_custom_call.1} parent=1 // loop_header_branch
      %11 = sbr.rel (%p9) target = $region8
    $region5: #{tpu_custom_call.1} parent=1 // loop_body
      %s13 = ssub.s32 %s8, 1
      %s14 = ssub.s32 %s8, 2
      %s21 = sadd.s32 1, %s16
      %p22 = scmp.ge.s32.totalorder %s21, 2
      %s23 = scalar_select %p22, 0, %s21
      %s24 = sadd.s32 1, %s15
      %s25 = scalar_select %p22, %s24, %s15
      %p26 = scmp.ge.s32.totalorder %s25, 1
      %s27 = scalar_select %p26, 0, %s25
      %s28 = ssub.s32 %s15, %s27
      %s29 = ssub.s32 %s16, %s23
      %s30 = sor.u32 %s28, %s29
      %p31 = scmp.eq.s32.totalorder %s30, 0
      %s33 = sadd.s32 %s32, 1
      %s34 = scalar_select %p31, %s32, %s33
      %p37 = pneg %p31
      %p38 = scmp.eq.s32.totalorder %s8, 1
      %p39 = por %p37, %p38
      %p40 = scmp.ne.s32.totalorder %s32, %s35
      %p41 = scmp.eq.s32.totalorder %s8, 0
      %p42 = por %p40, %p41
      %p43 = scmp.ne.s32.totalorder %s32, %s35
      %p44 = scmp.eq.s32.totalorder %s13, 1
      %p45 = por %p43, %p44
      %p46 = scmp.ne.s32.totalorder %s35, %s36
      %p47 = scmp.eq.s32.totalorder %s13, 0
      %p48 = por %p46, %p47
      %p49 = scmp.ne.s32.totalorder %s35, %s36
      %p50 = scmp.eq.s32.totalorder %s14, 1
      %p51 = por %p49, %p50
      %p53 = scmp.ne.s32.totalorder %s36, %s52
      %p54 = scmp.eq.s32.totalorder %s14, 0
      %p55 = por %p53, %p54
      %s56 = ssub.s32 %s16, %s23
      %p57 = scmp.eq.s32.totalorder %s56, 0
      %s59 = sadd.s32 %s58, 1
      %s60 = scalar_select %p57, %s58, %s59
      %p63 = pneg %p57
      %p64 = scmp.eq.s32.totalorder %s8, 1
      %p65 = por %p63, %p64
      %p66 = scmp.ne.s32.totalorder %s58, %s61
      %p67 = scmp.eq.s32.totalorder %s8, 0
      %p68 = por %p66, %p67
      %p69 = scmp.ne.s32.totalorder %s58, %s61
      %p70 = scmp.eq.s32.totalorder %s13, 1
      %p71 = por %p69, %p70
      %p72 = scmp.ne.s32.totalorder %s61, %s62
      %p73 = scmp.eq.s32.totalorder %s13, 0
      %p74 = por %p72, %p73
      %p75 = scmp.ne.s32.totalorder %s61, %s62
      %p76 = scmp.eq.s32.totalorder %s14, 1
      %p77 = por %p75, %p76
      %p79 = scmp.ne.s32.totalorder %s62, %s78
      %p80 = scmp.eq.s32.totalorder %s14, 0
      %p81 = por %p79, %p80
      %s82 = ssub.s32 %s15, %s27
      %s83 = ssub.s32 %s16, %s23
      %s84 = sor.u32 %s82, %s83
      %p85 = scmp.eq.s32.totalorder %s84, 0
      %s87 = sadd.s32 %s86, 1
      %s88 = scalar_select %p85, %s86, %s87
      %p91 = pneg %p85
      %p92 = scmp.eq.s32.totalorder %s8, 1
      %p93 = por %p91, %p92
      %p94 = scmp.ne.s32.totalorder %s86, %s89
      %p95 = scmp.eq.s32.totalorder %s8, 0
      %p96 = por %p94, %p95
      %p97 = scmp.ne.s32.totalorder %s86, %s89
      %p98 = scmp.eq.s32.totalorder %s13, 1
      %p99 = por %p97, %p98
      %p100 = scmp.ne.s32.totalorder %s89, %s90
      %p101 = scmp.eq.s32.totalorder %s13, 0
      %p102 = por %p100, %p101
      %p103 = scmp.ne.s32.totalorder %s89, %s90
      %p104 = scmp.eq.s32.totalorder %s14, 1
      %p105 = por %p103, %p104
      %p107 = scmp.ne.s32.totalorder %s90, %s106
      %p108 = scmp.eq.s32.totalorder %s14, 0
      %p109 = por %p107, %p108
      %p110 = scmp.le.s32.totalorder 1, %s8
      %p111 = scmp.lt.s32.totalorder %s8, 3
      %p112 = pnand %p110, %p111
      %p113 = pneg %p112
      // Predicated region
      $region9: #{tpu_custom_call.1} parent=5 // pred_check
        _
      $region10: #{tpu_custom_call.1} parent=5 // pred_check_branch
        %115 = sbr.rel (%p112) target = $region12
      $region11: #{tpu_custom_call.1} parent=5 // pred_region
        %s116 = ssub.s32 %s8, 1
      $region12: #{tpu_custom_call.1} parent=5 // pred_fallthru
        _
      %p117 = scmp.lt.s32.totalorder %s8, 2
      // Predicated region
      $region13: #{tpu_custom_call.1} parent=5 // pred_check
        %p118 = pneg %p117
      $region14: #{tpu_custom_call.1} parent=5 // pred_check_branch
        %120 = sbr.rel (%p118) target = $region16
      $region15: #{tpu_custom_call.1} parent=5 // pred_region
        // Predicated region
        $region17: #{tpu_custom_call.1} parent=15 // pred_check
          %p121 = pneg %p42
        $region18: #{tpu_custom_call.1} parent=15 // pred_check_branch
          %123 = sbr.rel (%p121) target = $region20
        $region19: #{tpu_custom_call.1} parent=15 // pred_region
          %s124 = sand.u32 %s32, 1
          %s125 = sand.u32 %s32, 1
          %s126 = smul.addr %s125, 1728
          %s127 = scalar_lea.vmem [#allocation2], %s126
          %s128 = smul.u32 3, %s16
          %s129 = smul.addr %s15, 432
          %s130 = sadd.s32 %s128, %s129
          %s131 = smul.addr %s130, 8
          %s132 = scalar_lea.vmem %s0, %s131
          // Predicated region
          $region21: #{tpu_custom_call.1} parent=19 // pred_check
            _
          $region22: #{tpu_custom_call.1} parent=19 // pred_check_branch
            %134 = sbr.rel (0) target = $region24
          $region23: #{tpu_custom_call.1} parent=19 // pred_region
            // Predicated region
            $region25: #{tpu_custom_call.1} parent=23 // pred_check
              _
            $region26: #{tpu_custom_call.1} parent=23 // pred_check_branch
              %136 = sbr.rel (0) target = $region28
            $region27: #{tpu_custom_call.1} parent=23 // pred_region
              loop: start=0, step=1, limit=1
              $region29: #{tpu_custom_call.1} parent=27 // loop_pre_header
                _
              $region30: #{tpu_custom_call.1} parent=27 // loop_header
                %s138 = sphi 0, %s142
                %p139 = scmp.ge.s32.totalorder %s138, 1
                %s143 = sphi %s132, %s132
                %s144 = sphi %s127, %s127
              $region31: #{tpu_custom_call.1} parent=27 // loop_header_branch
                %141 = sbr.rel (%p139) target = $region35
              $region32: #{tpu_custom_call.1} parent=27 // loop_body
                %v145 = vld [vmem:[%s143] sm:$0xff]
                %146 = vst [vmem:[%s144] sm:$0xff] %v145
                %v147 = vld [vmem:[%s143 + $0x8] sm:$0xff]
                %148 = vst [vmem:[%s144 + $0x8] sm:$0xff] %v147
                %v149 = vld [vmem:[%s143 + $0x10] sm:$0xff]
                %150 = vst [vmem:[%s144 + $0x10] sm:$0xff] %v149
                %v151 = vld [vmem:[%s143 + $0x30] sm:$0xff]
                %152 = vst [vmem:[%s144 + $0x18] sm:$0xff] %v151
                %v153 = vld [vmem:[%s143 + $0x38] sm:$0xff]
                %154 = vst [vmem:[%s144 + $0x20] sm:$0xff] %v153
                %v155 = vld [vmem:[%s143 + $0x40] sm:$0xff]
                %156 = vst [vmem:[%s144 + $0x28] sm:$0xff] %v155
                %v157 = vld [vmem:[%s143 + $0x60] sm:$0xff]
                %158 = vst [vmem:[%s144 + $0x30] sm:$0xff] %v157
                %v159 = vld [vmem:[%s143 + $0x68] sm:$0xff]
                %160 = vst [vmem:[%s144 + $0x38] sm:$0xff] %v159
                %v161 = vld [vmem:[%s143 + $0x70] sm:$0xff]
                %162 = vst [vmem:[%s144 + $0x40] sm:$0xff] %v161
                %v163 = vld [vmem:[%s143 + $0x90] sm:$0xff]
                %164 = vst [vmem:[%s144 + $0x48] sm:$0xff] %v163
                %v165 = vld [vmem:[%s143 + $0x98] sm:$0xff]
                %166 = vst [vmem:[%s144 + $0x50] sm:$0xff] %v165
                %v167 = vld [vmem:[%s143 + $0xa0] sm:$0xff]
                %168 = vst [vmem:[%s144 + $0x58] sm:$0xff] %v167
                %v169 = vld [vmem:[%s143 + $0xc0] sm:$0xff]
                %170 = vst [vmem:[%s144 + $0x60] sm:$0xff] %v169
                %v171 = vld [vmem:[%s143 + $0xc8] sm:$0xff]
                %172 = vst [vmem:[%s144 + $0x68] sm:$0xff] %v171
                %v173 = vld [vmem:[%s143 + $0xd0] sm:$0xff]
                %174 = vst [vmem:[%s144 + $0x70] sm:$0xff] %v173
                %v175 = vld [vmem:[%s143 + $0xf0] sm:$0xff]
                %176 = vst [vmem:[%s144 + $0x78] sm:$0xff] %v175
                %v177 = vld [vmem:[%s143 + $0xf8] sm:$0xff]
                %178 = vst [vmem:[%s144 + $0x80] sm:$0xff] %v177
                %v179 = vld [vmem:[%s143 + $0x100] sm:$0xff]
                %180 = vst [vmem:[%s144 + $0x88] sm:$0xff] %v179
                %v181 = vld [vmem:[%s143 + $0x120] sm:$0xff]
                %182 = vst [vmem:[%s144 + $0x90] sm:$0xff] %v181
                %v183 = vld [vmem:[%s143 + $0x128] sm:$0xff]
                %184 = vst [vmem:[%s144 + $0x98] sm:$0xff] %v183
                %v185 = vld [vmem:[%s143 + $0x130] sm:$0xff]
                %186 = vst [vmem:[%s144 + $0xa0] sm:$0xff] %v185
                %v187 = vld [vmem:[%s143 + $0x150] sm:$0xff]
                %188 = vst [vmem:[%s144 + $0xa8] sm:$0xff] %v187
                %v189 = vld [vmem:[%s143 + $0x158] sm:$0xff]
                %190 = vst [vmem:[%s144 + $0xb0] sm:$0xff] %v189
                %v191 = vld [vmem:[%s143 + $0x160] sm:$0xff]
                %192 = vst [vmem:[%s144 + $0xb8] sm:$0xff] %v191
                %v193 = vld [vmem:[%s143 + $0x180] sm:$0xff]
                %194 = vst [vmem:[%s144 + $0xc0] sm:$0xff] %v193
                %v195 = vld [vmem:[%s143 + $0x188] sm:$0xff]
                %196 = vst [vmem:[%s144 + $0xc8] sm:$0xff] %v195
                %v197 = vld [vmem:[%s143 + $0x190] sm:$0xff]
                %198 = vst [vmem:[%s144 + $0xd0] sm:$0xff] %v197
                %v199 = vld [vmem:[%s143 + $0x1b0] sm:$0xff]
                %200 = vst [vmem:[%s144 + $0xd8] sm:$0xff] %v199
                %v201 = vld [vmem:[%s143 + $0x1b8] sm:$0xff]
                %202 = vst [vmem:[%s144 + $0xe0] sm:$0xff] %v201
                %v203 = vld [vmem:[%s143 + $0x1c0] sm:$0xff]
                %204 = vst [vmem:[%s144 + $0xe8] sm:$0xff] %v203
                %v205 = vld [vmem:[%s143 + $0x1e0] sm:$0xff]
                %206 = vst [vmem:[%s144 + $0xf0] sm:$0xff] %v205
                %v207 = vld [vmem:[%s143 + $0x1e8] sm:$0xff]
                %208 = vst [vmem:[%s144 + $0xf8] sm:$0xff] %v207
                %v209 = vld [vmem:[%s143 + $0x1f0] sm:$0xff]
                %210 = vst [vmem:[%s144 + $0x100] sm:$0xff] %v209
                %v211 = vld [vmem:[%s143 + $0x210] sm:$0xff]
                %212 = vst [vmem:[%s144 + $0x108] sm:$0xff] %v211
                %v213 = vld [vmem:[%s143 + $0x218] sm:$0xff]
                %214 = vst [vmem:[%s144 + $0x110] sm:$0xff] %v213
                %v215 = vld [vmem:[%s143 + $0x220] sm:$0xff]
                %216 = vst [vmem:[%s144 + $0x118] sm:$0xff] %v215
                %v217 = vld [vmem:[%s143 + $0x240] sm:$0xff]
                %218 = vst [vmem:[%s144 + $0x120] sm:$0xff] %v217
                %v219 = vld [vmem:[%s143 + $0x248] sm:$0xff]
                %220 = vst [vmem:[%s144 + $0x128] sm:$0xff] %v219
                %v221 = vld [vmem:[%s143 + $0x250] sm:$0xff]
                %222 = vst [vmem:[%s144 + $0x130] sm:$0xff] %v221
                %v223 = vld [vmem:[%s143 + $0x270] sm:$0xff]
                %224 = vst [vmem:[%s144 + $0x138] sm:$0xff] %v223
                %v225 = vld [vmem:[%s143 + $0x278] sm:$0xff]
                %226 = vst [vmem:[%s144 + $0x140] sm:$0xff] %v225
                %v227 = vld [vmem:[%s143 + $0x280] sm:$0xff]
                %228 = vst [vmem:[%s144 + $0x148] sm:$0xff] %v227
                %v229 = vld [vmem:[%s143 + $0x2a0] sm:$0xff]
                %230 = vst [vmem:[%s144 + $0x150] sm:$0xff] %v229
                %v231 = vld [vmem:[%s143 + $0x2a8] sm:$0xff]
                %232 = vst [vmem:[%s144 + $0x158] sm:$0xff] %v231
                %v233 = vld [vmem:[%s143 + $0x2b0] sm:$0xff]
                %234 = vst [vmem:[%s144 + $0x160] sm:$0xff] %v233
                %v235 = vld [vmem:[%s143 + $0x2d0] sm:$0xff]
                %236 = vst [vmem:[%s144 + $0x168] sm:$0xff] %v235
                %v237 = vld [vmem:[%s143 + $0x2d8] sm:$0xff]
                %238 = vst [vmem:[%s144 + $0x170] sm:$0xff] %v237
                %v239 = vld [vmem:[%s143 + $0x2e0] sm:$0xff]
                %240 = vst [vmem:[%s144 + $0x178] sm:$0xff] %v239
                %v241 = vld [vmem:[%s143 + $0x300] sm:$0xff]
                %242 = vst [vmem:[%s144 + $0x180] sm:$0xff] %v241
                %v243 = vld [vmem:[%s143 + $0x308] sm:$0xff]
                %244 = vst [vmem:[%s144 + $0x188] sm:$0xff] %v243
                %v245 = vld [vmem:[%s143 + $0x310] sm:$0xff]
                %246 = vst [vmem:[%s144 + $0x190] sm:$0xff] %v245
                %v247 = vld [vmem:[%s143 + $0x330] sm:$0xff]
                %248 = vst [vmem:[%s144 + $0x198] sm:$0xff] %v247
                %v249 = vld [vmem:[%s143 + $0x338] sm:$0xff]
                %250 = vst [vmem:[%s144 + $0x1a0] sm:$0xff] %v249
                %v251 = vld [vmem:[%s143 + $0x340] sm:$0xff]
                %252 = vst [vmem:[%s144 + $0x1a8] sm:$0xff] %v251
                %v253 = vld [vmem:[%s143 + $0x360] sm:$0xff]
                %254 = vst [vmem:[%s144 + $0x1b0] sm:$0xff] %v253
                %v255 = vld [vmem:[%s143 + $0x368] sm:$0xff]
                %256 = vst [vmem:[%s144 + $0x1b8] sm:$0xff] %v255
                %v257 = vld [vmem:[%s143 + $0x370] sm:$0xff]
                %258 = vst [vmem:[%s144 + $0x1c0] sm:$0xff] %v257
                %v259 = vld [vmem:[%s143 + $0x390] sm:$0xff]
                %260 = vst [vmem:[%s144 + $0x1c8] sm:$0xff] %v259
                %v261 = vld [vmem:[%s143 + $0x398] sm:$0xff]
                %262 = vst [vmem:[%s144 + $0x1d0] sm:$0xff] %v261
                %v263 = vld [vmem:[%s143 + $0x3a0] sm:$0xff]
                %264 = vst [vmem:[%s144 + $0x1d8] sm:$0xff] %v263
                %v265 = vld [vmem:[%s143 + $0x3c0] sm:$0xff]
                %266 = vst [vmem:[%s144 + $0x1e0] sm:$0xff] %v265
                %v267 = vld [vmem:[%s143 + $0x3c8] sm:$0xff]
                %268 = vst [vmem:[%s144 + $0x1e8] sm:$0xff] %v267
                %v269 = vld [vmem:[%s143 + $0x3d0] sm:$0xff]
                %270 = vst [vmem:[%s144 + $0x1f0] sm:$0xff] %v269
                %v271 = vld [vmem:[%s143 + $0x3f0] sm:$0xff]
                %272 = vst [vmem:[%s144 + $0x1f8] sm:$0xff] %v271
                %v273 = vld [vmem:[%s143 + $0x3f8] sm:$0xff]
                %274 = vst [vmem:[%s144 + $0x200] sm:$0xff] %v273
                %v275 = vld [vmem:[%s143 + $0x400] sm:$0xff]
                %276 = vst [vmem:[%s144 + $0x208] sm:$0xff] %v275
                %v277 = vld [vmem:[%s143 + $0x420] sm:$0xff]
                %278 = vst [vmem:[%s144 + $0x210] sm:$0xff] %v277
                %v279 = vld [vmem:[%s143 + $0x428] sm:$0xff]
                %280 = vst [vmem:[%s144 + $0x218] sm:$0xff] %v279
                %v281 = vld [vmem:[%s143 + $0x430] sm:$0xff]
                %282 = vst [vmem:[%s144 + $0x220] sm:$0xff] %v281
                %v283 = vld [vmem:[%s143 + $0x450] sm:$0xff]
                %284 = vst [vmem:[%s144 + $0x228] sm:$0xff] %v283
                %v285 = vld [vmem:[%s143 + $0x458] sm:$0xff]
                %286 = vst [vmem:[%s144 + $0x230] sm:$0xff] %v285
                %v287 = vld [vmem:[%s143 + $0x460] sm:$0xff]
                %288 = vst [vmem:[%s144 + $0x238] sm:$0xff] %v287
                %v289 = vld [vmem:[%s143 + $0x480] sm:$0xff]
                %290 = vst [vmem:[%s144 + $0x240] sm:$0xff] %v289
                %v291 = vld [vmem:[%s143 + $0x488] sm:$0xff]
                %292 = vst [vmem:[%s144 + $0x248] sm:$0xff] %v291
                %v293 = vld [vmem:[%s143 + $0x490] sm:$0xff]
                %294 = vst [vmem:[%s144 + $0x250] sm:$0xff] %v293
                %v295 = vld [vmem:[%s143 + $0x4b0] sm:$0xff]
                %296 = vst [vmem:[%s144 + $0x258] sm:$0xff] %v295
                %v297 = vld [vmem:[%s143 + $0x4b8] sm:$0xff]
                %298 = vst [vmem:[%s144 + $0x260] sm:$0xff] %v297
                %v299 = vld [vmem:[%s143 + $0x4c0] sm:$0xff]
                %300 = vst [vmem:[%s144 + $0x268] sm:$0xff] %v299
                %v301 = vld [vmem:[%s143 + $0x4e0] sm:$0xff]
                %302 = vst [vmem:[%s144 + $0x270] sm:$0xff] %v301
                %v303 = vld [vmem:[%s143 + $0x4e8] sm:$0xff]
                %304 = vst [vmem:[%s144 + $0x278] sm:$0xff] %v303
                %v305 = vld [vmem:[%s143 + $0x4f0] sm:$0xff]
                %306 = vst [vmem:[%s144 + $0x280] sm:$0xff] %v305
                %v307 = vld [vmem:[%s143 + $0x510] sm:$0xff]
                %308 = vst [vmem:[%s144 + $0x288] sm:$0xff] %v307
                %v309 = vld [vmem:[%s143 + $0x518] sm:$0xff]
                %310 = vst [vmem:[%s144 + $0x290] sm:$0xff] %v309
                %v311 = vld [vmem:[%s143 + $0x520] sm:$0xff]
                %312 = vst [vmem:[%s144 + $0x298] sm:$0xff] %v311
                %v313 = vld [vmem:[%s143 + $0x540] sm:$0xff]
                %314 = vst [vmem:[%s144 + $0x2a0] sm:$0xff] %v313
                %v315 = vld [vmem:[%s143 + $0x548] sm:$0xff]
                %316 = vst [vmem:[%s144 + $0x2a8] sm:$0xff] %v315
                %v317 = vld [vmem:[%s143 + $0x550] sm:$0xff]
                %318 = vst [vmem:[%s144 + $0x2b0] sm:$0xff] %v317
                %v319 = vld [vmem:[%s143 + $0x570] sm:$0xff]
                %320 = vst [vmem:[%s144 + $0x2b8] sm:$0xff] %v319
                %v321 = vld [vmem:[%s143 + $0x578] sm:$0xff]
                %322 = vst [vmem:[%s144 + $0x2c0] sm:$0xff] %v321
                %v323 = vld [vmem:[%s143 + $0x580] sm:$0xff]
                %324 = vst [vmem:[%s144 + $0x2c8] sm:$0xff] %v323
                %v325 = vld [vmem:[%s143 + $0x5a0] sm:$0xff]
                %326 = vst [vmem:[%s144 + $0x2d0] sm:$0xff] %v325
                %v327 = vld [vmem:[%s143 + $0x5a8] sm:$0xff]
                %328 = vst [vmem:[%s144 + $0x2d8] sm:$0xff] %v327
                %v329 = vld [vmem:[%s143 + $0x5b0] sm:$0xff]
                %330 = vst [vmem:[%s144 + $0x2e0] sm:$0xff] %v329
                %v331 = vld [vmem:[%s143 + $0x5d0] sm:$0xff]
                %332 = vst [vmem:[%s144 + $0x2e8] sm:$0xff] %v331
                %v333 = vld [vmem:[%s143 + $0x5d8] sm:$0xff]
                %334 = vst [vmem:[%s144 + $0x2f0] sm:$0xff] %v333
                %v335 = vld [vmem:[%s143 + $0x5e0] sm:$0xff]
                %336 = vst [vmem:[%s144 + $0x2f8] sm:$0xff] %v335
                %v337 = vld [vmem:[%s143 + $0x600] sm:$0xff]
                %338 = vst [vmem:[%s144 + $0x300] sm:$0xff] %v337
                %v339 = vld [vmem:[%s143 + $0x608] sm:$0xff]
                %340 = vst [vmem:[%s144 + $0x308] sm:$0xff] %v339
                %v341 = vld [vmem:[%s143 + $0x610] sm:$0xff]
                %342 = vst [vmem:[%s144 + $0x310] sm:$0xff] %v341
                %v343 = vld [vmem:[%s143 + $0x630] sm:$0xff]
                %344 = vst [vmem:[%s144 + $0x318] sm:$0xff] %v343
                %v345 = vld [vmem:[%s143 + $0x638] sm:$0xff]
                %346 = vst [vmem:[%s144 + $0x320] sm:$0xff] %v345
                %v347 = vld [vmem:[%s143 + $0x640] sm:$0xff]
                %348 = vst [vmem:[%s144 + $0x328] sm:$0xff] %v347
                %v349 = vld [vmem:[%s143 + $0x660] sm:$0xff]
                %350 = vst [vmem:[%s144 + $0x330] sm:$0xff] %v349
                %v351 = vld [vmem:[%s143 + $0x668] sm:$0xff]
                %352 = vst [vmem:[%s144 + $0x338] sm:$0xff] %v351
                %v353 = vld [vmem:[%s143 + $0x670] sm:$0xff]
                %354 = vst [vmem:[%s144 + $0x340] sm:$0xff] %v353
                %v355 = vld [vmem:[%s143 + $0x690] sm:$0xff]
                %356 = vst [vmem:[%s144 + $0x348] sm:$0xff] %v355
                %v357 = vld [vmem:[%s143 + $0x698] sm:$0xff]
                %358 = vst [vmem:[%s144 + $0x350] sm:$0xff] %v357
                %v359 = vld [vmem:[%s143 + $0x6a0] sm:$0xff]
                %360 = vst [vmem:[%s144 + $0x358] sm:$0xff] %v359
                %v361 = vld [vmem:[%s143 + $0x6c0] sm:$0xff]
                %362 = vst [vmem:[%s144 + $0x360] sm:$0xff] %v361
                %v363 = vld [vmem:[%s143 + $0x6c8] sm:$0xff]
                %364 = vst [vmem:[%s144 + $0x368] sm:$0xff] %v363
                %v365 = vld [vmem:[%s143 + $0x6d0] sm:$0xff]
                %366 = vst [vmem:[%s144 + $0x370] sm:$0xff] %v365
                %v367 = vld [vmem:[%s143 + $0x6f0] sm:$0xff]
                %368 = vst [vmem:[%s144 + $0x378] sm:$0xff] %v367
                %v369 = vld [vmem:[%s143 + $0x6f8] sm:$0xff]
                %370 = vst [vmem:[%s144 + $0x380] sm:$0xff] %v369
                %v371 = vld [vmem:[%s143 + $0x700] sm:$0xff]
                %372 = vst [vmem:[%s144 + $0x388] sm:$0xff] %v371
                %v373 = vld [vmem:[%s143 + $0x720] sm:$0xff]
                %374 = vst [vmem:[%s144 + $0x390] sm:$0xff] %v373
                %v375 = vld [vmem:[%s143 + $0x728] sm:$0xff]
                %376 = vst [vmem:[%s144 + $0x398] sm:$0xff] %v375
                %v377 = vld [vmem:[%s143 + $0x730] sm:$0xff]
                %378 = vst [vmem:[%s144 + $0x3a0] sm:$0xff] %v377
                %v379 = vld [vmem:[%s143 + $0x750] sm:$0xff]
                %380 = vst [vmem:[%s144 + $0x3a8] sm:$0xff] %v379
                %v381 = vld [vmem:[%s143 + $0x758] sm:$0xff]
                %382 = vst [vmem:[%s144 + $0x3b0] sm:$0xff] %v381
                %v383 = vld [vmem:[%s143 + $0x760] sm:$0xff]
                %384 = vst [vmem:[%s144 + $0x3b8] sm:$0xff] %v383
                %v385 = vld [vmem:[%s143 + $0x780] sm:$0xff]
                %386 = vst [vmem:[%s144 + $0x3c0] sm:$0xff] %v385
                %v387 = vld [vmem:[%s143 + $0x788] sm:$0xff]
                %388 = vst [vmem:[%s144 + $0x3c8] sm:$0xff] %v387
                %v389 = vld [vmem:[%s143 + $0x790] sm:$0xff]
                %390 = vst [vmem:[%s144 + $0x3d0] sm:$0xff] %v389
                %v391 = vld [vmem:[%s143 + $0x7b0] sm:$0xff]
                %392 = vst [vmem:[%s144 + $0x3d8] sm:$0xff] %v391
                %v393 = vld [vmem:[%s143 + $0x7b8] sm:$0xff]
                %394 = vst [vmem:[%s144 + $0x3e0] sm:$0xff] %v393
                %v395 = vld [vmem:[%s143 + $0x7c0] sm:$0xff]
                %396 = vst [vmem:[%s144 + $0x3e8] sm:$0xff] %v395
                %v397 = vld [vmem:[%s143 + $0x7e0] sm:$0xff]
                %398 = vst [vmem:[%s144 + $0x3f0] sm:$0xff] %v397
                %v399 = vld [vmem:[%s143 + $0x7e8] sm:$0xff]
                %400 = vst [vmem:[%s144 + $0x3f8] sm:$0xff] %v399
                %v401 = vld [vmem:[%s143 + $0x7f0] sm:$0xff]
                %402 = vst [vmem:[%s144 + $0x400] sm:$0xff] %v401
                %v403 = vld [vmem:[%s143 + $0x810] sm:$0xff]
                %404 = vst [vmem:[%s144 + $0x408] sm:$0xff] %v403
                %v405 = vld [vmem:[%s143 + $0x818] sm:$0xff]
                %406 = vst [vmem:[%s144 + $0x410] sm:$0xff] %v405
                %v407 = vld [vmem:[%s143 + $0x820] sm:$0xff]
                %408 = vst [vmem:[%s144 + $0x418] sm:$0xff] %v407
                %v409 = vld [vmem:[%s143 + $0x840] sm:$0xff]
                %410 = vst [vmem:[%s144 + $0x420] sm:$0xff] %v409
                %v411 = vld [vmem:[%s143 + $0x848] sm:$0xff]
                %412 = vst [vmem:[%s144 + $0x428] sm:$0xff] %v411
                %v413 = vld [vmem:[%s143 + $0x850] sm:$0xff]
                %414 = vst [vmem:[%s144 + $0x430] sm:$0xff] %v413
                %v415 = vld [vmem:[%s143 + $0x870] sm:$0xff]
                %416 = vst [vmem:[%s144 + $0x438] sm:$0xff] %v415
                %v417 = vld [vmem:[%s143 + $0x878] sm:$0xff]
                %418 = vst [vmem:[%s144 + $0x440] sm:$0xff] %v417
                %v419 = vld [vmem:[%s143 + $0x880] sm:$0xff]
                %420 = vst [vmem:[%s144 + $0x448] sm:$0xff] %v419
                %v421 = vld [vmem:[%s143 + $0x8a0] sm:$0xff]
                %422 = vst [vmem:[%s144 + $0x450] sm:$0xff] %v421
                %v423 = vld [vmem:[%s143 + $0x8a8] sm:$0xff]
                %424 = vst [vmem:[%s144 + $0x458] sm:$0xff] %v423
                %v425 = vld [vmem:[%s143 + $0x8b0] sm:$0xff]
                %426 = vst [vmem:[%s144 + $0x460] sm:$0xff] %v425
                %v427 = vld [vmem:[%s143 + $0x8d0] sm:$0xff]
                %428 = vst [vmem:[%s144 + $0x468] sm:$0xff] %v427
                %v429 = vld [vmem:[%s143 + $0x8d8] sm:$0xff]
                %430 = vst [vmem:[%s144 + $0x470] sm:$0xff] %v429
                %v431 = vld [vmem:[%s143 + $0x8e0] sm:$0xff]
                %432 = vst [vmem:[%s144 + $0x478] sm:$0xff] %v431
                %v433 = vld [vmem:[%s143 + $0x900] sm:$0xff]
                %434 = vst [vmem:[%s144 + $0x480] sm:$0xff] %v433
                %v435 = vld [vmem:[%s143 + $0x908] sm:$0xff]
                %436 = vst [vmem:[%s144 + $0x488] sm:$0xff] %v435
                %v437 = vld [vmem:[%s143 + $0x910] sm:$0xff]
                %438 = vst [vmem:[%s144 + $0x490] sm:$0xff] %v437
                %v439 = vld [vmem:[%s143 + $0x930] sm:$0xff]
                %440 = vst [vmem:[%s144 + $0x498] sm:$0xff] %v439
                %v441 = vld [vmem:[%s143 + $0x938] sm:$0xff]
                %442 = vst [vmem:[%s144 + $0x4a0] sm:$0xff] %v441
                %v443 = vld [vmem:[%s143 + $0x940] sm:$0xff]
                %444 = vst [vmem:[%s144 + $0x4a8] sm:$0xff] %v443
                %v445 = vld [vmem:[%s143 + $0x960] sm:$0xff]
                %446 = vst [vmem:[%s144 + $0x4b0] sm:$0xff] %v445
                %v447 = vld [vmem:[%s143 + $0x968] sm:$0xff]
                %448 = vst [vmem:[%s144 + $0x4b8] sm:$0xff] %v447
                %v449 = vld [vmem:[%s143 + $0x970] sm:$0xff]
                %450 = vst [vmem:[%s144 + $0x4c0] sm:$0xff] %v449
                %v451 = vld [vmem:[%s143 + $0x990] sm:$0xff]
                %452 = vst [vmem:[%s144 + $0x4c8] sm:$0xff] %v451
                %v453 = vld [vmem:[%s143 + $0x998] sm:$0xff]
                %454 = vst [vmem:[%s144 + $0x4d0] sm:$0xff] %v453
                %v455 = vld [vmem:[%s143 + $0x9a0] sm:$0xff]
                %456 = vst [vmem:[%s144 + $0x4d8] sm:$0xff] %v455
                %v457 = vld [vmem:[%s143 + $0x9c0] sm:$0xff]
                %458 = vst [vmem:[%s144 + $0x4e0] sm:$0xff] %v457
                %v459 = vld [vmem:[%s143 + $0x9c8] sm:$0xff]
                %460 = vst [vmem:[%s144 + $0x4e8] sm:$0xff] %v459
                %v461 = vld [vmem:[%s143 + $0x9d0] sm:$0xff]
                %462 = vst [vmem:[%s144 + $0x4f0] sm:$0xff] %v461
                %v463 = vld [vmem:[%s143 + $0x9f0] sm:$0xff]
                %464 = vst [vmem:[%s144 + $0x4f8] sm:$0xff] %v463
                %v465 = vld [vmem:[%s143 + $0x9f8] sm:$0xff]
                %466 = vst [vmem:[%s144 + $0x500] sm:$0xff] %v465
                %v467 = vld [vmem:[%s143 + $0xa00] sm:$0xff]
                %468 = vst [vmem:[%s144 + $0x508] sm:$0xff] %v467
                %v469 = vld [vmem:[%s143 + $0xa20] sm:$0xff]
                %470 = vst [vmem:[%s144 + $0x510] sm:$0xff] %v469
                %v471 = vld [vmem:[%s143 + $0xa28] sm:$0xff]
                %472 = vst [vmem:[%s144 + $0x518] sm:$0xff] %v471
                %v473 = vld [vmem:[%s143 + $0xa30] sm:$0xff]
                %474 = vst [vmem:[%s144 + $0x520] sm:$0xff] %v473
                %v475 = vld [vmem:[%s143 + $0xa50] sm:$0xff]
                %476 = vst [vmem:[%s144 + $0x528] sm:$0xff] %v475
                %v477 = vld [vmem:[%s143 + $0xa58] sm:$0xff]
                %478 = vst [vmem:[%s144 + $0x530] sm:$0xff] %v477
                %v479 = vld [vmem:[%s143 + $0xa60] sm:$0xff]
                %480 = vst [vmem:[%s144 + $0x538] sm:$0xff] %v479
                %v481 = vld [vmem:[%s143 + $0xa80] sm:$0xff]
                %482 = vst [vmem:[%s144 + $0x540] sm:$0xff] %v481
                %v483 = vld [vmem:[%s143 + $0xa88] sm:$0xff]
                %484 = vst [vmem:[%s144 + $0x548] sm:$0xff] %v483
                %v485 = vld [vmem:[%s143 + $0xa90] sm:$0xff]
                %486 = vst [vmem:[%s144 + $0x550] sm:$0xff] %v485
                %v487 = vld [vmem:[%s143 + $0xab0] sm:$0xff]
                %488 = vst [vmem:[%s144 + $0x558] sm:$0xff] %v487
                %v489 = vld [vmem:[%s143 + $0xab8] sm:$0xff]
                %490 = vst [vmem:[%s144 + $0x560] sm:$0xff] %v489
                %v491 = vld [vmem:[%s143 + $0xac0] sm:$0xff]
                %492 = vst [vmem:[%s144 + $0x568] sm:$0xff] %v491
                %v493 = vld [vmem:[%s143 + $0xae0] sm:$0xff]
                %494 = vst [vmem:[%s144 + $0x570] sm:$0xff] %v493
                %v495 = vld [vmem:[%s143 + $0xae8] sm:$0xff]
                %496 = vst [vmem:[%s144 + $0x578] sm:$0xff] %v495
                %v497 = vld [vmem:[%s143 + $0xaf0] sm:$0xff]
                %498 = vst [vmem:[%s144 + $0x580] sm:$0xff] %v497
                %v499 = vld [vmem:[%s143 + $0xb10] sm:$0xff]
                %500 = vst [vmem:[%s144 + $0x588] sm:$0xff] %v499
                %v501 = vld [vmem:[%s143 + $0xb18] sm:$0xff]
                %502 = vst [vmem:[%s144 + $0x590] sm:$0xff] %v501
                %v503 = vld [vmem:[%s143 + $0xb20] sm:$0xff]
                %504 = vst [vmem:[%s144 + $0x598] sm:$0xff] %v503
                %v505 = vld [vmem:[%s143 + $0xb40] sm:$0xff]
                %506 = vst [vmem:[%s144 + $0x5a0] sm:$0xff] %v505
                %v507 = vld [vmem:[%s143 + $0xb48] sm:$0xff]
                %508 = vst [vmem:[%s144 + $0x5a8] sm:$0xff] %v507
                %v509 = vld [vmem:[%s143 + $0xb50] sm:$0xff]
                %510 = vst [vmem:[%s144 + $0x5b0] sm:$0xff] %v509
                %v511 = vld [vmem:[%s143 + $0xb70] sm:$0xff]
                %512 = vst [vmem:[%s144 + $0x5b8] sm:$0xff] %v511
                %v513 = vld [vmem:[%s143 + $0xb78] sm:$0xff]
                %514 = vst [vmem:[%s144 + $0x5c0] sm:$0xff] %v513
                %v515 = vld [vmem:[%s143 + $0xb80] sm:$0xff]
                %516 = vst [vmem:[%s144 + $0x5c8] sm:$0xff] %v515
                %v517 = vld [vmem:[%s143 + $0xba0] sm:$0xff]
                %518 = vst [vmem:[%s144 + $0x5d0] sm:$0xff] %v517
                %v519 = vld [vmem:[%s143 + $0xba8] sm:$0xff]
                %520 = vst [vmem:[%s144 + $0x5d8] sm:$0xff] %v519
                %v521 = vld [vmem:[%s143 + $0xbb0] sm:$0xff]
                %522 = vst [vmem:[%s144 + $0x5e0] sm:$0xff] %v521
                %v523 = vld [vmem:[%s143 + $0xbd0] sm:$0xff]
                %524 = vst [vmem:[%s144 + $0x5e8] sm:$0xff] %v523
                %v525 = vld [vmem:[%s143 + $0xbd8] sm:$0xff]
                %526 = vst [vmem:[%s144 + $0x5f0] sm:$0xff] %v525
                %v527 = vld [vmem:[%s143 + $0xbe0] sm:$0xff]
                %528 = vst [vmem:[%s144 + $0x5f8] sm:$0xff] %v527
                %v529 = vld [vmem:[%s143 + $0xc00] sm:$0xff]
                %530 = vst [vmem:[%s144 + $0x600] sm:$0xff] %v529
                %v531 = vld [vmem:[%s143 + $0xc08] sm:$0xff]
                %532 = vst [vmem:[%s144 + $0x608] sm:$0xff] %v531
                %v533 = vld [vmem:[%s143 + $0xc10] sm:$0xff]
                %534 = vst [vmem:[%s144 + $0x610] sm:$0xff] %v533
                %v535 = vld [vmem:[%s143 + $0xc30] sm:$0xff]
                %536 = vst [vmem:[%s144 + $0x618] sm:$0xff] %v535
                %v537 = vld [vmem:[%s143 + $0xc38] sm:$0xff]
                %538 = vst [vmem:[%s144 + $0x620] sm:$0xff] %v537
                %v539 = vld [vmem:[%s143 + $0xc40] sm:$0xff]
                %540 = vst [vmem:[%s144 + $0x628] sm:$0xff] %v539
                %v541 = vld [vmem:[%s143 + $0xc60] sm:$0xff]
                %542 = vst [vmem:[%s144 + $0x630] sm:$0xff] %v541
                %v543 = vld [vmem:[%s143 + $0xc68] sm:$0xff]
                %544 = vst [vmem:[%s144 + $0x638] sm:$0xff] %v543
                %v545 = vld [vmem:[%s143 + $0xc70] sm:$0xff]
                %546 = vst [vmem:[%s144 + $0x640] sm:$0xff] %v545
                %v547 = vld [vmem:[%s143 + $0xc90] sm:$0xff]
                %548 = vst [vmem:[%s144 + $0x648] sm:$0xff] %v547
                %v549 = vld [vmem:[%s143 + $0xc98] sm:$0xff]
                %550 = vst [vmem:[%s144 + $0x650] sm:$0xff] %v549
                %v551 = vld [vmem:[%s143 + $0xca0] sm:$0xff]
                %552 = vst [vmem:[%s144 + $0x658] sm:$0xff] %v551
                %v553 = vld [vmem:[%s143 + $0xcc0] sm:$0xff]
                %554 = vst [vmem:[%s144 + $0x660] sm:$0xff] %v553
                %v555 = vld [vmem:[%s143 + $0xcc8] sm:$0xff]
                %556 = vst [vmem:[%s144 + $0x668] sm:$0xff] %v555
                %v557 = vld [vmem:[%s143 + $0xcd0] sm:$0xff]
                %558 = vst [vmem:[%s144 + $0x670] sm:$0xff] %v557
                %v559 = vld [vmem:[%s143 + $0xcf0] sm:$0xff]
                %560 = vst [vmem:[%s144 + $0x678] sm:$0xff] %v559
                %v561 = vld [vmem:[%s143 + $0xcf8] sm:$0xff]
                %562 = vst [vmem:[%s144 + $0x680] sm:$0xff] %v561
                %v563 = vld [vmem:[%s143 + $0xd00] sm:$0xff]
                %564 = vst [vmem:[%s144 + $0x688] sm:$0xff] %v563
                %v565 = vld [vmem:[%s143 + $0xd20] sm:$0xff]
                %566 = vst [vmem:[%s144 + $0x690] sm:$0xff] %v565
                %v567 = vld [vmem:[%s143 + $0xd28] sm:$0xff]
                %568 = vst [vmem:[%s144 + $0x698] sm:$0xff] %v567
                %v569 = vld [vmem:[%s143 + $0xd30] sm:$0xff]
                %570 = vst [vmem:[%s144 + $0x6a0] sm:$0xff] %v569
                %v571 = vld [vmem:[%s143 + $0xd50] sm:$0xff]
                %572 = vst [vmem:[%s144 + $0x6a8] sm:$0xff] %v571
                %v573 = vld [vmem:[%s143 + $0xd58] sm:$0xff]
                %574 = vst [vmem:[%s144 + $0x6b0] sm:$0xff] %v573
                %v575 = vld [vmem:[%s143 + $0xd60] sm:$0xff]
                %576 = vst [vmem:[%s144 + $0x6b8] sm:$0xff] %v575
              $region33: #{tpu_custom_call.1} parent=27 // loop_footer
                %s142 = sadd.s32 1, %s138
              $region34: #{tpu_custom_call.1} parent=27 // loop_footer_branch
                %137 = sbr.rel target = $region30
              $region35: #{tpu_custom_call.1} parent=27 // loop_exit
                _
            $region28: #{tpu_custom_call.1} parent=23 // pred_fallthru
              _
            // Predicated region
            $region36: #{tpu_custom_call.1} parent=23 // pred_check
              _
            $region37: #{tpu_custom_call.1} parent=23 // pred_check_branch
              %578 = sbr.rel target = $region39
            $region38: #{tpu_custom_call.1} parent=23 // pred_region
              _
            $region39: #{tpu_custom_call.1} parent=23 // pred_fallthru
              _
          $region24: #{tpu_custom_call.1} parent=19 // pred_fallthru
            _
          %579 = vnop
        $region20: #{tpu_custom_call.1} parent=15 // pred_fallthru
          _
        // Predicated region
        $region40: #{tpu_custom_call.1} parent=15 // pred_check
          %p580 = pneg %p68
        $region41: #{tpu_custom_call.1} parent=15 // pred_check_branch
          %582 = sbr.rel (%p580) target = $region43
        $region42: #{tpu_custom_call.1} parent=15 // pred_region
          %s583 = sand.u32 %s58, 1
          %s584 = sand.u32 %s58, 1
          %s585 = smul.addr %s584, 96
          %s586 = scalar_lea.vmem [#allocation3], %s585
          %s587 = smul.u32 3, %s16
          %s588 = smul.addr %s587, 8
          %s589 = scalar_lea.vmem %s1, %s588
          // Predicated region
          $region44: #{tpu_custom_call.1} parent=42 // pred_check
            _
          $region45: #{tpu_custom_call.1} parent=42 // pred_check_branch
            %591 = sbr.rel (0) target = $region47
          $region46: #{tpu_custom_call.1} parent=42 // pred_region
            // Predicated region
            $region48: #{tpu_custom_call.1} parent=46 // pred_check
              _
            $region49: #{tpu_custom_call.1} parent=46 // pred_check_branch
              %593 = sbr.rel (0) target = $region51
            $region50: #{tpu_custom_call.1} parent=46 // pred_region
              loop: start=0, step=1, limit=1
              $region52: #{tpu_custom_call.1} parent=50 // loop_pre_header
                _
              $region53: #{tpu_custom_call.1} parent=50 // loop_header
                %s595 = sphi 0, %s599
                %p596 = scmp.ge.s32.totalorder %s595, 1
                %s600 = sphi %s589, %s589
                %s601 = sphi %s586, %s586
              $region54: #{tpu_custom_call.1} parent=50 // loop_header_branch
                %598 = sbr.rel (%p596) target = $region58
              $region55: #{tpu_custom_call.1} parent=50 // loop_body
                %v602 = vld [vmem:[%s600] sm:$0xff]
                %603 = vst [vmem:[%s601] sm:$0xff] %v602
                %v604 = vld [vmem:[%s600 + $0x8] sm:$0xff]
                %605 = vst [vmem:[%s601 + $0x8] sm:$0xff] %v604
                %v606 = vld [vmem:[%s600 + $0x10] sm:$0xff]
                %607 = vst [vmem:[%s601 + $0x10] sm:$0xff] %v606
                %v608 = vld [vmem:[%s600 + $0x30] sm:$0xff]
                %609 = vst [vmem:[%s601 + $0x18] sm:$0xff] %v608
                %v610 = vld [vmem:[%s600 + $0x38] sm:$0xff]
                %611 = vst [vmem:[%s601 + $0x20] sm:$0xff] %v610
                %v612 = vld [vmem:[%s600 + $0x40] sm:$0xff]
                %613 = vst [vmem:[%s601 + $0x28] sm:$0xff] %v612
                %v614 = vld [vmem:[%s600 + $0x60] sm:$0xff]
                %615 = vst [vmem:[%s601 + $0x30] sm:$0xff] %v614
                %v616 = vld [vmem:[%s600 + $0x68] sm:$0xff]
                %617 = vst [vmem:[%s601 + $0x38] sm:$0xff] %v616
                %v618 = vld [vmem:[%s600 + $0x70] sm:$0xff]
                %619 = vst [vmem:[%s601 + $0x40] sm:$0xff] %v618
                %v620 = vld [vmem:[%s600 + $0x90] sm:$0xff]
                %621 = vst [vmem:[%s601 + $0x48] sm:$0xff] %v620
                %v622 = vld [vmem:[%s600 + $0x98] sm:$0xff]
                %623 = vst [vmem:[%s601 + $0x50] sm:$0xff] %v622
                %v624 = vld [vmem:[%s600 + $0xa0] sm:$0xff]
                %625 = vst [vmem:[%s601 + $0x58] sm:$0xff] %v624
              $region56: #{tpu_custom_call.1} parent=50 // loop_footer
                %s599 = sadd.s32 1, %s595
              $region57: #{tpu_custom_call.1} parent=50 // loop_footer_branch
                %594 = sbr.rel target = $region53
              $region58: #{tpu_custom_call.1} parent=50 // loop_exit
                _
            $region51: #{tpu_custom_call.1} parent=46 // pred_fallthru
              _
            // Predicated region
            $region59: #{tpu_custom_call.1} parent=46 // pred_check
              _
            $region60: #{tpu_custom_call.1} parent=46 // pred_check_branch
              %627 = sbr.rel target = $region62
            $region61: #{tpu_custom_call.1} parent=46 // pred_region
              _
            $region62: #{tpu_custom_call.1} parent=46 // pred_fallthru
              _
          $region47: #{tpu_custom_call.1} parent=42 // pred_fallthru
            _
          %628 = vnop
        $region43: #{tpu_custom_call.1} parent=15 // pred_fallthru
          _
      $region16: #{tpu_custom_call.1} parent=5 // pred_fallthru
        _
      %p629 = scmp.le.s32.totalorder 1, %s8
      %p630 = scmp.lt.s32.totalorder %s8, 3
      %p631 = pnand %p629, %p630
      %p632 = pneg %p631
      // Predicated region
      $region63: #{tpu_custom_call.1} parent=5 // pred_check
        _
      $region64: #{tpu_custom_call.1} parent=5 // pred_check_branch
        %634 = sbr.rel (%p631) target = $region66
      $region65: #{tpu_custom_call.1} parent=5 // pred_region
        %s635 = ssub.s32 %s8, 1
        %s636 = sand.u32 %s35, 1
        %s637 = sand.u32 %s35, 1
        %s638 = smul.addr %s637, 1728
        %s639 = scalar_lea.vmem [#allocation2], %s638
        // Predicated region
        $region67: #{tpu_custom_call.1} parent=65 // pred_check
          %p640 = pneg %p48
        $region68: #{tpu_custom_call.1} parent=65 // pred_check_branch
          %642 = sbr.rel (%p640) target = $region70
        $region69: #{tpu_custom_call.1} parent=65 // pred_region
          _
        $region70: #{tpu_custom_call.1} parent=65 // pred_fallthru
          _
        %s643 = sand.u32 %s61, 1
        %s644 = sand.u32 %s61, 1
        %s645 = smul.addr %s644, 96
        %s646 = scalar_lea.vmem [#allocation3], %s645
        // Predicated region
        $region71: #{tpu_custom_call.1} parent=65 // pred_check
          %p647 = pneg %p74
        $region72: #{tpu_custom_call.1} parent=65 // pred_check_branch
          %649 = sbr.rel (%p647) target = $region74
        $region73: #{tpu_custom_call.1} parent=65 // pred_region
          _
        $region74: #{tpu_custom_call.1} parent=65 // pred_fallthru
          _
        %s650 = sand.u32 %s35, 1
        %s651 = sand.u32 %s35, 1
        %s652 = smul.addr %s651, 1728
        %s653 = scalar_lea.vmem [#allocation2], %s652
        %p654 = pneg %p48
        %p655 = pneg %p45
        %s656 = sand.u32 %s61, 1
        %s657 = sand.u32 %s61, 1
        %s658 = smul.addr %s657, 96
        %s659 = scalar_lea.vmem [#allocation3], %s658
        %p660 = pneg %p74
        %p661 = pneg %p71
        %p662 = pneg %p102
        %p663 = pneg %p99
        %s664 = sand.u32 %s89, 1
        %s665 = sand.u32 %s89, 1
        %s666 = smul.addr %s665, 168
        %s667 = scalar_lea.vmem [#allocation4], %s666
        %s668 = smul.u32 3, %s18
        %s669 = smul.u32 3, %s18
        %s670 = smul.u32 3, %s18
        %v671 = vld [vmem:[%s639] sm:$0x7f]
        %v672 = vld [vmem:[%s639 + $0x8] sm:$0x7f]
        %v673 = vld [vmem:[%s639 + $0x10] sm:$0x7f]
        %v674 = vld [vmem:[%s639 + $0x30] sm:$0x7f]
        %v675 = vld [vmem:[%s639 + $0x38] sm:$0x7f]
        %v676 = vld [vmem:[%s639 + $0x40] sm:$0x7f]
        %v677 = vld [vmem:[%s639 + $0x60] sm:$0x7f]
        %v678 = vld [vmem:[%s639 + $0x68] sm:$0x7f]
        %v679 = vld [vmem:[%s639 + $0x70] sm:$0x7f]
        %v680 = vld [vmem:[%s639 + $0x90] sm:$0x7f]
        %v681 = vld [vmem:[%s639 + $0x98] sm:$0x7f]
        %v682 = vld [vmem:[%s639 + $0xa0] sm:$0x7f]
        %v683 = vld [vmem:[%s639 + $0xc0] sm:$0x7f]
        %v684 = vld [vmem:[%s639 + $0xc8] sm:$0x7f]
        %v685 = vld [vmem:[%s639 + $0xd0] sm:$0x7f]
        %v686 = vld [vmem:[%s639 + $0xf0] sm:$0x7f]
        %v687 = vld [vmem:[%s639 + $0xf8] sm:$0x7f]
        %v688 = vld [vmem:[%s639 + $0x100] sm:$0x7f]
        %v689 = vld [vmem:[%s639 + $0x120] sm:$0x7f]
        %v690 = vld [vmem:[%s639 + $0x128] sm:$0x7f]
        %v691 = vld [vmem:[%s639 + $0x130] sm:$0x7f]
        %v692 = vld [vmem:[%s646] ss:$8 sm:$0x7]
        %v694 = vlaneseq
        %v695 = vshrl.u32 %v694, 7
        %v696 = vsub.s32 0, %v695
        %v697 = vrot.slane %v692, %v696
        %v698 = vlaneseq
        %v699 = vshrl.u32 %v698, 7
        %v700 = vsub.s32 1, %v699
        %v701 = vrot.slane %v692, %v700
        %v702 = vlaneseq
        %v703 = vshrl.u32 %v702, 7
        %v704 = vsub.s32 2, %v703
        %v705 = vrot.slane %v692, %v704
        %v709 = vmul.f32 %v671, %v697
        %v710 = vmul.f32 %v672, %v701
        %v711 = vmul.f32 %v673, %v705
        %v712 = vmul.f32 %v674, %v697
        %v713 = vmul.f32 %v675, %v701
        %v714 = vmul.f32 %v676, %v705
        %v715 = vmul.f32 %v677, %v697
        %v716 = vmul.f32 %v678, %v701
        %v717 = vmul.f32 %v679, %v705
        %v718 = vmul.f32 %v680, %v697
        %v719 = vmul.f32 %v681, %v701
        %v720 = vmul.f32 %v682, %v705
        %v721 = vmul.f32 %v683, %v697
        %v722 = vmul.f32 %v684, %v701
        %v723 = vmul.f32 %v685, %v705
        %v724 = vmul.f32 %v686, %v697
        %v725 = vmul.f32 %v687, %v701
        %v726 = vmul.f32 %v688, %v705
        %v727 = vmul.f32 %v689, %v697
        %v728 = vmul.f32 %v690, %v701
        %v729 = vmul.f32 %v691, %v705
        %v730 = vadd.f32 %v709, 0.0
        %v731 = vadd.f32 %v710, 0.0
        %v732 = vadd.f32 %v711, 0.0
        %v733 = vadd.f32 %v712, 0.0
        %v734 = vadd.f32 %v713, 0.0
        %v735 = vadd.f32 %v714, 0.0
        %v736 = vadd.f32 %v715, 0.0
        %v737 = vadd.f32 %v716, 0.0
        %v738 = vadd.f32 %v717, 0.0
        %v739 = vadd.f32 %v718, 0.0
        %v740 = vadd.f32 %v719, 0.0
        %v741 = vadd.f32 %v720, 0.0
        %v742 = vadd.f32 %v721, 0.0
        %v743 = vadd.f32 %v722, 0.0
        %v744 = vadd.f32 %v723, 0.0
        %v745 = vadd.f32 %v724, 0.0
        %v746 = vadd.f32 %v725, 0.0
        %v747 = vadd.f32 %v726, 0.0
        %v748 = vadd.f32 %v727, 0.0
        %v749 = vadd.f32 %v728, 0.0
        %v750 = vadd.f32 %v729, 0.0
        %s751 = scalar_lea.vmem %s639, 432 [#allocation2]
        %v752 = vld [vmem:[%s751] sm:$0x7f]
        %v753 = vld [vmem:[%s751 + $0x8] sm:$0x7f]
        %v754 = vld [vmem:[%s751 + $0x10] sm:$0x7f]
        %v755 = vld [vmem:[%s751 + $0x30] sm:$0x7f]
        %v756 = vld [vmem:[%s751 + $0x38] sm:$0x7f]
        %v757 = vld [vmem:[%s751 + $0x40] sm:$0x7f]
        %v758 = vld [vmem:[%s751 + $0x60] sm:$0x7f]
        %v759 = vld [vmem:[%s751 + $0x68] sm:$0x7f]
        %v760 = vld [vmem:[%s751 + $0x70] sm:$0x7f]
        %v761 = vld [vmem:[%s751 + $0x90] sm:$0x7f]
        %v762 = vld [vmem:[%s751 + $0x98] sm:$0x7f]
        %v763 = vld [vmem:[%s751 + $0xa0] sm:$0x7f]
        %v764 = vld [vmem:[%s751 + $0xc0] sm:$0x7f]
        %v765 = vld [vmem:[%s751 + $0xc8] sm:$0x7f]
        %v766 = vld [vmem:[%s751 + $0xd0] sm:$0x7f]
        %v767 = vld [vmem:[%s751 + $0xf0] sm:$0x7f]
        %v768 = vld [vmem:[%s751 + $0xf8] sm:$0x7f]
        %v769 = vld [vmem:[%s751 + $0x100] sm:$0x7f]
        %v770 = vld [vmem:[%s751 + $0x120] sm:$0x7f]
        %v771 = vld [vmem:[%s751 + $0x128] sm:$0x7f]
        %v772 = vld [vmem:[%s751 + $0x130] sm:$0x7f]
        %s773 = scalar_lea.vmem %s646, 1 [#allocation3]
        %v774 = vld [vmem:[%s773] ss:$8 sm:$0x7]
        %v776 = vlaneseq
        %v777 = vshrl.u32 %v776, 7
        %v778 = vsub.s32 0, %v777
        %v779 = vrot.slane %v774, %v778
        %v780 = vlaneseq
        %v781 = vshrl.u32 %v780, 7
        %v782 = vsub.s32 1, %v781
        %v783 = vrot.slane %v774, %v782
        %v784 = vlaneseq
        %v785 = vshrl.u32 %v784, 7
        %v786 = vsub.s32 2, %v785
        %v787 = vrot.slane %v774, %v786
        %v791 = vmul.f32 %v752, %v779
        %v792 = vmul.f32 %v753, %v783
        %v793 = vmul.f32 %v754, %v787
        %v794 = vmul.f32 %v755, %v779
        %v795 = vmul.f32 %v756, %v783
        %v796 = vmul.f32 %v757, %v787
        %v797 = vmul.f32 %v758, %v779
        %v798 = vmul.f32 %v759, %v783
        %v799 = vmul.f32 %v760, %v787
        %v800 = vmul.f32 %v761, %v779
        %v801 = vmul.f32 %v762, %v783
        %v802 = vmul.f32 %v763, %v787
        %v803 = vmul.f32 %v764, %v779
        %v804 = vmul.f32 %v765, %v783
        %v805 = vmul.f32 %v766, %v787
        %v806 = vmul.f32 %v767, %v779
        %v807 = vmul.f32 %v768, %v783
        %v808 = vmul.f32 %v769, %v787
        %v809 = vmul.f32 %v770, %v779
        %v810 = vmul.f32 %v771, %v783
        %v811 = vmul.f32 %v772, %v787
        %v812 = vadd.f32 %v730, %v791
        %v813 = vadd.f32 %v731, %v792
        %v814 = vadd.f32 %v732, %v793
        %v815 = vadd.f32 %v733, %v794
        %v816 = vadd.f32 %v734, %v795
        %v817 = vadd.f32 %v735, %v796
        %v818 = vadd.f32 %v736, %v797
        %v819 = vadd.f32 %v737, %v798
        %v820 = vadd.f32 %v738, %v799
        %v821 = vadd.f32 %v739, %v800
        %v822 = vadd.f32 %v740, %v801
        %v823 = vadd.f32 %v741, %v802
        %v824 = vadd.f32 %v742, %v803
        %v825 = vadd.f32 %v743, %v804
        %v826 = vadd.f32 %v744, %v805
        %v827 = vadd.f32 %v745, %v806
        %v828 = vadd.f32 %v746, %v807
        %v829 = vadd.f32 %v747, %v808
        %v830 = vadd.f32 %v748, %v809
        %v831 = vadd.f32 %v749, %v810
        %v832 = vadd.f32 %v750, %v811
        %v833 = vld [vmem:[%s639] sm:$0xfe]
        %v834 = vld [vmem:[%s639 + $0x8] sm:$0xfe]
        %v835 = vld [vmem:[%s639 + $0x10] sm:$0xfe]
        %v836 = vld [vmem:[%s639 + $0x30] sm:$0xfe]
        %v837 = vld [vmem:[%s639 + $0x38] sm:$0xfe]
        %v838 = vld [vmem:[%s639 + $0x40] sm:$0xfe]
        %v839 = vld [vmem:[%s639 + $0x60] sm:$0xfe]
        %v840 = vld [vmem:[%s639 + $0x68] sm:$0xfe]
        %v841 = vld [vmem:[%s639 + $0x70] sm:$0xfe]
        %v842 = vld [vmem:[%s639 + $0x90] sm:$0xfe]
        %v843 = vld [vmem:[%s639 + $0x98] sm:$0xfe]
        %v844 = vld [vmem:[%s639 + $0xa0] sm:$0xfe]
        %v845 = vld [vmem:[%s639 + $0xc0] sm:$0xfe]
        %v846 = vld [vmem:[%s639 + $0xc8] sm:$0xfe]
        %v847 = vld [vmem:[%s639 + $0xd0] sm:$0xfe]
        %v848 = vld [vmem:[%s639 + $0xf0] sm:$0xfe]
        %v849 = vld [vmem:[%s639 + $0xf8] sm:$0xfe]
        %v850 = vld [vmem:[%s639 + $0x100] sm:$0xfe]
        %v851 = vld [vmem:[%s639 + $0x120] sm:$0xfe]
        %v852 = vld [vmem:[%s639 + $0x128] sm:$0xfe]
        %v853 = vld [vmem:[%s639 + $0x130] sm:$0xfe]
        %s854 = scalar_lea.vmem %s646, 2 [#allocation3]
        %v855 = vld [vmem:[%s854] ss:$8 sm:$0x7]
        %v857 = vlaneseq
        %v858 = vshrl.u32 %v857, 7
        %v859 = vsub.s32 0, %v858
        %v860 = vrot.slane %v855, %v859
        %v861 = vlaneseq
        %v862 = vshrl.u32 %v861, 7
        %v863 = vsub.s32 1, %v862
        %v864 = vrot.slane %v855, %v863
        %v865 = vlaneseq
        %v866 = vshrl.u32 %v865, 7
        %v867 = vsub.s32 2, %v866
        %v868 = vrot.slane %v855, %v867
        %v872 = vmul.f32 %v833, %v860
        %v873 = vmul.f32 %v834, %v864
        %v874 = vmul.f32 %v835, %v868
        %v875 = vmul.f32 %v836, %v860
        %v876 = vmul.f32 %v837, %v864
        %v877 = vmul.f32 %v838, %v868
        %v878 = vmul.f32 %v839, %v860
        %v879 = vmul.f32 %v840, %v864
        %v880 = vmul.f32 %v841, %v868
        %v881 = vmul.f32 %v842, %v860
        %v882 = vmul.f32 %v843, %v864
        %v883 = vmul.f32 %v844, %v868
        %v884 = vmul.f32 %v845, %v860
        %v885 = vmul.f32 %v846, %v864
        %v886 = vmul.f32 %v847, %v868
        %v887 = vmul.f32 %v848, %v860
        %v888 = vmul.f32 %v849, %v864
        %v889 = vmul.f32 %v850, %v868
        %v890 = vmul.f32 %v851, %v860
        %v891 = vmul.f32 %v852, %v864
        %v892 = vmul.f32 %v853, %v868
        %v914 = vrot.slane %v872, 1
        %v915 = vrot.slane %v873, 1
        %v916 = vrot.slane %v874, 1
        %v917 = vrot.slane %v875, 1
        %v918 = vrot.slane %v876, 1
        %v919 = vrot.slane %v877, 1
        %v920 = vrot.slane %v878, 1
        %v921 = vrot.slane %v879, 1
        %v922 = vrot.slane %v880, 1
        %v923 = vrot.slane %v881, 1
        %v924 = vrot.slane %v882, 1
        %v925 = vrot.slane %v883, 1
        %v926 = vrot.slane %v884, 1
        %v927 = vrot.slane %v885, 1
        %v928 = vrot.slane %v886, 1
        %v929 = vrot.slane %v887, 1
        %v930 = vrot.slane %v888, 1
        %v931 = vrot.slane %v889, 1
        %v932 = vrot.slane %v890, 1
        %v933 = vrot.slane %v891, 1
        %v934 = vrot.slane %v892, 1
        %v956 = vadd.f32 %v812, %v914
        %v957 = vadd.f32 %v813, %v915
        %v958 = vadd.f32 %v814, %v916
        %v959 = vadd.f32 %v815, %v917
        %v960 = vadd.f32 %v816, %v918
        %v961 = vadd.f32 %v817, %v919
        %v962 = vadd.f32 %v818, %v920
        %v963 = vadd.f32 %v819, %v921
        %v964 = vadd.f32 %v820, %v922
        %v965 = vadd.f32 %v821, %v923
        %v966 = vadd.f32 %v822, %v924
        %v967 = vadd.f32 %v823, %v925
        %v968 = vadd.f32 %v824, %v926
        %v969 = vadd.f32 %v825, %v927
        %v970 = vadd.f32 %v826, %v928
        %v971 = vadd.f32 %v827, %v929
        %v972 = vadd.f32 %v828, %v930
        %v973 = vadd.f32 %v829, %v931
        %v974 = vadd.f32 %v830, %v932
        %v975 = vadd.f32 %v831, %v933
        %v976 = vadd.f32 %v832, %v934
        %v977 = vld [vmem:[%s751] sm:$0xfe]
        %v978 = vld [vmem:[%s751 + $0x8] sm:$0xfe]
        %v979 = vld [vmem:[%s751 + $0x10] sm:$0xfe]
        %v980 = vld [vmem:[%s751 + $0x30] sm:$0xfe]
        %v981 = vld [vmem:[%s751 + $0x38] sm:$0xfe]
        %v982 = vld [vmem:[%s751 + $0x40] sm:$0xfe]
        %v983 = vld [vmem:[%s751 + $0x60] sm:$0xfe]
        %v984 = vld [vmem:[%s751 + $0x68] sm:$0xfe]
        %v985 = vld [vmem:[%s751 + $0x70] sm:$0xfe]
        %v986 = vld [vmem:[%s751 + $0x90] sm:$0xfe]
        %v987 = vld [vmem:[%s751 + $0x98] sm:$0xfe]
        %v988 = vld [vmem:[%s751 + $0xa0] sm:$0xfe]
        %v989 = vld [vmem:[%s751 + $0xc0] sm:$0xfe]
        %v990 = vld [vmem:[%s751 + $0xc8] sm:$0xfe]
        %v991 = vld [vmem:[%s751 + $0xd0] sm:$0xfe]
        %v992 = vld [vmem:[%s751 + $0xf0] sm:$0xfe]
        %v993 = vld [vmem:[%s751 + $0xf8] sm:$0xfe]
        %v994 = vld [vmem:[%s751 + $0x100] sm:$0xfe]
        %v995 = vld [vmem:[%s751 + $0x120] sm:$0xfe]
        %v996 = vld [vmem:[%s751 + $0x128] sm:$0xfe]
        %v997 = vld [vmem:[%s751 + $0x130] sm:$0xfe]
        %s998 = scalar_lea.vmem %s646, 3 [#allocation3]
        %v999 = vld [vmem:[%s998] ss:$8 sm:$0x7]
        %v1001 = vlaneseq
        %v1002 = vshrl.u32 %v1001, 7
        %v1003 = vsub.s32 0, %v1002
        %v1004 = vrot.slane %v999, %v1003
        %v1005 = vlaneseq
        %v1006 = vshrl.u32 %v1005, 7
        %v1007 = vsub.s32 1, %v1006
        %v1008 = vrot.slane %v999, %v1007
        %v1009 = vlaneseq
        %v1010 = vshrl.u32 %v1009, 7
        %v1011 = vsub.s32 2, %v1010
        %v1012 = vrot.slane %v999, %v1011
        %v1016 = vmul.f32 %v977, %v1004
        %v1017 = vmul.f32 %v978, %v1008
        %v1018 = vmul.f32 %v979, %v1012
        %v1019 = vmul.f32 %v980, %v1004
        %v1020 = vmul.f32 %v981, %v1008
        %v1021 = vmul.f32 %v982, %v1012
        %v1022 = vmul.f32 %v983, %v1004
        %v1023 = vmul.f32 %v984, %v1008
        %v1024 = vmul.f32 %v985, %v1012
        %v1025 = vmul.f32 %v986, %v1004
        %v1026 = vmul.f32 %v987, %v1008
        %v1027 = vmul.f32 %v988, %v1012
        %v1028 = vmul.f32 %v989, %v1004
        %v1029 = vmul.f32 %v990, %v1008
        %v1030 = vmul.f32 %v991, %v1012
        %v1031 = vmul.f32 %v992, %v1004
        %v1032 = vmul.f32 %v993, %v1008
        %v1033 = vmul.f32 %v994, %v1012
        %v1034 = vmul.f32 %v995, %v1004
        %v1035 = vmul.f32 %v996, %v1008
        %v1036 = vmul.f32 %v997, %v1012
        %v1058 = vrot.slane %v1016, 1
        %v1059 = vrot.slane %v1017, 1
        %v1060 = vrot.slane %v1018, 1
        %v1061 = vrot.slane %v1019, 1
        %v1062 = vrot.slane %v1020, 1
        %v1063 = vrot.slane %v1021, 1
        %v1064 = vrot.slane %v1022, 1
        %v1065 = vrot.slane %v1023, 1
        %v1066 = vrot.slane %v1024, 1
        %v1067 = vrot.slane %v1025, 1
        %v1068 = vrot.slane %v1026, 1
        %v1069 = vrot.slane %v1027, 1
        %v1070 = vrot.slane %v1028, 1
        %v1071 = vrot.slane %v1029, 1
        %v1072 = vrot.slane %v1030, 1
        %v1073 = vrot.slane %v1031, 1
        %v1074 = vrot.slane %v1032, 1
        %v1075 = vrot.slane %v1033, 1
        %v1076 = vrot.slane %v1034, 1
        %v1077 = vrot.slane %v1035, 1
        %v1078 = vrot.slane %v1036, 1
        %v1100 = vadd.f32 %v956, %v1058
        %v1101 = vadd.f32 %v957, %v1059
        %v1102 = vadd.f32 %v958, %v1060
        %v1103 = vadd.f32 %v959, %v1061
        %v1104 = vadd.f32 %v960, %v1062
        %v1105 = vadd.f32 %v961, %v1063
        %v1106 = vadd.f32 %v962, %v1064
        %v1107 = vadd.f32 %v963, %v1065
        %v1108 = vadd.f32 %v964, %v1066
        %v1109 = vadd.f32 %v965, %v1067
        %v1110 = vadd.f32 %v966, %v1068
        %v1111 = vadd.f32 %v967, %v1069
        %v1112 = vadd.f32 %v968, %v1070
        %v1113 = vadd.f32 %v969, %v1071
        %v1114 = vadd.f32 %v970, %v1072
        %v1115 = vadd.f32 %v971, %v1073
        %v1116 = vadd.f32 %v972, %v1074
        %v1117 = vadd.f32 %v973, %v1075
        %v1118 = vadd.f32 %v974, %v1076
        %v1119 = vadd.f32 %v975, %v1077
        %v1120 = vadd.f32 %v976, %v1078
        %v1121 = vld [vmem:[%s639] sm:$0xfc]
        %v1122 = vld [vmem:[%s639 + $0x8] sm:$0xfc]
        %v1123 = vld [vmem:[%s639 + $0x10] sm:$0xfc]
        %v1124 = vld [vmem:[%s639 + $0x18] sm:$0x1]
        %v1125 = vld [vmem:[%s639 + $0x20] sm:$0x1]
        %v1126 = vld [vmem:[%s639 + $0x28] sm:$0x1]
        %v1127 = vld [vmem:[%s639 + $0x30] sm:$0xfc]
        %v1128 = vld [vmem:[%s639 + $0x38] sm:$0xfc]
        %v1129 = vld [vmem:[%s639 + $0x40] sm:$0xfc]
        %v1130 = vld [vmem:[%s639 + $0x48] sm:$0x1]
        %v1131 = vld [vmem:[%s639 + $0x50] sm:$0x1]
        %v1132 = vld [vmem:[%s639 + $0x58] sm:$0x1]
        %v1133 = vld [vmem:[%s639 + $0x60] sm:$0xfc]
        %v1134 = vld [vmem:[%s639 + $0x68] sm:$0xfc]
        %v1135 = vld [vmem:[%s639 + $0x70] sm:$0xfc]
        %v1136 = vld [vmem:[%s639 + $0x78] sm:$0x1]
        %v1137 = vld [vmem:[%s639 + $0x80] sm:$0x1]
        %v1138 = vld [vmem:[%s639 + $0x88] sm:$0x1]
        %v1139 = vld [vmem:[%s639 + $0x90] sm:$0xfc]
        %v1140 = vld [vmem:[%s639 + $0x98] sm:$0xfc]
        %v1141 = vld [vmem:[%s639 + $0xa0] sm:$0xfc]
        %v1142 = vld [vmem:[%s639 + $0xa8] sm:$0x1]
        %v1143 = vld [vmem:[%s639 + $0xb0] sm:$0x1]
        %v1144 = vld [vmem:[%s639 + $0xb8] sm:$0x1]
        %v1145 = vld [vmem:[%s639 + $0xc0] sm:$0xfc]
        %v1146 = vld [vmem:[%s639 + $0xc8] sm:$0xfc]
        %v1147 = vld [vmem:[%s639 + $0xd0] sm:$0xfc]
        %v1148 = vld [vmem:[%s639 + $0xd8] sm:$0x1]
        %v1149 = vld [vmem:[%s639 + $0xe0] sm:$0x1]
        %v1150 = vld [vmem:[%s639 + $0xe8] sm:$0x1]
        %v1151 = vld [vmem:[%s639 + $0xf0] sm:$0xfc]
        %v1152 = vld [vmem:[%s639 + $0xf8] sm:$0xfc]
        %v1153 = vld [vmem:[%s639 + $0x100] sm:$0xfc]
        %v1154 = vld [vmem:[%s639 + $0x108] sm:$0x1]
        %v1155 = vld [vmem:[%s639 + $0x110] sm:$0x1]
        %v1156 = vld [vmem:[%s639 + $0x118] sm:$0x1]
        %v1157 = vld [vmem:[%s639 + $0x120] sm:$0xfc]
        %v1158 = vld [vmem:[%s639 + $0x128] sm:$0xfc]
        %v1159 = vld [vmem:[%s639 + $0x130] sm:$0xfc]
        %v1160 = vld [vmem:[%s639 + $0x138] sm:$0x1]
        %v1161 = vld [vmem:[%s639 + $0x140] sm:$0x1]
        %v1162 = vld [vmem:[%s639 + $0x148] sm:$0x1]
        %s1163 = scalar_lea.vmem %s646, 4 [#allocation3]
        %v1164 = vld [vmem:[%s1163] ss:$8 sm:$0x7]
        %v1166 = vlaneseq
        %v1167 = vshrl.u32 %v1166, 7
        %v1168 = vsub.s32 0, %v1167
        %v1169 = vrot.slane %v1164, %v1168
        %v1170 = vlaneseq
        %v1171 = vshrl.u32 %v1170, 7
        %v1172 = vsub.s32 1, %v1171
        %v1173 = vrot.slane %v1164, %v1172
        %v1174 = vlaneseq
        %v1175 = vshrl.u32 %v1174, 7
        %v1176 = vsub.s32 2, %v1175
        %v1177 = vrot.slane %v1164, %v1176
        %v1181 = vmul.f32 %v1121, %v1169
        %v1182 = vmul.f32 %v1122, %v1173
        %v1183 = vmul.f32 %v1123, %v1177
        %v1184 = vmul.f32 %v1124, %v1169
        %v1185 = vmul.f32 %v1125, %v1173
        %v1186 = vmul.f32 %v1126, %v1177
        %v1187 = vmul.f32 %v1127, %v1169
        %v1188 = vmul.f32 %v1128, %v1173
        %v1189 = vmul.f32 %v1129, %v1177
        %v1190 = vmul.f32 %v1130, %v1169
        %v1191 = vmul.f32 %v1131, %v1173
        %v1192 = vmul.f32 %v1132, %v1177
        %v1193 = vmul.f32 %v1133, %v1169
        %v1194 = vmul.f32 %v1134, %v1173
        %v1195 = vmul.f32 %v1135, %v1177
        %v1196 = vmul.f32 %v1136, %v1169
        %v1197 = vmul.f32 %v1137, %v1173
        %v1198 = vmul.f32 %v1138, %v1177
        %v1199 = vmul.f32 %v1139, %v1169
        %v1200 = vmul.f32 %v1140, %v1173
        %v1201 = vmul.f32 %v1141, %v1177
        %v1202 = vmul.f32 %v1142, %v1169
        %v1203 = vmul.f32 %v1143, %v1173
        %v1204 = vmul.f32 %v1144, %v1177
        %v1205 = vmul.f32 %v1145, %v1169
        %v1206 = vmul.f32 %v1146, %v1173
        %v1207 = vmul.f32 %v1147, %v1177
        %v1208 = vmul.f32 %v1148, %v1169
        %v1209 = vmul.f32 %v1149, %v1173
        %v1210 = vmul.f32 %v1150, %v1177
        %v1211 = vmul.f32 %v1151, %v1169
        %v1212 = vmul.f32 %v1152, %v1173
        %v1213 = vmul.f32 %v1153, %v1177
        %v1214 = vmul.f32 %v1154, %v1169
        %v1215 = vmul.f32 %v1155, %v1173
        %v1216 = vmul.f32 %v1156, %v1177
        %v1217 = vmul.f32 %v1157, %v1169
        %v1218 = vmul.f32 %v1158, %v1173
        %v1219 = vmul.f32 %v1159, %v1177
        %v1220 = vmul.f32 %v1160, %v1169
        %v1221 = vmul.f32 %v1161, %v1173
        %v1222 = vmul.f32 %v1162, %v1177
        %vm1265 = vcmask 1045504
        %v1266 = vrot.slane %v1181, 2
        %v1267 = vrot.slane %v1184, 2
        %v1268 = vsel %vm1265, %v1266, %v1267
        %v1269 = vrot.slane %v1182, 2
        %v1270 = vrot.slane %v1185, 2
        %v1271 = vsel %vm1265, %v1269, %v1270
        %v1272 = vrot.slane %v1183, 2
        %v1273 = vrot.slane %v1186, 2
        %v1274 = vsel %vm1265, %v1272, %v1273
        %v1275 = vrot.slane %v1187, 2
        %v1276 = vrot.slane %v1190, 2
        %v1277 = vsel %vm1265, %v1275, %v1276
        %v1278 = vrot.slane %v1188, 2
        %v1279 = vrot.slane %v1191, 2
        %v1280 = vsel %vm1265, %v1278, %v1279
        %v1281 = vrot.slane %v1189, 2
        %v1282 = vrot.slane %v1192, 2
        %v1283 = vsel %vm1265, %v1281, %v1282
        %v1284 = vrot.slane %v1193, 2
        %v1285 = vrot.slane %v1196, 2
        %v1286 = vsel %vm1265, %v1284, %v1285
        %v1287 = vrot.slane %v1194, 2
        %v1288 = vrot.slane %v1197, 2
        %v1289 = vsel %vm1265, %v1287, %v1288
        %v1290 = vrot.slane %v1195, 2
        %v1291 = vrot.slane %v1198, 2
        %v1292 = vsel %vm1265, %v1290, %v1291
        %v1293 = vrot.slane %v1199, 2
        %v1294 = vrot.slane %v1202, 2
        %v1295 = vsel %vm1265, %v1293, %v1294
        %v1296 = vrot.slane %v1200, 2
        %v1297 = vrot.slane %v1203, 2
        %v1298 = vsel %vm1265, %v1296, %v1297
        %v1299 = vrot.slane %v1201, 2
        %v1300 = vrot.slane %v1204, 2
        %v1301 = vsel %vm1265, %v1299, %v1300
        %v1302 = vrot.slane %v1205, 2
        %v1303 = vrot.slane %v1208, 2
        %v1304 = vsel %vm1265, %v1302, %v1303
        %v1305 = vrot.slane %v1206, 2
        %v1306 = vrot.slane %v1209, 2
        %v1307 = vsel %vm1265, %v1305, %v1306
        %v1308 = vrot.slane %v1207, 2
        %v1309 = vrot.slane %v1210, 2
        %v1310 = vsel %vm1265, %v1308, %v1309
        %v1311 = vrot.slane %v1211, 2
        %v1312 = vrot.slane %v1214, 2
        %v1313 = vsel %vm1265, %v1311, %v1312
        %v1314 = vrot.slane %v1212, 2
        %v1315 = vrot.slane %v1215, 2
        %v1316 = vsel %vm1265, %v1314, %v1315
        %v1317 = vrot.slane %v1213, 2
        %v1318 = vrot.slane %v1216, 2
        %v1319 = vsel %vm1265, %v1317, %v1318
        %v1320 = vrot.slane %v1217, 2
        %v1321 = vrot.slane %v1220, 2
        %v1322 = vsel %vm1265, %v1320, %v1321
        %v1323 = vrot.slane %v1218, 2
        %v1324 = vrot.slane %v1221, 2
        %v1325 = vsel %vm1265, %v1323, %v1324
        %v1326 = vrot.slane %v1219, 2
        %v1327 = vrot.slane %v1222, 2
        %v1328 = vsel %vm1265, %v1326, %v1327
        %v1350 = vadd.f32 %v1100, %v1268
        %v1351 = vadd.f32 %v1101, %v1271
        %v1352 = vadd.f32 %v1102, %v1274
        %v1353 = vadd.f32 %v1103, %v1277
        %v1354 = vadd.f32 %v1104, %v1280
        %v1355 = vadd.f32 %v1105, %v1283
        %v1356 = vadd.f32 %v1106, %v1286
        %v1357 = vadd.f32 %v1107, %v1289
        %v1358 = vadd.f32 %v1108, %v1292
        %v1359 = vadd.f32 %v1109, %v1295
        %v1360 = vadd.f32 %v1110, %v1298
        %v1361 = vadd.f32 %v1111, %v1301
        %v1362 = vadd.f32 %v1112, %v1304
        %v1363 = vadd.f32 %v1113, %v1307
        %v1364 = vadd.f32 %v1114, %v1310
        %v1365 = vadd.f32 %v1115, %v1313
        %v1366 = vadd.f32 %v1116, %v1316
        %v1367 = vadd.f32 %v1117, %v1319
        %v1368 = vadd.f32 %v1118, %v1322
        %v1369 = vadd.f32 %v1119, %v1325
        %v1370 = vadd.f32 %v1120, %v1328
        %s1371 = scalar_lea.vmem %s639, 864 [#allocation2]
        %v1372 = vld [vmem:[%s1371] sm:$0x7f]
        %v1373 = vld [vmem:[%s1371 + $0x8] sm:$0x7f]
        %v1374 = vld [vmem:[%s1371 + $0x10] sm:$0x7f]
        %v1375 = vld [vmem:[%s1371 + $0x30] sm:$0x7f]
        %v1376 = vld [vmem:[%s1371 + $0x38] sm:$0x7f]
        %v1377 = vld [vmem:[%s1371 + $0x40] sm:$0x7f]
        %v1378 = vld [vmem:[%s1371 + $0x60] sm:$0x7f]
        %v1379 = vld [vmem:[%s1371 + $0x68] sm:$0x7f]
        %v1380 = vld [vmem:[%s1371 + $0x70] sm:$0x7f]
        %v1381 = vld [vmem:[%s1371 + $0x90] sm:$0x7f]
        %v1382 = vld [vmem:[%s1371 + $0x98] sm:$0x7f]
        %v1383 = vld [vmem:[%s1371 + $0xa0] sm:$0x7f]
        %v1384 = vld [vmem:[%s1371 + $0xc0] sm:$0x7f]
        %v1385 = vld [vmem:[%s1371 + $0xc8] sm:$0x7f]
        %v1386 = vld [vmem:[%s1371 + $0xd0] sm:$0x7f]
        %v1387 = vld [vmem:[%s1371 + $0xf0] sm:$0x7f]
        %v1388 = vld [vmem:[%s1371 + $0xf8] sm:$0x7f]
        %v1389 = vld [vmem:[%s1371 + $0x100] sm:$0x7f]
        %v1390 = vld [vmem:[%s1371 + $0x120] sm:$0x7f]
        %v1391 = vld [vmem:[%s1371 + $0x128] sm:$0x7f]
        %v1392 = vld [vmem:[%s1371 + $0x130] sm:$0x7f]
        %s1393 = scalar_lea.vmem %s646, 5 [#allocation3]
        %v1394 = vld [vmem:[%s1393] ss:$8 sm:$0x7]
        %v1396 = vlaneseq
        %v1397 = vshrl.u32 %v1396, 7
        %v1398 = vsub.s32 0, %v1397
        %v1399 = vrot.slane %v1394, %v1398
        %v1400 = vlaneseq
        %v1401 = vshrl.u32 %v1400, 7
        %v1402 = vsub.s32 1, %v1401
        %v1403 = vrot.slane %v1394, %v1402
        %v1404 = vlaneseq
        %v1405 = vshrl.u32 %v1404, 7
        %v1406 = vsub.s32 2, %v1405
        %v1407 = vrot.slane %v1394, %v1406
        %v1411 = vmul.f32 %v1372, %v1399
        %v1412 = vmul.f32 %v1373, %v1403
        %v1413 = vmul.f32 %v1374, %v1407
        %v1414 = vmul.f32 %v1375, %v1399
        %v1415 = vmul.f32 %v1376, %v1403
        %v1416 = vmul.f32 %v1377, %v1407
        %v1417 = vmul.f32 %v1378, %v1399
        %v1418 = vmul.f32 %v1379, %v1403
        %v1419 = vmul.f32 %v1380, %v1407
        %v1420 = vmul.f32 %v1381, %v1399
        %v1421 = vmul.f32 %v1382, %v1403
        %v1422 = vmul.f32 %v1383, %v1407
        %v1423 = vmul.f32 %v1384, %v1399
        %v1424 = vmul.f32 %v1385, %v1403
        %v1425 = vmul.f32 %v1386, %v1407
        %v1426 = vmul.f32 %v1387, %v1399
        %v1427 = vmul.f32 %v1388, %v1403
        %v1428 = vmul.f32 %v1389, %v1407
        %v1429 = vmul.f32 %v1390, %v1399
        %v1430 = vmul.f32 %v1391, %v1403
        %v1431 = vmul.f32 %v1392, %v1407
        %v1432 = vadd.f32 %v1350, %v1411
        %v1433 = vadd.f32 %v1351, %v1412
        %v1434 = vadd.f32 %v1352, %v1413
        %v1435 = vadd.f32 %v1353, %v1414
        %v1436 = vadd.f32 %v1354, %v1415
        %v1437 = vadd.f32 %v1355, %v1416
        %v1438 = vadd.f32 %v1356, %v1417
        %v1439 = vadd.f32 %v1357, %v1418
        %v1440 = vadd.f32 %v1358, %v1419
        %v1441 = vadd.f32 %v1359, %v1420
        %v1442 = vadd.f32 %v1360, %v1421
        %v1443 = vadd.f32 %v1361, %v1422
        %v1444 = vadd.f32 %v1362, %v1423
        %v1445 = vadd.f32 %v1363, %v1424
        %v1446 = vadd.f32 %v1364, %v1425
        %v1447 = vadd.f32 %v1365, %v1426
        %v1448 = vadd.f32 %v1366, %v1427
        %v1449 = vadd.f32 %v1367, %v1428
        %v1450 = vadd.f32 %v1368, %v1429
        %v1451 = vadd.f32 %v1369, %v1430
        %v1452 = vadd.f32 %v1370, %v1431
        %s1453 = scalar_lea.vmem %s639, 1296 [#allocation2]
        %v1454 = vld [vmem:[%s1453] sm:$0x7f]
        %v1455 = vld [vmem:[%s1453 + $0x8] sm:$0x7f]
        %v1456 = vld [vmem:[%s1453 + $0x10] sm:$0x7f]
        %v1457 = vld [vmem:[%s1453 + $0x30] sm:$0x7f]
        %v1458 = vld [vmem:[%s1453 + $0x38] sm:$0x7f]
        %v1459 = vld [vmem:[%s1453 + $0x40] sm:$0x7f]
        %v1460 = vld [vmem:[%s1453 + $0x60] sm:$0x7f]
        %v1461 = vld [vmem:[%s1453 + $0x68] sm:$0x7f]
        %v1462 = vld [vmem:[%s1453 + $0x70] sm:$0x7f]
        %v1463 = vld [vmem:[%s1453 + $0x90] sm:$0x7f]
        %v1464 = vld [vmem:[%s1453 + $0x98] sm:$0x7f]
        %v1465 = vld [vmem:[%s1453 + $0xa0] sm:$0x7f]
        %v1466 = vld [vmem:[%s1453 + $0xc0] sm:$0x7f]
        %v1467 = vld [vmem:[%s1453 + $0xc8] sm:$0x7f]
        %v1468 = vld [vmem:[%s1453 + $0xd0] sm:$0x7f]
        %v1469 = vld [vmem:[%s1453 + $0xf0] sm:$0x7f]
        %v1470 = vld [vmem:[%s1453 + $0xf8] sm:$0x7f]
        %v1471 = vld [vmem:[%s1453 + $0x100] sm:$0x7f]
        %v1472 = vld [vmem:[%s1453 + $0x120] sm:$0x7f]
        %v1473 = vld [vmem:[%s1453 + $0x128] sm:$0x7f]
        %v1474 = vld [vmem:[%s1453 + $0x130] sm:$0x7f]
        %s1475 = scalar_lea.vmem %s646, 6 [#allocation3]
        %v1476 = vld [vmem:[%s1475] ss:$8 sm:$0x7]
        %v1478 = vlaneseq
        %v1479 = vshrl.u32 %v1478, 7
        %v1480 = vsub.s32 0, %v1479
        %v1481 = vrot.slane %v1476, %v1480
        %v1482 = vlaneseq
        %v1483 = vshrl.u32 %v1482, 7
        %v1484 = vsub.s32 1, %v1483
        %v1485 = vrot.slane %v1476, %v1484
        %v1486 = vlaneseq
        %v1487 = vshrl.u32 %v1486, 7
        %v1488 = vsub.s32 2, %v1487
        %v1489 = vrot.slane %v1476, %v1488
        %v1493 = vmul.f32 %v1454, %v1481
        %v1494 = vmul.f32 %v1455, %v1485
        %v1495 = vmul.f32 %v1456, %v1489
        %v1496 = vmul.f32 %v1457, %v1481
        %v1497 = vmul.f32 %v1458, %v1485
        %v1498 = vmul.f32 %v1459, %v1489
        %v1499 = vmul.f32 %v1460, %v1481
        %v1500 = vmul.f32 %v1461, %v1485
        %v1501 = vmul.f32 %v1462, %v1489
        %v1502 = vmul.f32 %v1463, %v1481
        %v1503 = vmul.f32 %v1464, %v1485
        %v1504 = vmul.f32 %v1465, %v1489
        %v1505 = vmul.f32 %v1466, %v1481
        %v1506 = vmul.f32 %v1467, %v1485
        %v1507 = vmul.f32 %v1468, %v1489
        %v1508 = vmul.f32 %v1469, %v1481
        %v1509 = vmul.f32 %v1470, %v1485
        %v1510 = vmul.f32 %v1471, %v1489
        %v1511 = vmul.f32 %v1472, %v1481
        %v1512 = vmul.f32 %v1473, %v1485
        %v1513 = vmul.f32 %v1474, %v1489
        %v1514 = vadd.f32 %v1432, %v1493
        %v1515 = vadd.f32 %v1433, %v1494
        %v1516 = vadd.f32 %v1434, %v1495
        %v1517 = vadd.f32 %v1435, %v1496
        %v1518 = vadd.f32 %v1436, %v1497
        %v1519 = vadd.f32 %v1437, %v1498
        %v1520 = vadd.f32 %v1438, %v1499
        %v1521 = vadd.f32 %v1439, %v1500
        %v1522 = vadd.f32 %v1440, %v1501
        %v1523 = vadd.f32 %v1441, %v1502
        %v1524 = vadd.f32 %v1442, %v1503
        %v1525 = vadd.f32 %v1443, %v1504
        %v1526 = vadd.f32 %v1444, %v1505
        %v1527 = vadd.f32 %v1445, %v1506
        %v1528 = vadd.f32 %v1446, %v1507
        %v1529 = vadd.f32 %v1447, %v1508
        %v1530 = vadd.f32 %v1448, %v1509
        %v1531 = vadd.f32 %v1449, %v1510
        %v1532 = vadd.f32 %v1450, %v1511
        %v1533 = vadd.f32 %v1451, %v1512
        %v1534 = vadd.f32 %v1452, %v1513
        %v1535 = vld [vmem:[%s1371] sm:$0xfe]
        %v1536 = vld [vmem:[%s1371 + $0x8] sm:$0xfe]
        %v1537 = vld [vmem:[%s1371 + $0x10] sm:$0xfe]
        %v1538 = vld [vmem:[%s1371 + $0x30] sm:$0xfe]
        %v1539 = vld [vmem:[%s1371 + $0x38] sm:$0xfe]
        %v1540 = vld [vmem:[%s1371 + $0x40] sm:$0xfe]
        %v1541 = vld [vmem:[%s1371 + $0x60] sm:$0xfe]
        %v1542 = vld [vmem:[%s1371 + $0x68] sm:$0xfe]
        %v1543 = vld [vmem:[%s1371 + $0x70] sm:$0xfe]
        %v1544 = vld [vmem:[%s1371 + $0x90] sm:$0xfe]
        %v1545 = vld [vmem:[%s1371 + $0x98] sm:$0xfe]
        %v1546 = vld [vmem:[%s1371 + $0xa0] sm:$0xfe]
        %v1547 = vld [vmem:[%s1371 + $0xc0] sm:$0xfe]
        %v1548 = vld [vmem:[%s1371 + $0xc8] sm:$0xfe]
        %v1549 = vld [vmem:[%s1371 + $0xd0] sm:$0xfe]
        %v1550 = vld [vmem:[%s1371 + $0xf0] sm:$0xfe]
        %v1551 = vld [vmem:[%s1371 + $0xf8] sm:$0xfe]
        %v1552 = vld [vmem:[%s1371 + $0x100] sm:$0xfe]
        %v1553 = vld [vmem:[%s1371 + $0x120] sm:$0xfe]
        %v1554 = vld [vmem:[%s1371 + $0x128] sm:$0xfe]
        %v1555 = vld [vmem:[%s1371 + $0x130] sm:$0xfe]
        %s1556 = scalar_lea.vmem %s646, 7 [#allocation3]
        %v1557 = vld [vmem:[%s1556] ss:$8 sm:$0x7]
        %v1559 = vlaneseq
        %v1560 = vshrl.u32 %v1559, 7
        %v1561 = vsub.s32 0, %v1560
        %v1562 = vrot.slane %v1557, %v1561
        %v1563 = vlaneseq
        %v1564 = vshrl.u32 %v1563, 7
        %v1565 = vsub.s32 1, %v1564
        %v1566 = vrot.slane %v1557, %v1565
        %v1567 = vlaneseq
        %v1568 = vshrl.u32 %v1567, 7
        %v1569 = vsub.s32 2, %v1568
        %v1570 = vrot.slane %v1557, %v1569
        %v1574 = vmul.f32 %v1535, %v1562
        %v1575 = vmul.f32 %v1536, %v1566
        %v1576 = vmul.f32 %v1537, %v1570
        %v1577 = vmul.f32 %v1538, %v1562
        %v1578 = vmul.f32 %v1539, %v1566
        %v1579 = vmul.f32 %v1540, %v1570
        %v1580 = vmul.f32 %v1541, %v1562
        %v1581 = vmul.f32 %v1542, %v1566
        %v1582 = vmul.f32 %v1543, %v1570
        %v1583 = vmul.f32 %v1544, %v1562
        %v1584 = vmul.f32 %v1545, %v1566
        %v1585 = vmul.f32 %v1546, %v1570
        %v1586 = vmul.f32 %v1547, %v1562
        %v1587 = vmul.f32 %v1548, %v1566
        %v1588 = vmul.f32 %v1549, %v1570
        %v1589 = vmul.f32 %v1550, %v1562
        %v1590 = vmul.f32 %v1551, %v1566
        %v1591 = vmul.f32 %v1552, %v1570
        %v1592 = vmul.f32 %v1553, %v1562
        %v1593 = vmul.f32 %v1554, %v1566
        %v1594 = vmul.f32 %v1555, %v1570
        %v1616 = vrot.slane %v1574, 1
        %v1617 = vrot.slane %v1575, 1
        %v1618 = vrot.slane %v1576, 1
        %v1619 = vrot.slane %v1577, 1
        %v1620 = vrot.slane %v1578, 1
        %v1621 = vrot.slane %v1579, 1
        %v1622 = vrot.slane %v1580, 1
        %v1623 = vrot.slane %v1581, 1
        %v1624 = vrot.slane %v1582, 1
        %v1625 = vrot.slane %v1583, 1
        %v1626 = vrot.slane %v1584, 1
        %v1627 = vrot.slane %v1585, 1
        %v1628 = vrot.slane %v1586, 1
        %v1629 = vrot.slane %v1587, 1
        %v1630 = vrot.slane %v1588, 1
        %v1631 = vrot.slane %v1589, 1
        %v1632 = vrot.slane %v1590, 1
        %v1633 = vrot.slane %v1591, 1
        %v1634 = vrot.slane %v1592, 1
        %v1635 = vrot.slane %v1593, 1
        %v1636 = vrot.slane %v1594, 1
        %v1658 = vadd.f32 %v1514, %v1616
        %v1659 = vadd.f32 %v1515, %v1617
        %v1660 = vadd.f32 %v1516, %v1618
        %v1661 = vadd.f32 %v1517, %v1619
        %v1662 = vadd.f32 %v1518, %v1620
        %v1663 = vadd.f32 %v1519, %v1621
        %v1664 = vadd.f32 %v1520, %v1622
        %v1665 = vadd.f32 %v1521, %v1623
        %v1666 = vadd.f32 %v1522, %v1624
        %v1667 = vadd.f32 %v1523, %v1625
        %v1668 = vadd.f32 %v1524, %v1626
        %v1669 = vadd.f32 %v1525, %v1627
        %v1670 = vadd.f32 %v1526, %v1628
        %v1671 = vadd.f32 %v1527, %v1629
        %v1672 = vadd.f32 %v1528, %v1630
        %v1673 = vadd.f32 %v1529, %v1631
        %v1674 = vadd.f32 %v1530, %v1632
        %v1675 = vadd.f32 %v1531, %v1633
        %v1676 = vadd.f32 %v1532, %v1634
        %v1677 = vadd.f32 %v1533, %v1635
        %v1678 = vadd.f32 %v1534, %v1636
        %v1679 = vld [vmem:[%s1453] sm:$0xfe]
        %v1680 = vld [vmem:[%s1453 + $0x8] sm:$0xfe]
        %v1681 = vld [vmem:[%s1453 + $0x10] sm:$0xfe]
        %v1682 = vld [vmem:[%s1453 + $0x30] sm:$0xfe]
        %v1683 = vld [vmem:[%s1453 + $0x38] sm:$0xfe]
        %v1684 = vld [vmem:[%s1453 + $0x40] sm:$0xfe]
        %v1685 = vld [vmem:[%s1453 + $0x60] sm:$0xfe]
        %v1686 = vld [vmem:[%s1453 + $0x68] sm:$0xfe]
        %v1687 = vld [vmem:[%s1453 + $0x70] sm:$0xfe]
        %v1688 = vld [vmem:[%s1453 + $0x90] sm:$0xfe]
        %v1689 = vld [vmem:[%s1453 + $0x98] sm:$0xfe]
        %v1690 = vld [vmem:[%s1453 + $0xa0] sm:$0xfe]
        %v1691 = vld [vmem:[%s1453 + $0xc0] sm:$0xfe]
        %v1692 = vld [vmem:[%s1453 + $0xc8] sm:$0xfe]
        %v1693 = vld [vmem:[%s1453 + $0xd0] sm:$0xfe]
        %v1694 = vld [vmem:[%s1453 + $0xf0] sm:$0xfe]
        %v1695 = vld [vmem:[%s1453 + $0xf8] sm:$0xfe]
        %v1696 = vld [vmem:[%s1453 + $0x100] sm:$0xfe]
        %v1697 = vld [vmem:[%s1453 + $0x120] sm:$0xfe]
        %v1698 = vld [vmem:[%s1453 + $0x128] sm:$0xfe]
        %v1699 = vld [vmem:[%s1453 + $0x130] sm:$0xfe]
        %s1700 = scalar_lea.vmem %s646, 24 [#allocation3]
        %v1701 = vld [vmem:[%s1700] ss:$8 sm:$0x7]
        %v1703 = vlaneseq
        %v1704 = vshrl.u32 %v1703, 7
        %v1705 = vsub.s32 0, %v1704
        %v1706 = vrot.slane %v1701, %v1705
        %v1707 = vlaneseq
        %v1708 = vshrl.u32 %v1707, 7
        %v1709 = vsub.s32 1, %v1708
        %v1710 = vrot.slane %v1701, %v1709
        %v1711 = vlaneseq
        %v1712 = vshrl.u32 %v1711, 7
        %v1713 = vsub.s32 2, %v1712
        %v1714 = vrot.slane %v1701, %v1713
        %v1718 = vmul.f32 %v1679, %v1706
        %v1719 = vmul.f32 %v1680, %v1710
        %v1720 = vmul.f32 %v1681, %v1714
        %v1721 = vmul.f32 %v1682, %v1706
        %v1722 = vmul.f32 %v1683, %v1710
        %v1723 = vmul.f32 %v1684, %v1714
        %v1724 = vmul.f32 %v1685, %v1706
        %v1725 = vmul.f32 %v1686, %v1710
        %v1726 = vmul.f32 %v1687, %v1714
        %v1727 = vmul.f32 %v1688, %v1706
        %v1728 = vmul.f32 %v1689, %v1710
        %v1729 = vmul.f32 %v1690, %v1714
        %v1730 = vmul.f32 %v1691, %v1706
        %v1731 = vmul.f32 %v1692, %v1710
        %v1732 = vmul.f32 %v1693, %v1714
        %v1733 = vmul.f32 %v1694, %v1706
        %v1734 = vmul.f32 %v1695, %v1710
        %v1735 = vmul.f32 %v1696, %v1714
        %v1736 = vmul.f32 %v1697, %v1706
        %v1737 = vmul.f32 %v1698, %v1710
        %v1738 = vmul.f32 %v1699, %v1714
        %v1760 = vrot.slane %v1718, 1
        %v1761 = vrot.slane %v1719, 1
        %v1762 = vrot.slane %v1720, 1
        %v1763 = vrot.slane %v1721, 1
        %v1764 = vrot.slane %v1722, 1
        %v1765 = vrot.slane %v1723, 1
        %v1766 = vrot.slane %v1724, 1
        %v1767 = vrot.slane %v1725, 1
        %v1768 = vrot.slane %v1726, 1
        %v1769 = vrot.slane %v1727, 1
        %v1770 = vrot.slane %v1728, 1
        %v1771 = vrot.slane %v1729, 1
        %v1772 = vrot.slane %v1730, 1
        %v1773 = vrot.slane %v1731, 1
        %v1774 = vrot.slane %v1732, 1
        %v1775 = vrot.slane %v1733, 1
        %v1776 = vrot.slane %v1734, 1
        %v1777 = vrot.slane %v1735, 1
        %v1778 = vrot.slane %v1736, 1
        %v1779 = vrot.slane %v1737, 1
        %v1780 = vrot.slane %v1738, 1
        %v1802 = vadd.f32 %v1658, %v1760
        %v1803 = vadd.f32 %v1659, %v1761
        %v1804 = vadd.f32 %v1660, %v1762
        %v1805 = vadd.f32 %v1661, %v1763
        %v1806 = vadd.f32 %v1662, %v1764
        %v1807 = vadd.f32 %v1663, %v1765
        %v1808 = vadd.f32 %v1664, %v1766
        %v1809 = vadd.f32 %v1665, %v1767
        %v1810 = vadd.f32 %v1666, %v1768
        %v1811 = vadd.f32 %v1667, %v1769
        %v1812 = vadd.f32 %v1668, %v1770
        %v1813 = vadd.f32 %v1669, %v1771
        %v1814 = vadd.f32 %v1670, %v1772
        %v1815 = vadd.f32 %v1671, %v1773
        %v1816 = vadd.f32 %v1672, %v1774
        %v1817 = vadd.f32 %v1673, %v1775
        %v1818 = vadd.f32 %v1674, %v1776
        %v1819 = vadd.f32 %v1675, %v1777
        %v1820 = vadd.f32 %v1676, %v1778
        %v1821 = vadd.f32 %v1677, %v1779
        %v1822 = vadd.f32 %v1678, %v1780
        %v1823 = vld [vmem:[%s1371] sm:$0xfc]
        %v1824 = vld [vmem:[%s1371 + $0x8] sm:$0xfc]
        %v1825 = vld [vmem:[%s1371 + $0x10] sm:$0xfc]
        %v1826 = vld [vmem:[%s1371 + $0x18] sm:$0x1]
        %v1827 = vld [vmem:[%s1371 + $0x20] sm:$0x1]
        %v1828 = vld [vmem:[%s1371 + $0x28] sm:$0x1]
        %v1829 = vld [vmem:[%s1371 + $0x30] sm:$0xfc]
        %v1830 = vld [vmem:[%s1371 + $0x38] sm:$0xfc]
        %v1831 = vld [vmem:[%s1371 + $0x40] sm:$0xfc]
        %v1832 = vld [vmem:[%s1371 + $0x48] sm:$0x1]
        %v1833 = vld [vmem:[%s1371 + $0x50] sm:$0x1]
        %v1834 = vld [vmem:[%s1371 + $0x58] sm:$0x1]
        %v1835 = vld [vmem:[%s1371 + $0x60] sm:$0xfc]
        %v1836 = vld [vmem:[%s1371 + $0x68] sm:$0xfc]
        %v1837 = vld [vmem:[%s1371 + $0x70] sm:$0xfc]
        %v1838 = vld [vmem:[%s1371 + $0x78] sm:$0x1]
        %v1839 = vld [vmem:[%s1371 + $0x80] sm:$0x1]
        %v1840 = vld [vmem:[%s1371 + $0x88] sm:$0x1]
        %v1841 = vld [vmem:[%s1371 + $0x90] sm:$0xfc]
        %v1842 = vld [vmem:[%s1371 + $0x98] sm:$0xfc]
        %v1843 = vld [vmem:[%s1371 + $0xa0] sm:$0xfc]
        %v1844 = vld [vmem:[%s1371 + $0xa8] sm:$0x1]
        %v1845 = vld [vmem:[%s1371 + $0xb0] sm:$0x1]
        %v1846 = vld [vmem:[%s1371 + $0xb8] sm:$0x1]
        %v1847 = vld [vmem:[%s1371 + $0xc0] sm:$0xfc]
        %v1848 = vld [vmem:[%s1371 + $0xc8] sm:$0xfc]
        %v1849 = vld [vmem:[%s1371 + $0xd0] sm:$0xfc]
        %v1850 = vld [vmem:[%s1371 + $0xd8] sm:$0x1]
        %v1851 = vld [vmem:[%s1371 + $0xe0] sm:$0x1]
        %v1852 = vld [vmem:[%s1371 + $0xe8] sm:$0x1]
        %v1853 = vld [vmem:[%s1371 + $0xf0] sm:$0xfc]
        %v1854 = vld [vmem:[%s1371 + $0xf8] sm:$0xfc]
        %v1855 = vld [vmem:[%s1371 + $0x100] sm:$0xfc]
        %v1856 = vld [vmem:[%s1371 + $0x108] sm:$0x1]
        %v1857 = vld [vmem:[%s1371 + $0x110] sm:$0x1]
        %v1858 = vld [vmem:[%s1371 + $0x118] sm:$0x1]
        %v1859 = vld [vmem:[%s1371 + $0x120] sm:$0xfc]
        %v1860 = vld [vmem:[%s1371 + $0x128] sm:$0xfc]
        %v1861 = vld [vmem:[%s1371 + $0x130] sm:$0xfc]
        %v1862 = vld [vmem:[%s1371 + $0x138] sm:$0x1]
        %v1863 = vld [vmem:[%s1371 + $0x140] sm:$0x1]
        %v1864 = vld [vmem:[%s1371 + $0x148] sm:$0x1]
        %s1865 = scalar_lea.vmem %s646, 25 [#allocation3]
        %v1866 = vld [vmem:[%s1865] ss:$8 sm:$0x7]
        %v1868 = vlaneseq
        %v1869 = vshrl.u32 %v1868, 7
        %v1870 = vsub.s32 0, %v1869
        %v1871 = vrot.slane %v1866, %v1870
        %v1872 = vlaneseq
        %v1873 = vshrl.u32 %v1872, 7
        %v1874 = vsub.s32 1, %v1873
        %v1875 = vrot.slane %v1866, %v1874
        %v1876 = vlaneseq
        %v1877 = vshrl.u32 %v1876, 7
        %v1878 = vsub.s32 2, %v1877
        %v1879 = vrot.slane %v1866, %v1878
        %v1883 = vmul.f32 %v1823, %v1871
        %v1884 = vmul.f32 %v1824, %v1875
        %v1885 = vmul.f32 %v1825, %v1879
        %v1886 = vmul.f32 %v1826, %v1871
        %v1887 = vmul.f32 %v1827, %v1875
        %v1888 = vmul.f32 %v1828, %v1879
        %v1889 = vmul.f32 %v1829, %v1871
        %v1890 = vmul.f32 %v1830, %v1875
        %v1891 = vmul.f32 %v1831, %v1879
        %v1892 = vmul.f32 %v1832, %v1871
        %v1893 = vmul.f32 %v1833, %v1875
        %v1894 = vmul.f32 %v1834, %v1879
        %v1895 = vmul.f32 %v1835, %v1871
        %v1896 = vmul.f32 %v1836, %v1875
        %v1897 = vmul.f32 %v1837, %v1879
        %v1898 = vmul.f32 %v1838, %v1871
        %v1899 = vmul.f32 %v1839, %v1875
        %v1900 = vmul.f32 %v1840, %v1879
        %v1901 = vmul.f32 %v1841, %v1871
        %v1902 = vmul.f32 %v1842, %v1875
        %v1903 = vmul.f32 %v1843, %v1879
        %v1904 = vmul.f32 %v1844, %v1871
        %v1905 = vmul.f32 %v1845, %v1875
        %v1906 = vmul.f32 %v1846, %v1879
        %v1907 = vmul.f32 %v1847, %v1871
        %v1908 = vmul.f32 %v1848, %v1875
        %v1909 = vmul.f32 %v1849, %v1879
        %v1910 = vmul.f32 %v1850, %v1871
        %v1911 = vmul.f32 %v1851, %v1875
        %v1912 = vmul.f32 %v1852, %v1879
        %v1913 = vmul.f32 %v1853, %v1871
        %v1914 = vmul.f32 %v1854, %v1875
        %v1915 = vmul.f32 %v1855, %v1879
        %v1916 = vmul.f32 %v1856, %v1871
        %v1917 = vmul.f32 %v1857, %v1875
        %v1918 = vmul.f32 %v1858, %v1879
        %v1919 = vmul.f32 %v1859, %v1871
        %v1920 = vmul.f32 %v1860, %v1875
        %v1921 = vmul.f32 %v1861, %v1879
        %v1922 = vmul.f32 %v1862, %v1871
        %v1923 = vmul.f32 %v1863, %v1875
        %v1924 = vmul.f32 %v1864, %v1879
        %v1967 = vrot.slane %v1883, 2
        %v1968 = vrot.slane %v1886, 2
        %v1969 = vsel %vm1265, %v1967, %v1968
        %v1970 = vrot.slane %v1884, 2
        %v1971 = vrot.slane %v1887, 2
        %v1972 = vsel %vm1265, %v1970, %v1971
        %v1973 = vrot.slane %v1885, 2
        %v1974 = vrot.slane %v1888, 2
        %v1975 = vsel %vm1265, %v1973, %v1974
        %v1976 = vrot.slane %v1889, 2
        %v1977 = vrot.slane %v1892, 2
        %v1978 = vsel %vm1265, %v1976, %v1977
        %v1979 = vrot.slane %v1890, 2
        %v1980 = vrot.slane %v1893, 2
        %v1981 = vsel %vm1265, %v1979, %v1980
        %v1982 = vrot.slane %v1891, 2
        %v1983 = vrot.slane %v1894, 2
        %v1984 = vsel %vm1265, %v1982, %v1983
        %v1985 = vrot.slane %v1895, 2
        %v1986 = vrot.slane %v1898, 2
        %v1987 = vsel %vm1265, %v1985, %v1986
        %v1988 = vrot.slane %v1896, 2
        %v1989 = vrot.slane %v1899, 2
        %v1990 = vsel %vm1265, %v1988, %v1989
        %v1991 = vrot.slane %v1897, 2
        %v1992 = vrot.slane %v1900, 2
        %v1993 = vsel %vm1265, %v1991, %v1992
        %v1994 = vrot.slane %v1901, 2
        %v1995 = vrot.slane %v1904, 2
        %v1996 = vsel %vm1265, %v1994, %v1995
        %v1997 = vrot.slane %v1902, 2
        %v1998 = vrot.slane %v1905, 2
        %v1999 = vsel %vm1265, %v1997, %v1998
        %v2000 = vrot.slane %v1903, 2
        %v2001 = vrot.slane %v1906, 2
        %v2002 = vsel %vm1265, %v2000, %v2001
        %v2003 = vrot.slane %v1907, 2
        %v2004 = vrot.slane %v1910, 2
        %v2005 = vsel %vm1265, %v2003, %v2004
        %v2006 = vrot.slane %v1908, 2
        %v2007 = vrot.slane %v1911, 2
        %v2008 = vsel %vm1265, %v2006, %v2007
        %v2009 = vrot.slane %v1909, 2
        %v2010 = vrot.slane %v1912, 2
        %v2011 = vsel %vm1265, %v2009, %v2010
        %v2012 = vrot.slane %v1913, 2
        %v2013 = vrot.slane %v1916, 2
        %v2014 = vsel %vm1265, %v2012, %v2013
        %v2015 = vrot.slane %v1914, 2
        %v2016 = vrot.slane %v1917, 2
        %v2017 = vsel %vm1265, %v2015, %v2016
        %v2018 = vrot.slane %v1915, 2
        %v2019 = vrot.slane %v1918, 2
        %v2020 = vsel %vm1265, %v2018, %v2019
        %v2021 = vrot.slane %v1919, 2
        %v2022 = vrot.slane %v1922, 2
        %v2023 = vsel %vm1265, %v2021, %v2022
        %v2024 = vrot.slane %v1920, 2
        %v2025 = vrot.slane %v1923, 2
        %v2026 = vsel %vm1265, %v2024, %v2025
        %v2027 = vrot.slane %v1921, 2
        %v2028 = vrot.slane %v1924, 2
        %v2029 = vsel %vm1265, %v2027, %v2028
        %v2051 = vadd.f32 %v1802, %v1969
        %v2052 = vadd.f32 %v1803, %v1972
        %v2053 = vadd.f32 %v1804, %v1975
        %v2054 = vadd.f32 %v1805, %v1978
        %v2055 = vadd.f32 %v1806, %v1981
        %v2056 = vadd.f32 %v1807, %v1984
        %v2057 = vadd.f32 %v1808, %v1987
        %v2058 = vadd.f32 %v1809, %v1990
        %v2059 = vadd.f32 %v1810, %v1993
        %v2060 = vadd.f32 %v1811, %v1996
        %v2061 = vadd.f32 %v1812, %v1999
        %v2062 = vadd.f32 %v1813, %v2002
        %v2063 = vadd.f32 %v1814, %v2005
        %v2064 = vadd.f32 %v1815, %v2008
        %v2065 = vadd.f32 %v1816, %v2011
        %v2066 = vadd.f32 %v1817, %v2014
        %v2067 = vadd.f32 %v1818, %v2017
        %v2068 = vadd.f32 %v1819, %v2020
        %v2069 = vadd.f32 %v1820, %v2023
        %v2070 = vadd.f32 %v1821, %v2026
        %v2071 = vadd.f32 %v1822, %v2029
        %s2072 = scalar_lea.vmem %s639, 48 [#allocation2]
        %v2073 = vld [vmem:[%s2072] sm:$0x7f]
        %v2074 = vld [vmem:[%s2072 + $0x8] sm:$0x7f]
        %v2075 = vld [vmem:[%s2072 + $0x10] sm:$0x7f]
        %v2076 = vld [vmem:[%s2072 + $0x30] sm:$0x7f]
        %v2077 = vld [vmem:[%s2072 + $0x38] sm:$0x7f]
        %v2078 = vld [vmem:[%s2072 + $0x40] sm:$0x7f]
        %v2079 = vld [vmem:[%s2072 + $0x60] sm:$0x7f]
        %v2080 = vld [vmem:[%s2072 + $0x68] sm:$0x7f]
        %v2081 = vld [vmem:[%s2072 + $0x70] sm:$0x7f]
        %v2082 = vld [vmem:[%s2072 + $0x90] sm:$0x7f]
        %v2083 = vld [vmem:[%s2072 + $0x98] sm:$0x7f]
        %v2084 = vld [vmem:[%s2072 + $0xa0] sm:$0x7f]
        %v2085 = vld [vmem:[%s2072 + $0xc0] sm:$0x7f]
        %v2086 = vld [vmem:[%s2072 + $0xc8] sm:$0x7f]
        %v2087 = vld [vmem:[%s2072 + $0xd0] sm:$0x7f]
        %v2088 = vld [vmem:[%s2072 + $0xf0] sm:$0x7f]
        %v2089 = vld [vmem:[%s2072 + $0xf8] sm:$0x7f]
        %v2090 = vld [vmem:[%s2072 + $0x100] sm:$0x7f]
        %v2091 = vld [vmem:[%s2072 + $0x120] sm:$0x7f]
        %v2092 = vld [vmem:[%s2072 + $0x128] sm:$0x7f]
        %v2093 = vld [vmem:[%s2072 + $0x130] sm:$0x7f]
        %s2094 = scalar_lea.vmem %s646, 26 [#allocation3]
        %v2095 = vld [vmem:[%s2094] ss:$8 sm:$0x7]
        %v2097 = vlaneseq
        %v2098 = vshrl.u32 %v2097, 7
        %v2099 = vsub.s32 0, %v2098
        %v2100 = vrot.slane %v2095, %v2099
        %v2101 = vlaneseq
        %v2102 = vshrl.u32 %v2101, 7
        %v2103 = vsub.s32 1, %v2102
        %v2104 = vrot.slane %v2095, %v2103
        %v2105 = vlaneseq
        %v2106 = vshrl.u32 %v2105, 7
        %v2107 = vsub.s32 2, %v2106
        %v2108 = vrot.slane %v2095, %v2107
        %v2112 = vmul.f32 %v2073, %v2100
        %v2113 = vmul.f32 %v2074, %v2104
        %v2114 = vmul.f32 %v2075, %v2108
        %v2115 = vmul.f32 %v2076, %v2100
        %v2116 = vmul.f32 %v2077, %v2104
        %v2117 = vmul.f32 %v2078, %v2108
        %v2118 = vmul.f32 %v2079, %v2100
        %v2119 = vmul.f32 %v2080, %v2104
        %v2120 = vmul.f32 %v2081, %v2108
        %v2121 = vmul.f32 %v2082, %v2100
        %v2122 = vmul.f32 %v2083, %v2104
        %v2123 = vmul.f32 %v2084, %v2108
        %v2124 = vmul.f32 %v2085, %v2100
        %v2125 = vmul.f32 %v2086, %v2104
        %v2126 = vmul.f32 %v2087, %v2108
        %v2127 = vmul.f32 %v2088, %v2100
        %v2128 = vmul.f32 %v2089, %v2104
        %v2129 = vmul.f32 %v2090, %v2108
        %v2130 = vmul.f32 %v2091, %v2100
        %v2131 = vmul.f32 %v2092, %v2104
        %v2132 = vmul.f32 %v2093, %v2108
        %v2133 = vadd.f32 %v2051, %v2112
        %v2134 = vadd.f32 %v2052, %v2113
        %v2135 = vadd.f32 %v2053, %v2114
        %v2136 = vadd.f32 %v2054, %v2115
        %v2137 = vadd.f32 %v2055, %v2116
        %v2138 = vadd.f32 %v2056, %v2117
        %v2139 = vadd.f32 %v2057, %v2118
        %v2140 = vadd.f32 %v2058, %v2119
        %v2141 = vadd.f32 %v2059, %v2120
        %v2142 = vadd.f32 %v2060, %v2121
        %v2143 = vadd.f32 %v2061, %v2122
        %v2144 = vadd.f32 %v2062, %v2123
        %v2145 = vadd.f32 %v2063, %v2124
        %v2146 = vadd.f32 %v2064, %v2125
        %v2147 = vadd.f32 %v2065, %v2126
        %v2148 = vadd.f32 %v2066, %v2127
        %v2149 = vadd.f32 %v2067, %v2128
        %v2150 = vadd.f32 %v2068, %v2129
        %v2151 = vadd.f32 %v2069, %v2130
        %v2152 = vadd.f32 %v2070, %v2131
        %v2153 = vadd.f32 %v2071, %v2132
        %s2154 = scalar_lea.vmem %s639, 480 [#allocation2]
        %v2155 = vld [vmem:[%s2154] sm:$0x7f]
        %v2156 = vld [vmem:[%s2154 + $0x8] sm:$0x7f]
        %v2157 = vld [vmem:[%s2154 + $0x10] sm:$0x7f]
        %v2158 = vld [vmem:[%s2154 + $0x30] sm:$0x7f]
        %v2159 = vld [vmem:[%s2154 + $0x38] sm:$0x7f]
        %v2160 = vld [vmem:[%s2154 + $0x40] sm:$0x7f]
        %v2161 = vld [vmem:[%s2154 + $0x60] sm:$0x7f]
        %v2162 = vld [vmem:[%s2154 + $0x68] sm:$0x7f]
        %v2163 = vld [vmem:[%s2154 + $0x70] sm:$0x7f]
        %v2164 = vld [vmem:[%s2154 + $0x90] sm:$0x7f]
        %v2165 = vld [vmem:[%s2154 + $0x98] sm:$0x7f]
        %v2166 = vld [vmem:[%s2154 + $0xa0] sm:$0x7f]
        %v2167 = vld [vmem:[%s2154 + $0xc0] sm:$0x7f]
        %v2168 = vld [vmem:[%s2154 + $0xc8] sm:$0x7f]
        %v2169 = vld [vmem:[%s2154 + $0xd0] sm:$0x7f]
        %v2170 = vld [vmem:[%s2154 + $0xf0] sm:$0x7f]
        %v2171 = vld [vmem:[%s2154 + $0xf8] sm:$0x7f]
        %v2172 = vld [vmem:[%s2154 + $0x100] sm:$0x7f]
        %v2173 = vld [vmem:[%s2154 + $0x120] sm:$0x7f]
        %v2174 = vld [vmem:[%s2154 + $0x128] sm:$0x7f]
        %v2175 = vld [vmem:[%s2154 + $0x130] sm:$0x7f]
        %s2176 = scalar_lea.vmem %s646, 27 [#allocation3]
        %v2177 = vld [vmem:[%s2176] ss:$8 sm:$0x7]
        %v2179 = vlaneseq
        %v2180 = vshrl.u32 %v2179, 7
        %v2181 = vsub.s32 0, %v2180
        %v2182 = vrot.slane %v2177, %v2181
        %v2183 = vlaneseq
        %v2184 = vshrl.u32 %v2183, 7
        %v2185 = vsub.s32 1, %v2184
        %v2186 = vrot.slane %v2177, %v2185
        %v2187 = vlaneseq
        %v2188 = vshrl.u32 %v2187, 7
        %v2189 = vsub.s32 2, %v2188
        %v2190 = vrot.slane %v2177, %v2189
        %v2194 = vmul.f32 %v2155, %v2182
        %v2195 = vmul.f32 %v2156, %v2186
        %v2196 = vmul.f32 %v2157, %v2190
        %v2197 = vmul.f32 %v2158, %v2182
        %v2198 = vmul.f32 %v2159, %v2186
        %v2199 = vmul.f32 %v2160, %v2190
        %v2200 = vmul.f32 %v2161, %v2182
        %v2201 = vmul.f32 %v2162, %v2186
        %v2202 = vmul.f32 %v2163, %v2190
        %v2203 = vmul.f32 %v2164, %v2182
        %v2204 = vmul.f32 %v2165, %v2186
        %v2205 = vmul.f32 %v2166, %v2190
        %v2206 = vmul.f32 %v2167, %v2182
        %v2207 = vmul.f32 %v2168, %v2186
        %v2208 = vmul.f32 %v2169, %v2190
        %v2209 = vmul.f32 %v2170, %v2182
        %v2210 = vmul.f32 %v2171, %v2186
        %v2211 = vmul.f32 %v2172, %v2190
        %v2212 = vmul.f32 %v2173, %v2182
        %v2213 = vmul.f32 %v2174, %v2186
        %v2214 = vmul.f32 %v2175, %v2190
        %v2215 = vadd.f32 %v2133, %v2194
        %v2216 = vadd.f32 %v2134, %v2195
        %v2217 = vadd.f32 %v2135, %v2196
        %v2218 = vadd.f32 %v2136, %v2197
        %v2219 = vadd.f32 %v2137, %v2198
        %v2220 = vadd.f32 %v2138, %v2199
        %v2221 = vadd.f32 %v2139, %v2200
        %v2222 = vadd.f32 %v2140, %v2201
        %v2223 = vadd.f32 %v2141, %v2202
        %v2224 = vadd.f32 %v2142, %v2203
        %v2225 = vadd.f32 %v2143, %v2204
        %v2226 = vadd.f32 %v2144, %v2205
        %v2227 = vadd.f32 %v2145, %v2206
        %v2228 = vadd.f32 %v2146, %v2207
        %v2229 = vadd.f32 %v2147, %v2208
        %v2230 = vadd.f32 %v2148, %v2209
        %v2231 = vadd.f32 %v2149, %v2210
        %v2232 = vadd.f32 %v2150, %v2211
        %v2233 = vadd.f32 %v2151, %v2212
        %v2234 = vadd.f32 %v2152, %v2213
        %v2235 = vadd.f32 %v2153, %v2214
        %v2236 = vld [vmem:[%s2072] sm:$0xfe]
        %v2237 = vld [vmem:[%s2072 + $0x8] sm:$0xfe]
        %v2238 = vld [vmem:[%s2072 + $0x10] sm:$0xfe]
        %v2239 = vld [vmem:[%s2072 + $0x30] sm:$0xfe]
        %v2240 = vld [vmem:[%s2072 + $0x38] sm:$0xfe]
        %v2241 = vld [vmem:[%s2072 + $0x40] sm:$0xfe]
        %v2242 = vld [vmem:[%s2072 + $0x60] sm:$0xfe]
        %v2243 = vld [vmem:[%s2072 + $0x68] sm:$0xfe]
        %v2244 = vld [vmem:[%s2072 + $0x70] sm:$0xfe]
        %v2245 = vld [vmem:[%s2072 + $0x90] sm:$0xfe]
        %v2246 = vld [vmem:[%s2072 + $0x98] sm:$0xfe]
        %v2247 = vld [vmem:[%s2072 + $0xa0] sm:$0xfe]
        %v2248 = vld [vmem:[%s2072 + $0xc0] sm:$0xfe]
        %v2249 = vld [vmem:[%s2072 + $0xc8] sm:$0xfe]
        %v2250 = vld [vmem:[%s2072 + $0xd0] sm:$0xfe]
        %v2251 = vld [vmem:[%s2072 + $0xf0] sm:$0xfe]
        %v2252 = vld [vmem:[%s2072 + $0xf8] sm:$0xfe]
        %v2253 = vld [vmem:[%s2072 + $0x100] sm:$0xfe]
        %v2254 = vld [vmem:[%s2072 + $0x120] sm:$0xfe]
        %v2255 = vld [vmem:[%s2072 + $0x128] sm:$0xfe]
        %v2256 = vld [vmem:[%s2072 + $0x130] sm:$0xfe]
        %s2257 = scalar_lea.vmem %s646, 28 [#allocation3]
        %v2258 = vld [vmem:[%s2257] ss:$8 sm:$0x7]
        %v2260 = vlaneseq
        %v2261 = vshrl.u32 %v2260, 7
        %v2262 = vsub.s32 0, %v2261
        %v2263 = vrot.slane %v2258, %v2262
        %v2264 = vlaneseq
        %v2265 = vshrl.u32 %v2264, 7
        %v2266 = vsub.s32 1, %v2265
        %v2267 = vrot.slane %v2258, %v2266
        %v2268 = vlaneseq
        %v2269 = vshrl.u32 %v2268, 7
        %v2270 = vsub.s32 2, %v2269
        %v2271 = vrot.slane %v2258, %v2270
        %v2275 = vmul.f32 %v2236, %v2263
        %v2276 = vmul.f32 %v2237, %v2267
        %v2277 = vmul.f32 %v2238, %v2271
        %v2278 = vmul.f32 %v2239, %v2263
        %v2279 = vmul.f32 %v2240, %v2267
        %v2280 = vmul.f32 %v2241, %v2271
        %v2281 = vmul.f32 %v2242, %v2263
        %v2282 = vmul.f32 %v2243, %v2267
        %v2283 = vmul.f32 %v2244, %v2271
        %v2284 = vmul.f32 %v2245, %v2263
        %v2285 = vmul.f32 %v2246, %v2267
        %v2286 = vmul.f32 %v2247, %v2271
        %v2287 = vmul.f32 %v2248, %v2263
        %v2288 = vmul.f32 %v2249, %v2267
        %v2289 = vmul.f32 %v2250, %v2271
        %v2290 = vmul.f32 %v2251, %v2263
        %v2291 = vmul.f32 %v2252, %v2267
        %v2292 = vmul.f32 %v2253, %v2271
        %v2293 = vmul.f32 %v2254, %v2263
        %v2294 = vmul.f32 %v2255, %v2267
        %v2295 = vmul.f32 %v2256, %v2271
        %v2317 = vrot.slane %v2275, 1
        %v2318 = vrot.slane %v2276, 1
        %v2319 = vrot.slane %v2277, 1
        %v2320 = vrot.slane %v2278, 1
        %v2321 = vrot.slane %v2279, 1
        %v2322 = vrot.slane %v2280, 1
        %v2323 = vrot.slane %v2281, 1
        %v2324 = vrot.slane %v2282, 1
        %v2325 = vrot.slane %v2283, 1
        %v2326 = vrot.slane %v2284, 1
        %v2327 = vrot.slane %v2285, 1
        %v2328 = vrot.slane %v2286, 1
        %v2329 = vrot.slane %v2287, 1
        %v2330 = vrot.slane %v2288, 1
        %v2331 = vrot.slane %v2289, 1
        %v2332 = vrot.slane %v2290, 1
        %v2333 = vrot.slane %v2291, 1
        %v2334 = vrot.slane %v2292, 1
        %v2335 = vrot.slane %v2293, 1
        %v2336 = vrot.slane %v2294, 1
        %v2337 = vrot.slane %v2295, 1
        %v2359 = vadd.f32 %v2215, %v2317
        %v2360 = vadd.f32 %v2216, %v2318
        %v2361 = vadd.f32 %v2217, %v2319
        %v2362 = vadd.f32 %v2218, %v2320
        %v2363 = vadd.f32 %v2219, %v2321
        %v2364 = vadd.f32 %v2220, %v2322
        %v2365 = vadd.f32 %v2221, %v2323
        %v2366 = vadd.f32 %v2222, %v2324
        %v2367 = vadd.f32 %v2223, %v2325
        %v2368 = vadd.f32 %v2224, %v2326
        %v2369 = vadd.f32 %v2225, %v2327
        %v2370 = vadd.f32 %v2226, %v2328
        %v2371 = vadd.f32 %v2227, %v2329
        %v2372 = vadd.f32 %v2228, %v2330
        %v2373 = vadd.f32 %v2229, %v2331
        %v2374 = vadd.f32 %v2230, %v2332
        %v2375 = vadd.f32 %v2231, %v2333
        %v2376 = vadd.f32 %v2232, %v2334
        %v2377 = vadd.f32 %v2233, %v2335
        %v2378 = vadd.f32 %v2234, %v2336
        %v2379 = vadd.f32 %v2235, %v2337
        %v2380 = vld [vmem:[%s2154] sm:$0xfe]
        %v2381 = vld [vmem:[%s2154 + $0x8] sm:$0xfe]
        %v2382 = vld [vmem:[%s2154 + $0x10] sm:$0xfe]
        %v2383 = vld [vmem:[%s2154 + $0x30] sm:$0xfe]
        %v2384 = vld [vmem:[%s2154 + $0x38] sm:$0xfe]
        %v2385 = vld [vmem:[%s2154 + $0x40] sm:$0xfe]
        %v2386 = vld [vmem:[%s2154 + $0x60] sm:$0xfe]
        %v2387 = vld [vmem:[%s2154 + $0x68] sm:$0xfe]
        %v2388 = vld [vmem:[%s2154 + $0x70] sm:$0xfe]
        %v2389 = vld [vmem:[%s2154 + $0x90] sm:$0xfe]
        %v2390 = vld [vmem:[%s2154 + $0x98] sm:$0xfe]
        %v2391 = vld [vmem:[%s2154 + $0xa0] sm:$0xfe]
        %v2392 = vld [vmem:[%s2154 + $0xc0] sm:$0xfe]
        %v2393 = vld [vmem:[%s2154 + $0xc8] sm:$0xfe]
        %v2394 = vld [vmem:[%s2154 + $0xd0] sm:$0xfe]
        %v2395 = vld [vmem:[%s2154 + $0xf0] sm:$0xfe]
        %v2396 = vld [vmem:[%s2154 + $0xf8] sm:$0xfe]
        %v2397 = vld [vmem:[%s2154 + $0x100] sm:$0xfe]
        %v2398 = vld [vmem:[%s2154 + $0x120] sm:$0xfe]
        %v2399 = vld [vmem:[%s2154 + $0x128] sm:$0xfe]
        %v2400 = vld [vmem:[%s2154 + $0x130] sm:$0xfe]
        %s2401 = scalar_lea.vmem %s646, 29 [#allocation3]
        %v2402 = vld [vmem:[%s2401] ss:$8 sm:$0x7]
        %v2404 = vlaneseq
        %v2405 = vshrl.u32 %v2404, 7
        %v2406 = vsub.s32 0, %v2405
        %v2407 = vrot.slane %v2402, %v2406
        %v2408 = vlaneseq
        %v2409 = vshrl.u32 %v2408, 7
        %v2410 = vsub.s32 1, %v2409
        %v2411 = vrot.slane %v2402, %v2410
        %v2412 = vlaneseq
        %v2413 = vshrl.u32 %v2412, 7
        %v2414 = vsub.s32 2, %v2413
        %v2415 = vrot.slane %v2402, %v2414
        %v2419 = vmul.f32 %v2380, %v2407
        %v2420 = vmul.f32 %v2381, %v2411
        %v2421 = vmul.f32 %v2382, %v2415
        %v2422 = vmul.f32 %v2383, %v2407
        %v2423 = vmul.f32 %v2384, %v2411
        %v2424 = vmul.f32 %v2385, %v2415
        %v2425 = vmul.f32 %v2386, %v2407
        %v2426 = vmul.f32 %v2387, %v2411
        %v2427 = vmul.f32 %v2388, %v2415
        %v2428 = vmul.f32 %v2389, %v2407
        %v2429 = vmul.f32 %v2390, %v2411
        %v2430 = vmul.f32 %v2391, %v2415
        %v2431 = vmul.f32 %v2392, %v2407
        %v2432 = vmul.f32 %v2393, %v2411
        %v2433 = vmul.f32 %v2394, %v2415
        %v2434 = vmul.f32 %v2395, %v2407
        %v2435 = vmul.f32 %v2396, %v2411
        %v2436 = vmul.f32 %v2397, %v2415
        %v2437 = vmul.f32 %v2398, %v2407
        %v2438 = vmul.f32 %v2399, %v2411
        %v2439 = vmul.f32 %v2400, %v2415
        %v2461 = vrot.slane %v2419, 1
        %v2462 = vrot.slane %v2420, 1
        %v2463 = vrot.slane %v2421, 1
        %v2464 = vrot.slane %v2422, 1
        %v2465 = vrot.slane %v2423, 1
        %v2466 = vrot.slane %v2424, 1
        %v2467 = vrot.slane %v2425, 1
        %v2468 = vrot.slane %v2426, 1
        %v2469 = vrot.slane %v2427, 1
        %v2470 = vrot.slane %v2428, 1
        %v2471 = vrot.slane %v2429, 1
        %v2472 = vrot.slane %v2430, 1
        %v2473 = vrot.slane %v2431, 1
        %v2474 = vrot.slane %v2432, 1
        %v2475 = vrot.slane %v2433, 1
        %v2476 = vrot.slane %v2434, 1
        %v2477 = vrot.slane %v2435, 1
        %v2478 = vrot.slane %v2436, 1
        %v2479 = vrot.slane %v2437, 1
        %v2480 = vrot.slane %v2438, 1
        %v2481 = vrot.slane %v2439, 1
        %v2503 = vadd.f32 %v2359, %v2461
        %v2504 = vadd.f32 %v2360, %v2462
        %v2505 = vadd.f32 %v2361, %v2463
        %v2506 = vadd.f32 %v2362, %v2464
        %v2507 = vadd.f32 %v2363, %v2465
        %v2508 = vadd.f32 %v2364, %v2466
        %v2509 = vadd.f32 %v2365, %v2467
        %v2510 = vadd.f32 %v2366, %v2468
        %v2511 = vadd.f32 %v2367, %v2469
        %v2512 = vadd.f32 %v2368, %v2470
        %v2513 = vadd.f32 %v2369, %v2471
        %v2514 = vadd.f32 %v2370, %v2472
        %v2515 = vadd.f32 %v2371, %v2473
        %v2516 = vadd.f32 %v2372, %v2474
        %v2517 = vadd.f32 %v2373, %v2475
        %v2518 = vadd.f32 %v2374, %v2476
        %v2519 = vadd.f32 %v2375, %v2477
        %v2520 = vadd.f32 %v2376, %v2478
        %v2521 = vadd.f32 %v2377, %v2479
        %v2522 = vadd.f32 %v2378, %v2480
        %v2523 = vadd.f32 %v2379, %v2481
        %v2524 = vld [vmem:[%s2072] sm:$0xfc]
        %v2525 = vld [vmem:[%s2072 + $0x8] sm:$0xfc]
        %v2526 = vld [vmem:[%s2072 + $0x10] sm:$0xfc]
        %v2527 = vld [vmem:[%s2072 + $0x18] sm:$0x1]
        %v2528 = vld [vmem:[%s2072 + $0x20] sm:$0x1]
        %v2529 = vld [vmem:[%s2072 + $0x28] sm:$0x1]
        %v2530 = vld [vmem:[%s2072 + $0x30] sm:$0xfc]
        %v2531 = vld [vmem:[%s2072 + $0x38] sm:$0xfc]
        %v2532 = vld [vmem:[%s2072 + $0x40] sm:$0xfc]
        %v2533 = vld [vmem:[%s2072 + $0x48] sm:$0x1]
        %v2534 = vld [vmem:[%s2072 + $0x50] sm:$0x1]
        %v2535 = vld [vmem:[%s2072 + $0x58] sm:$0x1]
        %v2536 = vld [vmem:[%s2072 + $0x60] sm:$0xfc]
        %v2537 = vld [vmem:[%s2072 + $0x68] sm:$0xfc]
        %v2538 = vld [vmem:[%s2072 + $0x70] sm:$0xfc]
        %v2539 = vld [vmem:[%s2072 + $0x78] sm:$0x1]
        %v2540 = vld [vmem:[%s2072 + $0x80] sm:$0x1]
        %v2541 = vld [vmem:[%s2072 + $0x88] sm:$0x1]
        %v2542 = vld [vmem:[%s2072 + $0x90] sm:$0xfc]
        %v2543 = vld [vmem:[%s2072 + $0x98] sm:$0xfc]
        %v2544 = vld [vmem:[%s2072 + $0xa0] sm:$0xfc]
        %v2545 = vld [vmem:[%s2072 + $0xa8] sm:$0x1]
        %v2546 = vld [vmem:[%s2072 + $0xb0] sm:$0x1]
        %v2547 = vld [vmem:[%s2072 + $0xb8] sm:$0x1]
        %v2548 = vld [vmem:[%s2072 + $0xc0] sm:$0xfc]
        %v2549 = vld [vmem:[%s2072 + $0xc8] sm:$0xfc]
        %v2550 = vld [vmem:[%s2072 + $0xd0] sm:$0xfc]
        %v2551 = vld [vmem:[%s2072 + $0xd8] sm:$0x1]
        %v2552 = vld [vmem:[%s2072 + $0xe0] sm:$0x1]
        %v2553 = vld [vmem:[%s2072 + $0xe8] sm:$0x1]
        %v2554 = vld [vmem:[%s2072 + $0xf0] sm:$0xfc]
        %v2555 = vld [vmem:[%s2072 + $0xf8] sm:$0xfc]
        %v2556 = vld [vmem:[%s2072 + $0x100] sm:$0xfc]
        %v2557 = vld [vmem:[%s2072 + $0x108] sm:$0x1]
        %v2558 = vld [vmem:[%s2072 + $0x110] sm:$0x1]
        %v2559 = vld [vmem:[%s2072 + $0x118] sm:$0x1]
        %v2560 = vld [vmem:[%s2072 + $0x120] sm:$0xfc]
        %v2561 = vld [vmem:[%s2072 + $0x128] sm:$0xfc]
        %v2562 = vld [vmem:[%s2072 + $0x130] sm:$0xfc]
        %v2563 = vld [vmem:[%s2072 + $0x138] sm:$0x1]
        %v2564 = vld [vmem:[%s2072 + $0x140] sm:$0x1]
        %v2565 = vld [vmem:[%s2072 + $0x148] sm:$0x1]
        %s2566 = scalar_lea.vmem %s646, 30 [#allocation3]
        %v2567 = vld [vmem:[%s2566] ss:$8 sm:$0x7]
        %v2569 = vlaneseq
        %v2570 = vshrl.u32 %v2569, 7
        %v2571 = vsub.s32 0, %v2570
        %v2572 = vrot.slane %v2567, %v2571
        %v2573 = vlaneseq
        %v2574 = vshrl.u32 %v2573, 7
        %v2575 = vsub.s32 1, %v2574
        %v2576 = vrot.slane %v2567, %v2575
        %v2577 = vlaneseq
        %v2578 = vshrl.u32 %v2577, 7
        %v2579 = vsub.s32 2, %v2578
        %v2580 = vrot.slane %v2567, %v2579
        %v2584 = vmul.f32 %v2524, %v2572
        %v2585 = vmul.f32 %v2525, %v2576
        %v2586 = vmul.f32 %v2526, %v2580
        %v2587 = vmul.f32 %v2527, %v2572
        %v2588 = vmul.f32 %v2528, %v2576
        %v2589 = vmul.f32 %v2529, %v2580
        %v2590 = vmul.f32 %v2530, %v2572
        %v2591 = vmul.f32 %v2531, %v2576
        %v2592 = vmul.f32 %v2532, %v2580
        %v2593 = vmul.f32 %v2533, %v2572
        %v2594 = vmul.f32 %v2534, %v2576
        %v2595 = vmul.f32 %v2535, %v2580
        %v2596 = vmul.f32 %v2536, %v2572
        %v2597 = vmul.f32 %v2537, %v2576
        %v2598 = vmul.f32 %v2538, %v2580
        %v2599 = vmul.f32 %v2539, %v2572
        %v2600 = vmul.f32 %v2540, %v2576
        %v2601 = vmul.f32 %v2541, %v2580
        %v2602 = vmul.f32 %v2542, %v2572
        %v2603 = vmul.f32 %v2543, %v2576
        %v2604 = vmul.f32 %v2544, %v2580
        %v2605 = vmul.f32 %v2545, %v2572
        %v2606 = vmul.f32 %v2546, %v2576
        %v2607 = vmul.f32 %v2547, %v2580
        %v2608 = vmul.f32 %v2548, %v2572
        %v2609 = vmul.f32 %v2549, %v2576
        %v2610 = vmul.f32 %v2550, %v2580
        %v2611 = vmul.f32 %v2551, %v2572
        %v2612 = vmul.f32 %v2552, %v2576
        %v2613 = vmul.f32 %v2553, %v2580
        %v2614 = vmul.f32 %v2554, %v2572
        %v2615 = vmul.f32 %v2555, %v2576
        %v2616 = vmul.f32 %v2556, %v2580
        %v2617 = vmul.f32 %v2557, %v2572
        %v2618 = vmul.f32 %v2558, %v2576
        %v2619 = vmul.f32 %v2559, %v2580
        %v2620 = vmul.f32 %v2560, %v2572
        %v2621 = vmul.f32 %v2561, %v2576
        %v2622 = vmul.f32 %v2562, %v2580
        %v2623 = vmul.f32 %v2563, %v2572
        %v2624 = vmul.f32 %v2564, %v2576
        %v2625 = vmul.f32 %v2565, %v2580
        %v2668 = vrot.slane %v2584, 2
        %v2669 = vrot.slane %v2587, 2
        %v2670 = vsel %vm1265, %v2668, %v2669
        %v2671 = vrot.slane %v2585, 2
        %v2672 = vrot.slane %v2588, 2
        %v2673 = vsel %vm1265, %v2671, %v2672
        %v2674 = vrot.slane %v2586, 2
        %v2675 = vrot.slane %v2589, 2
        %v2676 = vsel %vm1265, %v2674, %v2675
        %v2677 = vrot.slane %v2590, 2
        %v2678 = vrot.slane %v2593, 2
        %v2679 = vsel %vm1265, %v2677, %v2678
        %v2680 = vrot.slane %v2591, 2
        %v2681 = vrot.slane %v2594, 2
        %v2682 = vsel %vm1265, %v2680, %v2681
        %v2683 = vrot.slane %v2592, 2
        %v2684 = vrot.slane %v2595, 2
        %v2685 = vsel %vm1265, %v2683, %v2684
        %v2686 = vrot.slane %v2596, 2
        %v2687 = vrot.slane %v2599, 2
        %v2688 = vsel %vm1265, %v2686, %v2687
        %v2689 = vrot.slane %v2597, 2
        %v2690 = vrot.slane %v2600, 2
        %v2691 = vsel %vm1265, %v2689, %v2690
        %v2692 = vrot.slane %v2598, 2
        %v2693 = vrot.slane %v2601, 2
        %v2694 = vsel %vm1265, %v2692, %v2693
        %v2695 = vrot.slane %v2602, 2
        %v2696 = vrot.slane %v2605, 2
        %v2697 = vsel %vm1265, %v2695, %v2696
        %v2698 = vrot.slane %v2603, 2
        %v2699 = vrot.slane %v2606, 2
        %v2700 = vsel %vm1265, %v2698, %v2699
        %v2701 = vrot.slane %v2604, 2
        %v2702 = vrot.slane %v2607, 2
        %v2703 = vsel %vm1265, %v2701, %v2702
        %v2704 = vrot.slane %v2608, 2
        %v2705 = vrot.slane %v2611, 2
        %v2706 = vsel %vm1265, %v2704, %v2705
        %v2707 = vrot.slane %v2609, 2
        %v2708 = vrot.slane %v2612, 2
        %v2709 = vsel %vm1265, %v2707, %v2708
        %v2710 = vrot.slane %v2610, 2
        %v2711 = vrot.slane %v2613, 2
        %v2712 = vsel %vm1265, %v2710, %v2711
        %v2713 = vrot.slane %v2614, 2
        %v2714 = vrot.slane %v2617, 2
        %v2715 = vsel %vm1265, %v2713, %v2714
        %v2716 = vrot.slane %v2615, 2
        %v2717 = vrot.slane %v2618, 2
        %v2718 = vsel %vm1265, %v2716, %v2717
        %v2719 = vrot.slane %v2616, 2
        %v2720 = vrot.slane %v2619, 2
        %v2721 = vsel %vm1265, %v2719, %v2720
        %v2722 = vrot.slane %v2620, 2
        %v2723 = vrot.slane %v2623, 2
        %v2724 = vsel %vm1265, %v2722, %v2723
        %v2725 = vrot.slane %v2621, 2
        %v2726 = vrot.slane %v2624, 2
        %v2727 = vsel %vm1265, %v2725, %v2726
        %v2728 = vrot.slane %v2622, 2
        %v2729 = vrot.slane %v2625, 2
        %v2730 = vsel %vm1265, %v2728, %v2729
        %v2752 = vadd.f32 %v2503, %v2670
        %v2753 = vadd.f32 %v2504, %v2673
        %v2754 = vadd.f32 %v2505, %v2676
        %v2755 = vadd.f32 %v2506, %v2679
        %v2756 = vadd.f32 %v2507, %v2682
        %v2757 = vadd.f32 %v2508, %v2685
        %v2758 = vadd.f32 %v2509, %v2688
        %v2759 = vadd.f32 %v2510, %v2691
        %v2760 = vadd.f32 %v2511, %v2694
        %v2761 = vadd.f32 %v2512, %v2697
        %v2762 = vadd.f32 %v2513, %v2700
        %v2763 = vadd.f32 %v2514, %v2703
        %v2764 = vadd.f32 %v2515, %v2706
        %v2765 = vadd.f32 %v2516, %v2709
        %v2766 = vadd.f32 %v2517, %v2712
        %v2767 = vadd.f32 %v2518, %v2715
        %v2768 = vadd.f32 %v2519, %v2718
        %v2769 = vadd.f32 %v2520, %v2721
        %v2770 = vadd.f32 %v2521, %v2724
        %v2771 = vadd.f32 %v2522, %v2727
        %v2772 = vadd.f32 %v2523, %v2730
        %s2773 = scalar_lea.vmem %s639, 912 [#allocation2]
        %v2774 = vld [vmem:[%s2773] sm:$0x7f]
        %v2775 = vld [vmem:[%s2773 + $0x8] sm:$0x7f]
        %v2776 = vld [vmem:[%s2773 + $0x10] sm:$0x7f]
        %v2777 = vld [vmem:[%s2773 + $0x30] sm:$0x7f]
        %v2778 = vld [vmem:[%s2773 + $0x38] sm:$0x7f]
        %v2779 = vld [vmem:[%s2773 + $0x40] sm:$0x7f]
        %v2780 = vld [vmem:[%s2773 + $0x60] sm:$0x7f]
        %v2781 = vld [vmem:[%s2773 + $0x68] sm:$0x7f]
        %v2782 = vld [vmem:[%s2773 + $0x70] sm:$0x7f]
        %v2783 = vld [vmem:[%s2773 + $0x90] sm:$0x7f]
        %v2784 = vld [vmem:[%s2773 + $0x98] sm:$0x7f]
        %v2785 = vld [vmem:[%s2773 + $0xa0] sm:$0x7f]
        %v2786 = vld [vmem:[%s2773 + $0xc0] sm:$0x7f]
        %v2787 = vld [vmem:[%s2773 + $0xc8] sm:$0x7f]
        %v2788 = vld [vmem:[%s2773 + $0xd0] sm:$0x7f]
        %v2789 = vld [vmem:[%s2773 + $0xf0] sm:$0x7f]
        %v2790 = vld [vmem:[%s2773 + $0xf8] sm:$0x7f]
        %v2791 = vld [vmem:[%s2773 + $0x100] sm:$0x7f]
        %v2792 = vld [vmem:[%s2773 + $0x120] sm:$0x7f]
        %v2793 = vld [vmem:[%s2773 + $0x128] sm:$0x7f]
        %v2794 = vld [vmem:[%s2773 + $0x130] sm:$0x7f]
        %s2795 = scalar_lea.vmem %s646, 31 [#allocation3]
        %v2796 = vld [vmem:[%s2795] ss:$8 sm:$0x7]
        %v2798 = vlaneseq
        %v2799 = vshrl.u32 %v2798, 7
        %v2800 = vsub.s32 0, %v2799
        %v2801 = vrot.slane %v2796, %v2800
        %v2802 = vlaneseq
        %v2803 = vshrl.u32 %v2802, 7
        %v2804 = vsub.s32 1, %v2803
        %v2805 = vrot.slane %v2796, %v2804
        %v2806 = vlaneseq
        %v2807 = vshrl.u32 %v2806, 7
        %v2808 = vsub.s32 2, %v2807
        %v2809 = vrot.slane %v2796, %v2808
        %v2813 = vmul.f32 %v2774, %v2801
        %v2814 = vmul.f32 %v2775, %v2805
        %v2815 = vmul.f32 %v2776, %v2809
        %v2816 = vmul.f32 %v2777, %v2801
        %v2817 = vmul.f32 %v2778, %v2805
        %v2818 = vmul.f32 %v2779, %v2809
        %v2819 = vmul.f32 %v2780, %v2801
        %v2820 = vmul.f32 %v2781, %v2805
        %v2821 = vmul.f32 %v2782, %v2809
        %v2822 = vmul.f32 %v2783, %v2801
        %v2823 = vmul.f32 %v2784, %v2805
        %v2824 = vmul.f32 %v2785, %v2809
        %v2825 = vmul.f32 %v2786, %v2801
        %v2826 = vmul.f32 %v2787, %v2805
        %v2827 = vmul.f32 %v2788, %v2809
        %v2828 = vmul.f32 %v2789, %v2801
        %v2829 = vmul.f32 %v2790, %v2805
        %v2830 = vmul.f32 %v2791, %v2809
        %v2831 = vmul.f32 %v2792, %v2801
        %v2832 = vmul.f32 %v2793, %v2805
        %v2833 = vmul.f32 %v2794, %v2809
        %v2834 = vadd.f32 %v2752, %v2813
        %v2835 = vadd.f32 %v2753, %v2814
        %v2836 = vadd.f32 %v2754, %v2815
        %v2837 = vadd.f32 %v2755, %v2816
        %v2838 = vadd.f32 %v2756, %v2817
        %v2839 = vadd.f32 %v2757, %v2818
        %v2840 = vadd.f32 %v2758, %v2819
        %v2841 = vadd.f32 %v2759, %v2820
        %v2842 = vadd.f32 %v2760, %v2821
        %v2843 = vadd.f32 %v2761, %v2822
        %v2844 = vadd.f32 %v2762, %v2823
        %v2845 = vadd.f32 %v2763, %v2824
        %v2846 = vadd.f32 %v2764, %v2825
        %v2847 = vadd.f32 %v2765, %v2826
        %v2848 = vadd.f32 %v2766, %v2827
        %v2849 = vadd.f32 %v2767, %v2828
        %v2850 = vadd.f32 %v2768, %v2829
        %v2851 = vadd.f32 %v2769, %v2830
        %v2852 = vadd.f32 %v2770, %v2831
        %v2853 = vadd.f32 %v2771, %v2832
        %v2854 = vadd.f32 %v2772, %v2833
        %s2855 = scalar_lea.vmem %s639, 1344 [#allocation2]
        %v2856 = vld [vmem:[%s2855] sm:$0x7f]
        %v2857 = vld [vmem:[%s2855 + $0x8] sm:$0x7f]
        %v2858 = vld [vmem:[%s2855 + $0x10] sm:$0x7f]
        %v2859 = vld [vmem:[%s2855 + $0x30] sm:$0x7f]
        %v2860 = vld [vmem:[%s2855 + $0x38] sm:$0x7f]
        %v2861 = vld [vmem:[%s2855 + $0x40] sm:$0x7f]
        %v2862 = vld [vmem:[%s2855 + $0x60] sm:$0x7f]
        %v2863 = vld [vmem:[%s2855 + $0x68] sm:$0x7f]
        %v2864 = vld [vmem:[%s2855 + $0x70] sm:$0x7f]
        %v2865 = vld [vmem:[%s2855 + $0x90] sm:$0x7f]
        %v2866 = vld [vmem:[%s2855 + $0x98] sm:$0x7f]
        %v2867 = vld [vmem:[%s2855 + $0xa0] sm:$0x7f]
        %v2868 = vld [vmem:[%s2855 + $0xc0] sm:$0x7f]
        %v2869 = vld [vmem:[%s2855 + $0xc8] sm:$0x7f]
        %v2870 = vld [vmem:[%s2855 + $0xd0] sm:$0x7f]
        %v2871 = vld [vmem:[%s2855 + $0xf0] sm:$0x7f]
        %v2872 = vld [vmem:[%s2855 + $0xf8] sm:$0x7f]
        %v2873 = vld [vmem:[%s2855 + $0x100] sm:$0x7f]
        %v2874 = vld [vmem:[%s2855 + $0x120] sm:$0x7f]
        %v2875 = vld [vmem:[%s2855 + $0x128] sm:$0x7f]
        %v2876 = vld [vmem:[%s2855 + $0x130] sm:$0x7f]
        %s2877 = scalar_lea.vmem %s646, 48 [#allocation3]
        %v2878 = vld [vmem:[%s2877] ss:$8 sm:$0x7]
        %v2880 = vlaneseq
        %v2881 = vshrl.u32 %v2880, 7
        %v2882 = vsub.s32 0, %v2881
        %v2883 = vrot.slane %v2878, %v2882
        %v2884 = vlaneseq
        %v2885 = vshrl.u32 %v2884, 7
        %v2886 = vsub.s32 1, %v2885
        %v2887 = vrot.slane %v2878, %v2886
        %v2888 = vlaneseq
        %v2889 = vshrl.u32 %v2888, 7
        %v2890 = vsub.s32 2, %v2889
        %v2891 = vrot.slane %v2878, %v2890
        %v2895 = vmul.f32 %v2856, %v2883
        %v2896 = vmul.f32 %v2857, %v2887
        %v2897 = vmul.f32 %v2858, %v2891
        %v2898 = vmul.f32 %v2859, %v2883
        %v2899 = vmul.f32 %v2860, %v2887
        %v2900 = vmul.f32 %v2861, %v2891
        %v2901 = vmul.f32 %v2862, %v2883
        %v2902 = vmul.f32 %v2863, %v2887
        %v2903 = vmul.f32 %v2864, %v2891
        %v2904 = vmul.f32 %v2865, %v2883
        %v2905 = vmul.f32 %v2866, %v2887
        %v2906 = vmul.f32 %v2867, %v2891
        %v2907 = vmul.f32 %v2868, %v2883
        %v2908 = vmul.f32 %v2869, %v2887
        %v2909 = vmul.f32 %v2870, %v2891
        %v2910 = vmul.f32 %v2871, %v2883
        %v2911 = vmul.f32 %v2872, %v2887
        %v2912 = vmul.f32 %v2873, %v2891
        %v2913 = vmul.f32 %v2874, %v2883
        %v2914 = vmul.f32 %v2875, %v2887
        %v2915 = vmul.f32 %v2876, %v2891
        %v2916 = vadd.f32 %v2834, %v2895
        %v2917 = vadd.f32 %v2835, %v2896
        %v2918 = vadd.f32 %v2836, %v2897
        %v2919 = vadd.f32 %v2837, %v2898
        %v2920 = vadd.f32 %v2838, %v2899
        %v2921 = vadd.f32 %v2839, %v2900
        %v2922 = vadd.f32 %v2840, %v2901
        %v2923 = vadd.f32 %v2841, %v2902
        %v2924 = vadd.f32 %v2842, %v2903
        %v2925 = vadd.f32 %v2843, %v2904
        %v2926 = vadd.f32 %v2844, %v2905
        %v2927 = vadd.f32 %v2845, %v2906
        %v2928 = vadd.f32 %v2846, %v2907
        %v2929 = vadd.f32 %v2847, %v2908
        %v2930 = vadd.f32 %v2848, %v2909
        %v2931 = vadd.f32 %v2849, %v2910
        %v2932 = vadd.f32 %v2850, %v2911
        %v2933 = vadd.f32 %v2851, %v2912
        %v2934 = vadd.f32 %v2852, %v2913
        %v2935 = vadd.f32 %v2853, %v2914
        %v2936 = vadd.f32 %v2854, %v2915
        %v2937 = vld [vmem:[%s2773] sm:$0xfe]
        %v2938 = vld [vmem:[%s2773 + $0x8] sm:$0xfe]
        %v2939 = vld [vmem:[%s2773 + $0x10] sm:$0xfe]
        %v2940 = vld [vmem:[%s2773 + $0x30] sm:$0xfe]
        %v2941 = vld [vmem:[%s2773 + $0x38] sm:$0xfe]
        %v2942 = vld [vmem:[%s2773 + $0x40] sm:$0xfe]
        %v2943 = vld [vmem:[%s2773 + $0x60] sm:$0xfe]
        %v2944 = vld [vmem:[%s2773 + $0x68] sm:$0xfe]
        %v2945 = vld [vmem:[%s2773 + $0x70] sm:$0xfe]
        %v2946 = vld [vmem:[%s2773 + $0x90] sm:$0xfe]
        %v2947 = vld [vmem:[%s2773 + $0x98] sm:$0xfe]
        %v2948 = vld [vmem:[%s2773 + $0xa0] sm:$0xfe]
        %v2949 = vld [vmem:[%s2773 + $0xc0] sm:$0xfe]
        %v2950 = vld [vmem:[%s2773 + $0xc8] sm:$0xfe]
        %v2951 = vld [vmem:[%s2773 + $0xd0] sm:$0xfe]
        %v2952 = vld [vmem:[%s2773 + $0xf0] sm:$0xfe]
        %v2953 = vld [vmem:[%s2773 + $0xf8] sm:$0xfe]
        %v2954 = vld [vmem:[%s2773 + $0x100] sm:$0xfe]
        %v2955 = vld [vmem:[%s2773 + $0x120] sm:$0xfe]
        %v2956 = vld [vmem:[%s2773 + $0x128] sm:$0xfe]
        %v2957 = vld [vmem:[%s2773 + $0x130] sm:$0xfe]
        %s2958 = scalar_lea.vmem %s646, 49 [#allocation3]
        %v2959 = vld [vmem:[%s2958] ss:$8 sm:$0x7]
        %v2961 = vlaneseq
        %v2962 = vshrl.u32 %v2961, 7
        %v2963 = vsub.s32 0, %v2962
        %v2964 = vrot.slane %v2959, %v2963
        %v2965 = vlaneseq
        %v2966 = vshrl.u32 %v2965, 7
        %v2967 = vsub.s32 1, %v2966
        %v2968 = vrot.slane %v2959, %v2967
        %v2969 = vlaneseq
        %v2970 = vshrl.u32 %v2969, 7
        %v2971 = vsub.s32 2, %v2970
        %v2972 = vrot.slane %v2959, %v2971
        %v2976 = vmul.f32 %v2937, %v2964
        %v2977 = vmul.f32 %v2938, %v2968
        %v2978 = vmul.f32 %v2939, %v2972
        %v2979 = vmul.f32 %v2940, %v2964
        %v2980 = vmul.f32 %v2941, %v2968
        %v2981 = vmul.f32 %v2942, %v2972
        %v2982 = vmul.f32 %v2943, %v2964
        %v2983 = vmul.f32 %v2944, %v2968
        %v2984 = vmul.f32 %v2945, %v2972
        %v2985 = vmul.f32 %v2946, %v2964
        %v2986 = vmul.f32 %v2947, %v2968
        %v2987 = vmul.f32 %v2948, %v2972
        %v2988 = vmul.f32 %v2949, %v2964
        %v2989 = vmul.f32 %v2950, %v2968
        %v2990 = vmul.f32 %v2951, %v2972
        %v2991 = vmul.f32 %v2952, %v2964
        %v2992 = vmul.f32 %v2953, %v2968
        %v2993 = vmul.f32 %v2954, %v2972
        %v2994 = vmul.f32 %v2955, %v2964
        %v2995 = vmul.f32 %v2956, %v2968
        %v2996 = vmul.f32 %v2957, %v2972
        %v3018 = vrot.slane %v2976, 1
        %v3019 = vrot.slane %v2977, 1
        %v3020 = vrot.slane %v2978, 1
        %v3021 = vrot.slane %v2979, 1
        %v3022 = vrot.slane %v2980, 1
        %v3023 = vrot.slane %v2981, 1
        %v3024 = vrot.slane %v2982, 1
        %v3025 = vrot.slane %v2983, 1
        %v3026 = vrot.slane %v2984, 1
        %v3027 = vrot.slane %v2985, 1
        %v3028 = vrot.slane %v2986, 1
        %v3029 = vrot.slane %v2987, 1
        %v3030 = vrot.slane %v2988, 1
        %v3031 = vrot.slane %v2989, 1
        %v3032 = vrot.slane %v2990, 1
        %v3033 = vrot.slane %v2991, 1
        %v3034 = vrot.slane %v2992, 1
        %v3035 = vrot.slane %v2993, 1
        %v3036 = vrot.slane %v2994, 1
        %v3037 = vrot.slane %v2995, 1
        %v3038 = vrot.slane %v2996, 1
        %v3060 = vadd.f32 %v2916, %v3018
        %v3061 = vadd.f32 %v2917, %v3019
        %v3062 = vadd.f32 %v2918, %v3020
        %v3063 = vadd.f32 %v2919, %v3021
        %v3064 = vadd.f32 %v2920, %v3022
        %v3065 = vadd.f32 %v2921, %v3023
        %v3066 = vadd.f32 %v2922, %v3024
        %v3067 = vadd.f32 %v2923, %v3025
        %v3068 = vadd.f32 %v2924, %v3026
        %v3069 = vadd.f32 %v2925, %v3027
        %v3070 = vadd.f32 %v2926, %v3028
        %v3071 = vadd.f32 %v2927, %v3029
        %v3072 = vadd.f32 %v2928, %v3030
        %v3073 = vadd.f32 %v2929, %v3031
        %v3074 = vadd.f32 %v2930, %v3032
        %v3075 = vadd.f32 %v2931, %v3033
        %v3076 = vadd.f32 %v2932, %v3034
        %v3077 = vadd.f32 %v2933, %v3035
        %v3078 = vadd.f32 %v2934, %v3036
        %v3079 = vadd.f32 %v2935, %v3037
        %v3080 = vadd.f32 %v2936, %v3038
        %v3081 = vld [vmem:[%s2855] sm:$0xfe]
        %v3082 = vld [vmem:[%s2855 + $0x8] sm:$0xfe]
        %v3083 = vld [vmem:[%s2855 + $0x10] sm:$0xfe]
        %v3084 = vld [vmem:[%s2855 + $0x30] sm:$0xfe]
        %v3085 = vld [vmem:[%s2855 + $0x38] sm:$0xfe]
        %v3086 = vld [vmem:[%s2855 + $0x40] sm:$0xfe]
        %v3087 = vld [vmem:[%s2855 + $0x60] sm:$0xfe]
        %v3088 = vld [vmem:[%s2855 + $0x68] sm:$0xfe]
        %v3089 = vld [vmem:[%s2855 + $0x70] sm:$0xfe]
        %v3090 = vld [vmem:[%s2855 + $0x90] sm:$0xfe]
        %v3091 = vld [vmem:[%s2855 + $0x98] sm:$0xfe]
        %v3092 = vld [vmem:[%s2855 + $0xa0] sm:$0xfe]
        %v3093 = vld [vmem:[%s2855 + $0xc0] sm:$0xfe]
        %v3094 = vld [vmem:[%s2855 + $0xc8] sm:$0xfe]
        %v3095 = vld [vmem:[%s2855 + $0xd0] sm:$0xfe]
        %v3096 = vld [vmem:[%s2855 + $0xf0] sm:$0xfe]
        %v3097 = vld [vmem:[%s2855 + $0xf8] sm:$0xfe]
        %v3098 = vld [vmem:[%s2855 + $0x100] sm:$0xfe]
        %v3099 = vld [vmem:[%s2855 + $0x120] sm:$0xfe]
        %v3100 = vld [vmem:[%s2855 + $0x128] sm:$0xfe]
        %v3101 = vld [vmem:[%s2855 + $0x130] sm:$0xfe]
        %s3102 = scalar_lea.vmem %s646, 50 [#allocation3]
        %v3103 = vld [vmem:[%s3102] ss:$8 sm:$0x7]
        %v3105 = vlaneseq
        %v3106 = vshrl.u32 %v3105, 7
        %v3107 = vsub.s32 0, %v3106
        %v3108 = vrot.slane %v3103, %v3107
        %v3109 = vlaneseq
        %v3110 = vshrl.u32 %v3109, 7
        %v3111 = vsub.s32 1, %v3110
        %v3112 = vrot.slane %v3103, %v3111
        %v3113 = vlaneseq
        %v3114 = vshrl.u32 %v3113, 7
        %v3115 = vsub.s32 2, %v3114
        %v3116 = vrot.slane %v3103, %v3115
        %v3120 = vmul.f32 %v3081, %v3108
        %v3121 = vmul.f32 %v3082, %v3112
        %v3122 = vmul.f32 %v3083, %v3116
        %v3123 = vmul.f32 %v3084, %v3108
        %v3124 = vmul.f32 %v3085, %v3112
        %v3125 = vmul.f32 %v3086, %v3116
        %v3126 = vmul.f32 %v3087, %v3108
        %v3127 = vmul.f32 %v3088, %v3112
        %v3128 = vmul.f32 %v3089, %v3116
        %v3129 = vmul.f32 %v3090, %v3108
        %v3130 = vmul.f32 %v3091, %v3112
        %v3131 = vmul.f32 %v3092, %v3116
        %v3132 = vmul.f32 %v3093, %v3108
        %v3133 = vmul.f32 %v3094, %v3112
        %v3134 = vmul.f32 %v3095, %v3116
        %v3135 = vmul.f32 %v3096, %v3108
        %v3136 = vmul.f32 %v3097, %v3112
        %v3137 = vmul.f32 %v3098, %v3116
        %v3138 = vmul.f32 %v3099, %v3108
        %v3139 = vmul.f32 %v3100, %v3112
        %v3140 = vmul.f32 %v3101, %v3116
        %v3162 = vrot.slane %v3120, 1
        %v3163 = vrot.slane %v3121, 1
        %v3164 = vrot.slane %v3122, 1
        %v3165 = vrot.slane %v3123, 1
        %v3166 = vrot.slane %v3124, 1
        %v3167 = vrot.slane %v3125, 1
        %v3168 = vrot.slane %v3126, 1
        %v3169 = vrot.slane %v3127, 1
        %v3170 = vrot.slane %v3128, 1
        %v3171 = vrot.slane %v3129, 1
        %v3172 = vrot.slane %v3130, 1
        %v3173 = vrot.slane %v3131, 1
        %v3174 = vrot.slane %v3132, 1
        %v3175 = vrot.slane %v3133, 1
        %v3176 = vrot.slane %v3134, 1
        %v3177 = vrot.slane %v3135, 1
        %v3178 = vrot.slane %v3136, 1
        %v3179 = vrot.slane %v3137, 1
        %v3180 = vrot.slane %v3138, 1
        %v3181 = vrot.slane %v3139, 1
        %v3182 = vrot.slane %v3140, 1
        %v3204 = vadd.f32 %v3060, %v3162
        %v3205 = vadd.f32 %v3061, %v3163
        %v3206 = vadd.f32 %v3062, %v3164
        %v3207 = vadd.f32 %v3063, %v3165
        %v3208 = vadd.f32 %v3064, %v3166
        %v3209 = vadd.f32 %v3065, %v3167
        %v3210 = vadd.f32 %v3066, %v3168
        %v3211 = vadd.f32 %v3067, %v3169
        %v3212 = vadd.f32 %v3068, %v3170
        %v3213 = vadd.f32 %v3069, %v3171
        %v3214 = vadd.f32 %v3070, %v3172
        %v3215 = vadd.f32 %v3071, %v3173
        %v3216 = vadd.f32 %v3072, %v3174
        %v3217 = vadd.f32 %v3073, %v3175
        %v3218 = vadd.f32 %v3074, %v3176
        %v3219 = vadd.f32 %v3075, %v3177
        %v3220 = vadd.f32 %v3076, %v3178
        %v3221 = vadd.f32 %v3077, %v3179
        %v3222 = vadd.f32 %v3078, %v3180
        %v3223 = vadd.f32 %v3079, %v3181
        %v3224 = vadd.f32 %v3080, %v3182
        %v3225 = vld [vmem:[%s2773] sm:$0xfc]
        %v3226 = vld [vmem:[%s2773 + $0x8] sm:$0xfc]
        %v3227 = vld [vmem:[%s2773 + $0x10] sm:$0xfc]
        %v3228 = vld [vmem:[%s2773 + $0x18] sm:$0x1]
        %v3229 = vld [vmem:[%s2773 + $0x20] sm:$0x1]
        %v3230 = vld [vmem:[%s2773 + $0x28] sm:$0x1]
        %v3231 = vld [vmem:[%s2773 + $0x30] sm:$0xfc]
        %v3232 = vld [vmem:[%s2773 + $0x38] sm:$0xfc]
        %v3233 = vld [vmem:[%s2773 + $0x40] sm:$0xfc]
        %v3234 = vld [vmem:[%s2773 + $0x48] sm:$0x1]
        %v3235 = vld [vmem:[%s2773 + $0x50] sm:$0x1]
        %v3236 = vld [vmem:[%s2773 + $0x58] sm:$0x1]
        %v3237 = vld [vmem:[%s2773 + $0x60] sm:$0xfc]
        %v3238 = vld [vmem:[%s2773 + $0x68] sm:$0xfc]
        %v3239 = vld [vmem:[%s2773 + $0x70] sm:$0xfc]
        %v3240 = vld [vmem:[%s2773 + $0x78] sm:$0x1]
        %v3241 = vld [vmem:[%s2773 + $0x80] sm:$0x1]
        %v3242 = vld [vmem:[%s2773 + $0x88] sm:$0x1]
        %v3243 = vld [vmem:[%s2773 + $0x90] sm:$0xfc]
        %v3244 = vld [vmem:[%s2773 + $0x98] sm:$0xfc]
        %v3245 = vld [vmem:[%s2773 + $0xa0] sm:$0xfc]
        %v3246 = vld [vmem:[%s2773 + $0xa8] sm:$0x1]
        %v3247 = vld [vmem:[%s2773 + $0xb0] sm:$0x1]
        %v3248 = vld [vmem:[%s2773 + $0xb8] sm:$0x1]
        %v3249 = vld [vmem:[%s2773 + $0xc0] sm:$0xfc]
        %v3250 = vld [vmem:[%s2773 + $0xc8] sm:$0xfc]
        %v3251 = vld [vmem:[%s2773 + $0xd0] sm:$0xfc]
        %v3252 = vld [vmem:[%s2773 + $0xd8] sm:$0x1]
        %v3253 = vld [vmem:[%s2773 + $0xe0] sm:$0x1]
        %v3254 = vld [vmem:[%s2773 + $0xe8] sm:$0x1]
        %v3255 = vld [vmem:[%s2773 + $0xf0] sm:$0xfc]
        %v3256 = vld [vmem:[%s2773 + $0xf8] sm:$0xfc]
        %v3257 = vld [vmem:[%s2773 + $0x100] sm:$0xfc]
        %v3258 = vld [vmem:[%s2773 + $0x108] sm:$0x1]
        %v3259 = vld [vmem:[%s2773 + $0x110] sm:$0x1]
        %v3260 = vld [vmem:[%s2773 + $0x118] sm:$0x1]
        %v3261 = vld [vmem:[%s2773 + $0x120] sm:$0xfc]
        %v3262 = vld [vmem:[%s2773 + $0x128] sm:$0xfc]
        %v3263 = vld [vmem:[%s2773 + $0x130] sm:$0xfc]
        %v3264 = vld [vmem:[%s2773 + $0x138] sm:$0x1]
        %v3265 = vld [vmem:[%s2773 + $0x140] sm:$0x1]
        %v3266 = vld [vmem:[%s2773 + $0x148] sm:$0x1]
        %s3267 = scalar_lea.vmem %s646, 51 [#allocation3]
        %v3268 = vld [vmem:[%s3267] ss:$8 sm:$0x7]
        %v3270 = vlaneseq
        %v3271 = vshrl.u32 %v3270, 7
        %v3272 = vsub.s32 0, %v3271
        %v3273 = vrot.slane %v3268, %v3272
        %v3274 = vlaneseq
        %v3275 = vshrl.u32 %v3274, 7
        %v3276 = vsub.s32 1, %v3275
        %v3277 = vrot.slane %v3268, %v3276
        %v3278 = vlaneseq
        %v3279 = vshrl.u32 %v3278, 7
        %v3280 = vsub.s32 2, %v3279
        %v3281 = vrot.slane %v3268, %v3280
        %v3285 = vmul.f32 %v3225, %v3273
        %v3286 = vmul.f32 %v3226, %v3277
        %v3287 = vmul.f32 %v3227, %v3281
        %v3288 = vmul.f32 %v3228, %v3273
        %v3289 = vmul.f32 %v3229, %v3277
        %v3290 = vmul.f32 %v3230, %v3281
        %v3291 = vmul.f32 %v3231, %v3273
        %v3292 = vmul.f32 %v3232, %v3277
        %v3293 = vmul.f32 %v3233, %v3281
        %v3294 = vmul.f32 %v3234, %v3273
        %v3295 = vmul.f32 %v3235, %v3277
        %v3296 = vmul.f32 %v3236, %v3281
        %v3297 = vmul.f32 %v3237, %v3273
        %v3298 = vmul.f32 %v3238, %v3277
        %v3299 = vmul.f32 %v3239, %v3281
        %v3300 = vmul.f32 %v3240, %v3273
        %v3301 = vmul.f32 %v3241, %v3277
        %v3302 = vmul.f32 %v3242, %v3281
        %v3303 = vmul.f32 %v3243, %v3273
        %v3304 = vmul.f32 %v3244, %v3277
        %v3305 = vmul.f32 %v3245, %v3281
        %v3306 = vmul.f32 %v3246, %v3273
        %v3307 = vmul.f32 %v3247, %v3277
        %v3308 = vmul.f32 %v3248, %v3281
        %v3309 = vmul.f32 %v3249, %v3273
        %v3310 = vmul.f32 %v3250, %v3277
        %v3311 = vmul.f32 %v3251, %v3281
        %v3312 = vmul.f32 %v3252, %v3273
        %v3313 = vmul.f32 %v3253, %v3277
        %v3314 = vmul.f32 %v3254, %v3281
        %v3315 = vmul.f32 %v3255, %v3273
        %v3316 = vmul.f32 %v3256, %v3277
        %v3317 = vmul.f32 %v3257, %v3281
        %v3318 = vmul.f32 %v3258, %v3273
        %v3319 = vmul.f32 %v3259, %v3277
        %v3320 = vmul.f32 %v3260, %v3281
        %v3321 = vmul.f32 %v3261, %v3273
        %v3322 = vmul.f32 %v3262, %v3277
        %v3323 = vmul.f32 %v3263, %v3281
        %v3324 = vmul.f32 %v3264, %v3273
        %v3325 = vmul.f32 %v3265, %v3277
        %v3326 = vmul.f32 %v3266, %v3281
        %v3369 = vrot.slane %v3285, 2
        %v3370 = vrot.slane %v3288, 2
        %v3371 = vsel %vm1265, %v3369, %v3370
        %v3372 = vrot.slane %v3286, 2
        %v3373 = vrot.slane %v3289, 2
        %v3374 = vsel %vm1265, %v3372, %v3373
        %v3375 = vrot.slane %v3287, 2
        %v3376 = vrot.slane %v3290, 2
        %v3377 = vsel %vm1265, %v3375, %v3376
        %v3378 = vrot.slane %v3291, 2
        %v3379 = vrot.slane %v3294, 2
        %v3380 = vsel %vm1265, %v3378, %v3379
        %v3381 = vrot.slane %v3292, 2
        %v3382 = vrot.slane %v3295, 2
        %v3383 = vsel %vm1265, %v3381, %v3382
        %v3384 = vrot.slane %v3293, 2
        %v3385 = vrot.slane %v3296, 2
        %v3386 = vsel %vm1265, %v3384, %v3385
        %v3387 = vrot.slane %v3297, 2
        %v3388 = vrot.slane %v3300, 2
        %v3389 = vsel %vm1265, %v3387, %v3388
        %v3390 = vrot.slane %v3298, 2
        %v3391 = vrot.slane %v3301, 2
        %v3392 = vsel %vm1265, %v3390, %v3391
        %v3393 = vrot.slane %v3299, 2
        %v3394 = vrot.slane %v3302, 2
        %v3395 = vsel %vm1265, %v3393, %v3394
        %v3396 = vrot.slane %v3303, 2
        %v3397 = vrot.slane %v3306, 2
        %v3398 = vsel %vm1265, %v3396, %v3397
        %v3399 = vrot.slane %v3304, 2
        %v3400 = vrot.slane %v3307, 2
        %v3401 = vsel %vm1265, %v3399, %v3400
        %v3402 = vrot.slane %v3305, 2
        %v3403 = vrot.slane %v3308, 2
        %v3404 = vsel %vm1265, %v3402, %v3403
        %v3405 = vrot.slane %v3309, 2
        %v3406 = vrot.slane %v3312, 2
        %v3407 = vsel %vm1265, %v3405, %v3406
        %v3408 = vrot.slane %v3310, 2
        %v3409 = vrot.slane %v3313, 2
        %v3410 = vsel %vm1265, %v3408, %v3409
        %v3411 = vrot.slane %v3311, 2
        %v3412 = vrot.slane %v3314, 2
        %v3413 = vsel %vm1265, %v3411, %v3412
        %v3414 = vrot.slane %v3315, 2
        %v3415 = vrot.slane %v3318, 2
        %v3416 = vsel %vm1265, %v3414, %v3415
        %v3417 = vrot.slane %v3316, 2
        %v3418 = vrot.slane %v3319, 2
        %v3419 = vsel %vm1265, %v3417, %v3418
        %v3420 = vrot.slane %v3317, 2
        %v3421 = vrot.slane %v3320, 2
        %v3422 = vsel %vm1265, %v3420, %v3421
        %v3423 = vrot.slane %v3321, 2
        %v3424 = vrot.slane %v3324, 2
        %v3425 = vsel %vm1265, %v3423, %v3424
        %v3426 = vrot.slane %v3322, 2
        %v3427 = vrot.slane %v3325, 2
        %v3428 = vsel %vm1265, %v3426, %v3427
        %v3429 = vrot.slane %v3323, 2
        %v3430 = vrot.slane %v3326, 2
        %v3431 = vsel %vm1265, %v3429, %v3430
        %v3453 = vadd.f32 %v3204, %v3371
        %v3454 = vadd.f32 %v3205, %v3374
        %v3455 = vadd.f32 %v3206, %v3377
        %v3456 = vadd.f32 %v3207, %v3380
        %v3457 = vadd.f32 %v3208, %v3383
        %v3458 = vadd.f32 %v3209, %v3386
        %v3459 = vadd.f32 %v3210, %v3389
        %v3460 = vadd.f32 %v3211, %v3392
        %v3461 = vadd.f32 %v3212, %v3395
        %v3462 = vadd.f32 %v3213, %v3398
        %v3463 = vadd.f32 %v3214, %v3401
        %v3464 = vadd.f32 %v3215, %v3404
        %v3465 = vadd.f32 %v3216, %v3407
        %v3466 = vadd.f32 %v3217, %v3410
        %v3467 = vadd.f32 %v3218, %v3413
        %v3468 = vadd.f32 %v3219, %v3416
        %v3469 = vadd.f32 %v3220, %v3419
        %v3470 = vadd.f32 %v3221, %v3422
        %v3471 = vadd.f32 %v3222, %v3425
        %v3472 = vadd.f32 %v3223, %v3428
        %v3473 = vadd.f32 %v3224, %v3431
        %s3474 = scalar_lea.vmem %s639, 96 [#allocation2]
        %v3475 = vld [vmem:[%s3474] sm:$0x7f]
        %v3476 = vld [vmem:[%s3474 + $0x8] sm:$0x7f]
        %v3477 = vld [vmem:[%s3474 + $0x10] sm:$0x7f]
        %v3478 = vld [vmem:[%s3474 + $0x30] sm:$0x7f]
        %v3479 = vld [vmem:[%s3474 + $0x38] sm:$0x7f]
        %v3480 = vld [vmem:[%s3474 + $0x40] sm:$0x7f]
        %v3481 = vld [vmem:[%s3474 + $0x60] sm:$0x7f]
        %v3482 = vld [vmem:[%s3474 + $0x68] sm:$0x7f]
        %v3483 = vld [vmem:[%s3474 + $0x70] sm:$0x7f]
        %v3484 = vld [vmem:[%s3474 + $0x90] sm:$0x7f]
        %v3485 = vld [vmem:[%s3474 + $0x98] sm:$0x7f]
        %v3486 = vld [vmem:[%s3474 + $0xa0] sm:$0x7f]
        %v3487 = vld [vmem:[%s3474 + $0xc0] sm:$0x7f]
        %v3488 = vld [vmem:[%s3474 + $0xc8] sm:$0x7f]
        %v3489 = vld [vmem:[%s3474 + $0xd0] sm:$0x7f]
        %v3490 = vld [vmem:[%s3474 + $0xf0] sm:$0x7f]
        %v3491 = vld [vmem:[%s3474 + $0xf8] sm:$0x7f]
        %v3492 = vld [vmem:[%s3474 + $0x100] sm:$0x7f]
        %v3493 = vld [vmem:[%s3474 + $0x120] sm:$0x7f]
        %v3494 = vld [vmem:[%s3474 + $0x128] sm:$0x7f]
        %v3495 = vld [vmem:[%s3474 + $0x130] sm:$0x7f]
        %s3496 = scalar_lea.vmem %s646, 52 [#allocation3]
        %v3497 = vld [vmem:[%s3496] ss:$8 sm:$0x7]
        %v3499 = vlaneseq
        %v3500 = vshrl.u32 %v3499, 7
        %v3501 = vsub.s32 0, %v3500
        %v3502 = vrot.slane %v3497, %v3501
        %v3503 = vlaneseq
        %v3504 = vshrl.u32 %v3503, 7
        %v3505 = vsub.s32 1, %v3504
        %v3506 = vrot.slane %v3497, %v3505
        %v3507 = vlaneseq
        %v3508 = vshrl.u32 %v3507, 7
        %v3509 = vsub.s32 2, %v3508
        %v3510 = vrot.slane %v3497, %v3509
        %v3514 = vmul.f32 %v3475, %v3502
        %v3515 = vmul.f32 %v3476, %v3506
        %v3516 = vmul.f32 %v3477, %v3510
        %v3517 = vmul.f32 %v3478, %v3502
        %v3518 = vmul.f32 %v3479, %v3506
        %v3519 = vmul.f32 %v3480, %v3510
        %v3520 = vmul.f32 %v3481, %v3502
        %v3521 = vmul.f32 %v3482, %v3506
        %v3522 = vmul.f32 %v3483, %v3510
        %v3523 = vmul.f32 %v3484, %v3502
        %v3524 = vmul.f32 %v3485, %v3506
        %v3525 = vmul.f32 %v3486, %v3510
        %v3526 = vmul.f32 %v3487, %v3502
        %v3527 = vmul.f32 %v3488, %v3506
        %v3528 = vmul.f32 %v3489, %v3510
        %v3529 = vmul.f32 %v3490, %v3502
        %v3530 = vmul.f32 %v3491, %v3506
        %v3531 = vmul.f32 %v3492, %v3510
        %v3532 = vmul.f32 %v3493, %v3502
        %v3533 = vmul.f32 %v3494, %v3506
        %v3534 = vmul.f32 %v3495, %v3510
        %v3535 = vadd.f32 %v3453, %v3514
        %v3536 = vadd.f32 %v3454, %v3515
        %v3537 = vadd.f32 %v3455, %v3516
        %v3538 = vadd.f32 %v3456, %v3517
        %v3539 = vadd.f32 %v3457, %v3518
        %v3540 = vadd.f32 %v3458, %v3519
        %v3541 = vadd.f32 %v3459, %v3520
        %v3542 = vadd.f32 %v3460, %v3521
        %v3543 = vadd.f32 %v3461, %v3522
        %v3544 = vadd.f32 %v3462, %v3523
        %v3545 = vadd.f32 %v3463, %v3524
        %v3546 = vadd.f32 %v3464, %v3525
        %v3547 = vadd.f32 %v3465, %v3526
        %v3548 = vadd.f32 %v3466, %v3527
        %v3549 = vadd.f32 %v3467, %v3528
        %v3550 = vadd.f32 %v3468, %v3529
        %v3551 = vadd.f32 %v3469, %v3530
        %v3552 = vadd.f32 %v3470, %v3531
        %v3553 = vadd.f32 %v3471, %v3532
        %v3554 = vadd.f32 %v3472, %v3533
        %v3555 = vadd.f32 %v3473, %v3534
        %s3556 = scalar_lea.vmem %s639, 528 [#allocation2]
        %v3557 = vld [vmem:[%s3556] sm:$0x7f]
        %v3558 = vld [vmem:[%s3556 + $0x8] sm:$0x7f]
        %v3559 = vld [vmem:[%s3556 + $0x10] sm:$0x7f]
        %v3560 = vld [vmem:[%s3556 + $0x30] sm:$0x7f]
        %v3561 = vld [vmem:[%s3556 + $0x38] sm:$0x7f]
        %v3562 = vld [vmem:[%s3556 + $0x40] sm:$0x7f]
        %v3563 = vld [vmem:[%s3556 + $0x60] sm:$0x7f]
        %v3564 = vld [vmem:[%s3556 + $0x68] sm:$0x7f]
        %v3565 = vld [vmem:[%s3556 + $0x70] sm:$0x7f]
        %v3566 = vld [vmem:[%s3556 + $0x90] sm:$0x7f]
        %v3567 = vld [vmem:[%s3556 + $0x98] sm:$0x7f]
        %v3568 = vld [vmem:[%s3556 + $0xa0] sm:$0x7f]
        %v3569 = vld [vmem:[%s3556 + $0xc0] sm:$0x7f]
        %v3570 = vld [vmem:[%s3556 + $0xc8] sm:$0x7f]
        %v3571 = vld [vmem:[%s3556 + $0xd0] sm:$0x7f]
        %v3572 = vld [vmem:[%s3556 + $0xf0] sm:$0x7f]
        %v3573 = vld [vmem:[%s3556 + $0xf8] sm:$0x7f]
        %v3574 = vld [vmem:[%s3556 + $0x100] sm:$0x7f]
        %v3575 = vld [vmem:[%s3556 + $0x120] sm:$0x7f]
        %v3576 = vld [vmem:[%s3556 + $0x128] sm:$0x7f]
        %v3577 = vld [vmem:[%s3556 + $0x130] sm:$0x7f]
        %s3578 = scalar_lea.vmem %s646, 53 [#allocation3]
        %v3579 = vld [vmem:[%s3578] ss:$8 sm:$0x7]
        %v3581 = vlaneseq
        %v3582 = vshrl.u32 %v3581, 7
        %v3583 = vsub.s32 0, %v3582
        %v3584 = vrot.slane %v3579, %v3583
        %v3585 = vlaneseq
        %v3586 = vshrl.u32 %v3585, 7
        %v3587 = vsub.s32 1, %v3586
        %v3588 = vrot.slane %v3579, %v3587
        %v3589 = vlaneseq
        %v3590 = vshrl.u32 %v3589, 7
        %v3591 = vsub.s32 2, %v3590
        %v3592 = vrot.slane %v3579, %v3591
        %v3596 = vmul.f32 %v3557, %v3584
        %v3597 = vmul.f32 %v3558, %v3588
        %v3598 = vmul.f32 %v3559, %v3592
        %v3599 = vmul.f32 %v3560, %v3584
        %v3600 = vmul.f32 %v3561, %v3588
        %v3601 = vmul.f32 %v3562, %v3592
        %v3602 = vmul.f32 %v3563, %v3584
        %v3603 = vmul.f32 %v3564, %v3588
        %v3604 = vmul.f32 %v3565, %v3592
        %v3605 = vmul.f32 %v3566, %v3584
        %v3606 = vmul.f32 %v3567, %v3588
        %v3607 = vmul.f32 %v3568, %v3592
        %v3608 = vmul.f32 %v3569, %v3584
        %v3609 = vmul.f32 %v3570, %v3588
        %v3610 = vmul.f32 %v3571, %v3592
        %v3611 = vmul.f32 %v3572, %v3584
        %v3612 = vmul.f32 %v3573, %v3588
        %v3613 = vmul.f32 %v3574, %v3592
        %v3614 = vmul.f32 %v3575, %v3584
        %v3615 = vmul.f32 %v3576, %v3588
        %v3616 = vmul.f32 %v3577, %v3592
        %v3617 = vadd.f32 %v3535, %v3596
        %v3618 = vadd.f32 %v3536, %v3597
        %v3619 = vadd.f32 %v3537, %v3598
        %v3620 = vadd.f32 %v3538, %v3599
        %v3621 = vadd.f32 %v3539, %v3600
        %v3622 = vadd.f32 %v3540, %v3601
        %v3623 = vadd.f32 %v3541, %v3602
        %v3624 = vadd.f32 %v3542, %v3603
        %v3625 = vadd.f32 %v3543, %v3604
        %v3626 = vadd.f32 %v3544, %v3605
        %v3627 = vadd.f32 %v3545, %v3606
        %v3628 = vadd.f32 %v3546, %v3607
        %v3629 = vadd.f32 %v3547, %v3608
        %v3630 = vadd.f32 %v3548, %v3609
        %v3631 = vadd.f32 %v3549, %v3610
        %v3632 = vadd.f32 %v3550, %v3611
        %v3633 = vadd.f32 %v3551, %v3612
        %v3634 = vadd.f32 %v3552, %v3613
        %v3635 = vadd.f32 %v3553, %v3614
        %v3636 = vadd.f32 %v3554, %v3615
        %v3637 = vadd.f32 %v3555, %v3616
        %v3638 = vld [vmem:[%s3474] sm:$0xfe]
        %v3639 = vld [vmem:[%s3474 + $0x8] sm:$0xfe]
        %v3640 = vld [vmem:[%s3474 + $0x10] sm:$0xfe]
        %v3641 = vld [vmem:[%s3474 + $0x30] sm:$0xfe]
        %v3642 = vld [vmem:[%s3474 + $0x38] sm:$0xfe]
        %v3643 = vld [vmem:[%s3474 + $0x40] sm:$0xfe]
        %v3644 = vld [vmem:[%s3474 + $0x60] sm:$0xfe]
        %v3645 = vld [vmem:[%s3474 + $0x68] sm:$0xfe]
        %v3646 = vld [vmem:[%s3474 + $0x70] sm:$0xfe]
        %v3647 = vld [vmem:[%s3474 + $0x90] sm:$0xfe]
        %v3648 = vld [vmem:[%s3474 + $0x98] sm:$0xfe]
        %v3649 = vld [vmem:[%s3474 + $0xa0] sm:$0xfe]
        %v3650 = vld [vmem:[%s3474 + $0xc0] sm:$0xfe]
        %v3651 = vld [vmem:[%s3474 + $0xc8] sm:$0xfe]
        %v3652 = vld [vmem:[%s3474 + $0xd0] sm:$0xfe]
        %v3653 = vld [vmem:[%s3474 + $0xf0] sm:$0xfe]
        %v3654 = vld [vmem:[%s3474 + $0xf8] sm:$0xfe]
        %v3655 = vld [vmem:[%s3474 + $0x100] sm:$0xfe]
        %v3656 = vld [vmem:[%s3474 + $0x120] sm:$0xfe]
        %v3657 = vld [vmem:[%s3474 + $0x128] sm:$0xfe]
        %v3658 = vld [vmem:[%s3474 + $0x130] sm:$0xfe]
        %s3659 = scalar_lea.vmem %s646, 54 [#allocation3]
        %v3660 = vld [vmem:[%s3659] ss:$8 sm:$0x7]
        %v3662 = vlaneseq
        %v3663 = vshrl.u32 %v3662, 7
        %v3664 = vsub.s32 0, %v3663
        %v3665 = vrot.slane %v3660, %v3664
        %v3666 = vlaneseq
        %v3667 = vshrl.u32 %v3666, 7
        %v3668 = vsub.s32 1, %v3667
        %v3669 = vrot.slane %v3660, %v3668
        %v3670 = vlaneseq
        %v3671 = vshrl.u32 %v3670, 7
        %v3672 = vsub.s32 2, %v3671
        %v3673 = vrot.slane %v3660, %v3672
        %v3677 = vmul.f32 %v3638, %v3665
        %v3678 = vmul.f32 %v3639, %v3669
        %v3679 = vmul.f32 %v3640, %v3673
        %v3680 = vmul.f32 %v3641, %v3665
        %v3681 = vmul.f32 %v3642, %v3669
        %v3682 = vmul.f32 %v3643, %v3673
        %v3683 = vmul.f32 %v3644, %v3665
        %v3684 = vmul.f32 %v3645, %v3669
        %v3685 = vmul.f32 %v3646, %v3673
        %v3686 = vmul.f32 %v3647, %v3665
        %v3687 = vmul.f32 %v3648, %v3669
        %v3688 = vmul.f32 %v3649, %v3673
        %v3689 = vmul.f32 %v3650, %v3665
        %v3690 = vmul.f32 %v3651, %v3669
        %v3691 = vmul.f32 %v3652, %v3673
        %v3692 = vmul.f32 %v3653, %v3665
        %v3693 = vmul.f32 %v3654, %v3669
        %v3694 = vmul.f32 %v3655, %v3673
        %v3695 = vmul.f32 %v3656, %v3665
        %v3696 = vmul.f32 %v3657, %v3669
        %v3697 = vmul.f32 %v3658, %v3673
        %v3719 = vrot.slane %v3677, 1
        %v3720 = vrot.slane %v3678, 1
        %v3721 = vrot.slane %v3679, 1
        %v3722 = vrot.slane %v3680, 1
        %v3723 = vrot.slane %v3681, 1
        %v3724 = vrot.slane %v3682, 1
        %v3725 = vrot.slane %v3683, 1
        %v3726 = vrot.slane %v3684, 1
        %v3727 = vrot.slane %v3685, 1
        %v3728 = vrot.slane %v3686, 1
        %v3729 = vrot.slane %v3687, 1
        %v3730 = vrot.slane %v3688, 1
        %v3731 = vrot.slane %v3689, 1
        %v3732 = vrot.slane %v3690, 1
        %v3733 = vrot.slane %v3691, 1
        %v3734 = vrot.slane %v3692, 1
        %v3735 = vrot.slane %v3693, 1
        %v3736 = vrot.slane %v3694, 1
        %v3737 = vrot.slane %v3695, 1
        %v3738 = vrot.slane %v3696, 1
        %v3739 = vrot.slane %v3697, 1
        %v3761 = vadd.f32 %v3617, %v3719
        %v3762 = vadd.f32 %v3618, %v3720
        %v3763 = vadd.f32 %v3619, %v3721
        %v3764 = vadd.f32 %v3620, %v3722
        %v3765 = vadd.f32 %v3621, %v3723
        %v3766 = vadd.f32 %v3622, %v3724
        %v3767 = vadd.f32 %v3623, %v3725
        %v3768 = vadd.f32 %v3624, %v3726
        %v3769 = vadd.f32 %v3625, %v3727
        %v3770 = vadd.f32 %v3626, %v3728
        %v3771 = vadd.f32 %v3627, %v3729
        %v3772 = vadd.f32 %v3628, %v3730
        %v3773 = vadd.f32 %v3629, %v3731
        %v3774 = vadd.f32 %v3630, %v3732
        %v3775 = vadd.f32 %v3631, %v3733
        %v3776 = vadd.f32 %v3632, %v3734
        %v3777 = vadd.f32 %v3633, %v3735
        %v3778 = vadd.f32 %v3634, %v3736
        %v3779 = vadd.f32 %v3635, %v3737
        %v3780 = vadd.f32 %v3636, %v3738
        %v3781 = vadd.f32 %v3637, %v3739
        %v3782 = vld [vmem:[%s3556] sm:$0xfe]
        %v3783 = vld [vmem:[%s3556 + $0x8] sm:$0xfe]
        %v3784 = vld [vmem:[%s3556 + $0x10] sm:$0xfe]
        %v3785 = vld [vmem:[%s3556 + $0x30] sm:$0xfe]
        %v3786 = vld [vmem:[%s3556 + $0x38] sm:$0xfe]
        %v3787 = vld [vmem:[%s3556 + $0x40] sm:$0xfe]
        %v3788 = vld [vmem:[%s3556 + $0x60] sm:$0xfe]
        %v3789 = vld [vmem:[%s3556 + $0x68] sm:$0xfe]
        %v3790 = vld [vmem:[%s3556 + $0x70] sm:$0xfe]
        %v3791 = vld [vmem:[%s3556 + $0x90] sm:$0xfe]
        %v3792 = vld [vmem:[%s3556 + $0x98] sm:$0xfe]
        %v3793 = vld [vmem:[%s3556 + $0xa0] sm:$0xfe]
        %v3794 = vld [vmem:[%s3556 + $0xc0] sm:$0xfe]
        %v3795 = vld [vmem:[%s3556 + $0xc8] sm:$0xfe]
        %v3796 = vld [vmem:[%s3556 + $0xd0] sm:$0xfe]
        %v3797 = vld [vmem:[%s3556 + $0xf0] sm:$0xfe]
        %v3798 = vld [vmem:[%s3556 + $0xf8] sm:$0xfe]
        %v3799 = vld [vmem:[%s3556 + $0x100] sm:$0xfe]
        %v3800 = vld [vmem:[%s3556 + $0x120] sm:$0xfe]
        %v3801 = vld [vmem:[%s3556 + $0x128] sm:$0xfe]
        %v3802 = vld [vmem:[%s3556 + $0x130] sm:$0xfe]
        %s3803 = scalar_lea.vmem %s646, 55 [#allocation3]
        %v3804 = vld [vmem:[%s3803] ss:$8 sm:$0x7]
        %v3806 = vlaneseq
        %v3807 = vshrl.u32 %v3806, 7
        %v3808 = vsub.s32 0, %v3807
        %v3809 = vrot.slane %v3804, %v3808
        %v3810 = vlaneseq
        %v3811 = vshrl.u32 %v3810, 7
        %v3812 = vsub.s32 1, %v3811
        %v3813 = vrot.slane %v3804, %v3812
        %v3814 = vlaneseq
        %v3815 = vshrl.u32 %v3814, 7
        %v3816 = vsub.s32 2, %v3815
        %v3817 = vrot.slane %v3804, %v3816
        %v3821 = vmul.f32 %v3782, %v3809
        %v3822 = vmul.f32 %v3783, %v3813
        %v3823 = vmul.f32 %v3784, %v3817
        %v3824 = vmul.f32 %v3785, %v3809
        %v3825 = vmul.f32 %v3786, %v3813
        %v3826 = vmul.f32 %v3787, %v3817
        %v3827 = vmul.f32 %v3788, %v3809
        %v3828 = vmul.f32 %v3789, %v3813
        %v3829 = vmul.f32 %v3790, %v3817
        %v3830 = vmul.f32 %v3791, %v3809
        %v3831 = vmul.f32 %v3792, %v3813
        %v3832 = vmul.f32 %v3793, %v3817
        %v3833 = vmul.f32 %v3794, %v3809
        %v3834 = vmul.f32 %v3795, %v3813
        %v3835 = vmul.f32 %v3796, %v3817
        %v3836 = vmul.f32 %v3797, %v3809
        %v3837 = vmul.f32 %v3798, %v3813
        %v3838 = vmul.f32 %v3799, %v3817
        %v3839 = vmul.f32 %v3800, %v3809
        %v3840 = vmul.f32 %v3801, %v3813
        %v3841 = vmul.f32 %v3802, %v3817
        %v3863 = vrot.slane %v3821, 1
        %v3864 = vrot.slane %v3822, 1
        %v3865 = vrot.slane %v3823, 1
        %v3866 = vrot.slane %v3824, 1
        %v3867 = vrot.slane %v3825, 1
        %v3868 = vrot.slane %v3826, 1
        %v3869 = vrot.slane %v3827, 1
        %v3870 = vrot.slane %v3828, 1
        %v3871 = vrot.slane %v3829, 1
        %v3872 = vrot.slane %v3830, 1
        %v3873 = vrot.slane %v3831, 1
        %v3874 = vrot.slane %v3832, 1
        %v3875 = vrot.slane %v3833, 1
        %v3876 = vrot.slane %v3834, 1
        %v3877 = vrot.slane %v3835, 1
        %v3878 = vrot.slane %v3836, 1
        %v3879 = vrot.slane %v3837, 1
        %v3880 = vrot.slane %v3838, 1
        %v3881 = vrot.slane %v3839, 1
        %v3882 = vrot.slane %v3840, 1
        %v3883 = vrot.slane %v3841, 1
        %v3905 = vadd.f32 %v3761, %v3863
        %v3906 = vadd.f32 %v3762, %v3864
        %v3907 = vadd.f32 %v3763, %v3865
        %v3908 = vadd.f32 %v3764, %v3866
        %v3909 = vadd.f32 %v3765, %v3867
        %v3910 = vadd.f32 %v3766, %v3868
        %v3911 = vadd.f32 %v3767, %v3869
        %v3912 = vadd.f32 %v3768, %v3870
        %v3913 = vadd.f32 %v3769, %v3871
        %v3914 = vadd.f32 %v3770, %v3872
        %v3915 = vadd.f32 %v3771, %v3873
        %v3916 = vadd.f32 %v3772, %v3874
        %v3917 = vadd.f32 %v3773, %v3875
        %v3918 = vadd.f32 %v3774, %v3876
        %v3919 = vadd.f32 %v3775, %v3877
        %v3920 = vadd.f32 %v3776, %v3878
        %v3921 = vadd.f32 %v3777, %v3879
        %v3922 = vadd.f32 %v3778, %v3880
        %v3923 = vadd.f32 %v3779, %v3881
        %v3924 = vadd.f32 %v3780, %v3882
        %v3925 = vadd.f32 %v3781, %v3883
        %v3926 = vld [vmem:[%s3474] sm:$0xfc]
        %v3927 = vld [vmem:[%s3474 + $0x8] sm:$0xfc]
        %v3928 = vld [vmem:[%s3474 + $0x10] sm:$0xfc]
        %v3929 = vld [vmem:[%s3474 + $0x18] sm:$0x1]
        %v3930 = vld [vmem:[%s3474 + $0x20] sm:$0x1]
        %v3931 = vld [vmem:[%s3474 + $0x28] sm:$0x1]
        %v3932 = vld [vmem:[%s3474 + $0x30] sm:$0xfc]
        %v3933 = vld [vmem:[%s3474 + $0x38] sm:$0xfc]
        %v3934 = vld [vmem:[%s3474 + $0x40] sm:$0xfc]
        %v3935 = vld [vmem:[%s3474 + $0x48] sm:$0x1]
        %v3936 = vld [vmem:[%s3474 + $0x50] sm:$0x1]
        %v3937 = vld [vmem:[%s3474 + $0x58] sm:$0x1]
        %v3938 = vld [vmem:[%s3474 + $0x60] sm:$0xfc]
        %v3939 = vld [vmem:[%s3474 + $0x68] sm:$0xfc]
        %v3940 = vld [vmem:[%s3474 + $0x70] sm:$0xfc]
        %v3941 = vld [vmem:[%s3474 + $0x78] sm:$0x1]
        %v3942 = vld [vmem:[%s3474 + $0x80] sm:$0x1]
        %v3943 = vld [vmem:[%s3474 + $0x88] sm:$0x1]
        %v3944 = vld [vmem:[%s3474 + $0x90] sm:$0xfc]
        %v3945 = vld [vmem:[%s3474 + $0x98] sm:$0xfc]
        %v3946 = vld [vmem:[%s3474 + $0xa0] sm:$0xfc]
        %v3947 = vld [vmem:[%s3474 + $0xa8] sm:$0x1]
        %v3948 = vld [vmem:[%s3474 + $0xb0] sm:$0x1]
        %v3949 = vld [vmem:[%s3474 + $0xb8] sm:$0x1]
        %v3950 = vld [vmem:[%s3474 + $0xc0] sm:$0xfc]
        %v3951 = vld [vmem:[%s3474 + $0xc8] sm:$0xfc]
        %v3952 = vld [vmem:[%s3474 + $0xd0] sm:$0xfc]
        %v3953 = vld [vmem:[%s3474 + $0xd8] sm:$0x1]
        %v3954 = vld [vmem:[%s3474 + $0xe0] sm:$0x1]
        %v3955 = vld [vmem:[%s3474 + $0xe8] sm:$0x1]
        %v3956 = vld [vmem:[%s3474 + $0xf0] sm:$0xfc]
        %v3957 = vld [vmem:[%s3474 + $0xf8] sm:$0xfc]
        %v3958 = vld [vmem:[%s3474 + $0x100] sm:$0xfc]
        %v3959 = vld [vmem:[%s3474 + $0x108] sm:$0x1]
        %v3960 = vld [vmem:[%s3474 + $0x110] sm:$0x1]
        %v3961 = vld [vmem:[%s3474 + $0x118] sm:$0x1]
        %v3962 = vld [vmem:[%s3474 + $0x120] sm:$0xfc]
        %v3963 = vld [vmem:[%s3474 + $0x128] sm:$0xfc]
        %v3964 = vld [vmem:[%s3474 + $0x130] sm:$0xfc]
        %v3965 = vld [vmem:[%s3474 + $0x138] sm:$0x1]
        %v3966 = vld [vmem:[%s3474 + $0x140] sm:$0x1]
        %v3967 = vld [vmem:[%s3474 + $0x148] sm:$0x1]
        %s3968 = scalar_lea.vmem %s646, 72 [#allocation3]
        %v3969 = vld [vmem:[%s3968] ss:$8 sm:$0x7]
        %v3971 = vlaneseq
        %v3972 = vshrl.u32 %v3971, 7
        %v3973 = vsub.s32 0, %v3972
        %v3974 = vrot.slane %v3969, %v3973
        %v3975 = vlaneseq
        %v3976 = vshrl.u32 %v3975, 7
        %v3977 = vsub.s32 1, %v3976
        %v3978 = vrot.slane %v3969, %v3977
        %v3979 = vlaneseq
        %v3980 = vshrl.u32 %v3979, 7
        %v3981 = vsub.s32 2, %v3980
        %v3982 = vrot.slane %v3969, %v3981
        %v3986 = vmul.f32 %v3926, %v3974
        %v3987 = vmul.f32 %v3927, %v3978
        %v3988 = vmul.f32 %v3928, %v3982
        %v3989 = vmul.f32 %v3929, %v3974
        %v3990 = vmul.f32 %v3930, %v3978
        %v3991 = vmul.f32 %v3931, %v3982
        %v3992 = vmul.f32 %v3932, %v3974
        %v3993 = vmul.f32 %v3933, %v3978
        %v3994 = vmul.f32 %v3934, %v3982
        %v3995 = vmul.f32 %v3935, %v3974
        %v3996 = vmul.f32 %v3936, %v3978
        %v3997 = vmul.f32 %v3937, %v3982
        %v3998 = vmul.f32 %v3938, %v3974
        %v3999 = vmul.f32 %v3939, %v3978
        %v4000 = vmul.f32 %v3940, %v3982
        %v4001 = vmul.f32 %v3941, %v3974
        %v4002 = vmul.f32 %v3942, %v3978
        %v4003 = vmul.f32 %v3943, %v3982
        %v4004 = vmul.f32 %v3944, %v3974
        %v4005 = vmul.f32 %v3945, %v3978
        %v4006 = vmul.f32 %v3946, %v3982
        %v4007 = vmul.f32 %v3947, %v3974
        %v4008 = vmul.f32 %v3948, %v3978
        %v4009 = vmul.f32 %v3949, %v3982
        %v4010 = vmul.f32 %v3950, %v3974
        %v4011 = vmul.f32 %v3951, %v3978
        %v4012 = vmul.f32 %v3952, %v3982
        %v4013 = vmul.f32 %v3953, %v3974
        %v4014 = vmul.f32 %v3954, %v3978
        %v4015 = vmul.f32 %v3955, %v3982
        %v4016 = vmul.f32 %v3956, %v3974
        %v4017 = vmul.f32 %v3957, %v3978
        %v4018 = vmul.f32 %v3958, %v3982
        %v4019 = vmul.f32 %v3959, %v3974
        %v4020 = vmul.f32 %v3960, %v3978
        %v4021 = vmul.f32 %v3961, %v3982
        %v4022 = vmul.f32 %v3962, %v3974
        %v4023 = vmul.f32 %v3963, %v3978
        %v4024 = vmul.f32 %v3964, %v3982
        %v4025 = vmul.f32 %v3965, %v3974
        %v4026 = vmul.f32 %v3966, %v3978
        %v4027 = vmul.f32 %v3967, %v3982
        %v4070 = vrot.slane %v3986, 2
        %v4071 = vrot.slane %v3989, 2
        %v4072 = vsel %vm1265, %v4070, %v4071
        %v4073 = vrot.slane %v3987, 2
        %v4074 = vrot.slane %v3990, 2
        %v4075 = vsel %vm1265, %v4073, %v4074
        %v4076 = vrot.slane %v3988, 2
        %v4077 = vrot.slane %v3991, 2
        %v4078 = vsel %vm1265, %v4076, %v4077
        %v4079 = vrot.slane %v3992, 2
        %v4080 = vrot.slane %v3995, 2
        %v4081 = vsel %vm1265, %v4079, %v4080
        %v4082 = vrot.slane %v3993, 2
        %v4083 = vrot.slane %v3996, 2
        %v4084 = vsel %vm1265, %v4082, %v4083
        %v4085 = vrot.slane %v3994, 2
        %v4086 = vrot.slane %v3997, 2
        %v4087 = vsel %vm1265, %v4085, %v4086
        %v4088 = vrot.slane %v3998, 2
        %v4089 = vrot.slane %v4001, 2
        %v4090 = vsel %vm1265, %v4088, %v4089
        %v4091 = vrot.slane %v3999, 2
        %v4092 = vrot.slane %v4002, 2
        %v4093 = vsel %vm1265, %v4091, %v4092
        %v4094 = vrot.slane %v4000, 2
        %v4095 = vrot.slane %v4003, 2
        %v4096 = vsel %vm1265, %v4094, %v4095
        %v4097 = vrot.slane %v4004, 2
        %v4098 = vrot.slane %v4007, 2
        %v4099 = vsel %vm1265, %v4097, %v4098
        %v4100 = vrot.slane %v4005, 2
        %v4101 = vrot.slane %v4008, 2
        %v4102 = vsel %vm1265, %v4100, %v4101
        %v4103 = vrot.slane %v4006, 2
        %v4104 = vrot.slane %v4009, 2
        %v4105 = vsel %vm1265, %v4103, %v4104
        %v4106 = vrot.slane %v4010, 2
        %v4107 = vrot.slane %v4013, 2
        %v4108 = vsel %vm1265, %v4106, %v4107
        %v4109 = vrot.slane %v4011, 2
        %v4110 = vrot.slane %v4014, 2
        %v4111 = vsel %vm1265, %v4109, %v4110
        %v4112 = vrot.slane %v4012, 2
        %v4113 = vrot.slane %v4015, 2
        %v4114 = vsel %vm1265, %v4112, %v4113
        %v4115 = vrot.slane %v4016, 2
        %v4116 = vrot.slane %v4019, 2
        %v4117 = vsel %vm1265, %v4115, %v4116
        %v4118 = vrot.slane %v4017, 2
        %v4119 = vrot.slane %v4020, 2
        %v4120 = vsel %vm1265, %v4118, %v4119
        %v4121 = vrot.slane %v4018, 2
        %v4122 = vrot.slane %v4021, 2
        %v4123 = vsel %vm1265, %v4121, %v4122
        %v4124 = vrot.slane %v4022, 2
        %v4125 = vrot.slane %v4025, 2
        %v4126 = vsel %vm1265, %v4124, %v4125
        %v4127 = vrot.slane %v4023, 2
        %v4128 = vrot.slane %v4026, 2
        %v4129 = vsel %vm1265, %v4127, %v4128
        %v4130 = vrot.slane %v4024, 2
        %v4131 = vrot.slane %v4027, 2
        %v4132 = vsel %vm1265, %v4130, %v4131
        %v4154 = vadd.f32 %v3905, %v4072
        %v4155 = vadd.f32 %v3906, %v4075
        %v4156 = vadd.f32 %v3907, %v4078
        %v4157 = vadd.f32 %v3908, %v4081
        %v4158 = vadd.f32 %v3909, %v4084
        %v4159 = vadd.f32 %v3910, %v4087
        %v4160 = vadd.f32 %v3911, %v4090
        %v4161 = vadd.f32 %v3912, %v4093
        %v4162 = vadd.f32 %v3913, %v4096
        %v4163 = vadd.f32 %v3914, %v4099
        %v4164 = vadd.f32 %v3915, %v4102
        %v4165 = vadd.f32 %v3916, %v4105
        %v4166 = vadd.f32 %v3917, %v4108
        %v4167 = vadd.f32 %v3918, %v4111
        %v4168 = vadd.f32 %v3919, %v4114
        %v4169 = vadd.f32 %v3920, %v4117
        %v4170 = vadd.f32 %v3921, %v4120
        %v4171 = vadd.f32 %v3922, %v4123
        %v4172 = vadd.f32 %v3923, %v4126
        %v4173 = vadd.f32 %v3924, %v4129
        %v4174 = vadd.f32 %v3925, %v4132
        %4175 = vst [vmem:[%s667] sm:$0x7f] %v4154
        %4176 = vst [vmem:[%s667 + $0x8] sm:$0x7f] %v4155
        %4177 = vst [vmem:[%s667 + $0x10] sm:$0x7f] %v4156
        %4178 = vst [vmem:[%s667 + $0x18] sm:$0x7f] %v4157
        %4179 = vst [vmem:[%s667 + $0x20] sm:$0x7f] %v4158
        %4180 = vst [vmem:[%s667 + $0x28] sm:$0x7f] %v4159
        %4181 = vst [vmem:[%s667 + $0x30] sm:$0x7f] %v4160
        %4182 = vst [vmem:[%s667 + $0x38] sm:$0x7f] %v4161
        %4183 = vst [vmem:[%s667 + $0x40] sm:$0x7f] %v4162
        %4184 = vst [vmem:[%s667 + $0x48] sm:$0x7f] %v4163
        %4185 = vst [vmem:[%s667 + $0x50] sm:$0x7f] %v4164
        %4186 = vst [vmem:[%s667 + $0x58] sm:$0x7f] %v4165
        %4187 = vst [vmem:[%s667 + $0x60] sm:$0x7f] %v4166
        %4188 = vst [vmem:[%s667 + $0x68] sm:$0x7f] %v4167
        %4189 = vst [vmem:[%s667 + $0x70] sm:$0x7f] %v4168
        %4190 = vst [vmem:[%s667 + $0x78] sm:$0x7f] %v4169
        %4191 = vst [vmem:[%s667 + $0x80] sm:$0x7f] %v4170
        %4192 = vst [vmem:[%s667 + $0x88] sm:$0x7f] %v4171
        %4193 = vst [vmem:[%s667 + $0x90] sm:$0x7f] %v4172
        %4194 = vst [vmem:[%s667 + $0x98] sm:$0x7f] %v4173
        %4195 = vst [vmem:[%s667 + $0xa0] sm:$0x7f] %v4174
        %s4196 = sand.u32 %s89, 1
        %s4197 = sand.u32 %s89, 1
        %s4198 = smul.addr %s4197, 168
        %s4199 = scalar_lea.vmem [#allocation4], %s4198
        // Predicated region
        $region75: #{tpu_custom_call.1} parent=65 // pred_check
          %p4200 = pneg %p99
        $region76: #{tpu_custom_call.1} parent=65 // pred_check_branch
          %4202 = sbr.rel (%p4200) target = $region78
        $region77: #{tpu_custom_call.1} parent=65 // pred_region
          %s4203 = smul.u32 3, %s18
          %s4204 = smul.addr %s17, 42
          %s4205 = sadd.s32 %s4203, %s4204
          %s4206 = smul.addr %s4205, 8
          %s4207 = scalar_lea.vmem %s2, %s4206
          // Predicated region
          $region79: #{tpu_custom_call.1} parent=77 // pred_check
            _
          $region80: #{tpu_custom_call.1} parent=77 // pred_check_branch
            %4209 = sbr.rel (0) target = $region82
          $region81: #{tpu_custom_call.1} parent=77 // pred_region
            // Predicated region
            $region83: #{tpu_custom_call.1} parent=81 // pred_check
              _
            $region84: #{tpu_custom_call.1} parent=81 // pred_check_branch
              %4211 = sbr.rel (0) target = $region86
            $region85: #{tpu_custom_call.1} parent=81 // pred_region
              loop: start=0, step=1, limit=1
              $region87: #{tpu_custom_call.1} parent=85 // loop_pre_header
                _
              $region88: #{tpu_custom_call.1} parent=85 // loop_header
                %s4213 = sphi 0, %s4217
                %p4214 = scmp.ge.s32.totalorder %s4213, 1
                %s4218 = sphi %s4199, %s4199
                %s4219 = sphi %s4207, %s4207
              $region89: #{tpu_custom_call.1} parent=85 // loop_header_branch
                %4216 = sbr.rel (%p4214) target = $region93
              $region90: #{tpu_custom_call.1} parent=85 // loop_body
                %v4220 = vld [vmem:[%s4218] sm:$0xff]
                %4221 = vst [vmem:[%s4219] sm:$0xff] %v4220
                %v4222 = vld [vmem:[%s4218 + $0x8] sm:$0xff]
                %4223 = vst [vmem:[%s4219 + $0x8] sm:$0xff] %v4222
                %v4224 = vld [vmem:[%s4218 + $0x10] sm:$0xff]
                %4225 = vst [vmem:[%s4219 + $0x10] sm:$0xff] %v4224
                %v4226 = vld [vmem:[%s4218 + $0x18] sm:$0xff]
                %4227 = vst [vmem:[%s4219 + $0x30] sm:$0xff] %v4226
                %v4228 = vld [vmem:[%s4218 + $0x20] sm:$0xff]
                %4229 = vst [vmem:[%s4219 + $0x38] sm:$0xff] %v4228
                %v4230 = vld [vmem:[%s4218 + $0x28] sm:$0xff]
                %4231 = vst [vmem:[%s4219 + $0x40] sm:$0xff] %v4230
                %v4232 = vld [vmem:[%s4218 + $0x30] sm:$0xff]
                %4233 = vst [vmem:[%s4219 + $0x60] sm:$0xff] %v4232
                %v4234 = vld [vmem:[%s4218 + $0x38] sm:$0xff]
                %4235 = vst [vmem:[%s4219 + $0x68] sm:$0xff] %v4234
                %v4236 = vld [vmem:[%s4218 + $0x40] sm:$0xff]
                %4237 = vst [vmem:[%s4219 + $0x70] sm:$0xff] %v4236
                %v4238 = vld [vmem:[%s4218 + $0x48] sm:$0xff]
                %4239 = vst [vmem:[%s4219 + $0x90] sm:$0xff] %v4238
                %v4240 = vld [vmem:[%s4218 + $0x50] sm:$0xff]
                %4241 = vst [vmem:[%s4219 + $0x98] sm:$0xff] %v4240
                %v4242 = vld [vmem:[%s4218 + $0x58] sm:$0xff]
                %4243 = vst [vmem:[%s4219 + $0xa0] sm:$0xff] %v4242
                %v4244 = vld [vmem:[%s4218 + $0x60] sm:$0xff]
                %4245 = vst [vmem:[%s4219 + $0xc0] sm:$0xff] %v4244
                %v4246 = vld [vmem:[%s4218 + $0x68] sm:$0xff]
                %4247 = vst [vmem:[%s4219 + $0xc8] sm:$0xff] %v4246
                %v4248 = vld [vmem:[%s4218 + $0x70] sm:$0xff]
                %4249 = vst [vmem:[%s4219 + $0xd0] sm:$0xff] %v4248
                %v4250 = vld [vmem:[%s4218 + $0x78] sm:$0xff]
                %4251 = vst [vmem:[%s4219 + $0xf0] sm:$0xff] %v4250
                %v4252 = vld [vmem:[%s4218 + $0x80] sm:$0xff]
                %4253 = vst [vmem:[%s4219 + $0xf8] sm:$0xff] %v4252
                %v4254 = vld [vmem:[%s4218 + $0x88] sm:$0xff]
                %4255 = vst [vmem:[%s4219 + $0x100] sm:$0xff] %v4254
                %v4256 = vld [vmem:[%s4218 + $0x90] sm:$0xff]
                %4257 = vst [vmem:[%s4219 + $0x120] sm:$0xff] %v4256
                %v4258 = vld [vmem:[%s4218 + $0x98] sm:$0xff]
                %4259 = vst [vmem:[%s4219 + $0x128] sm:$0xff] %v4258
                %v4260 = vld [vmem:[%s4218 + $0xa0] sm:$0xff]
                %4261 = vst [vmem:[%s4219 + $0x130] sm:$0xff] %v4260
              $region91: #{tpu_custom_call.1} parent=85 // loop_footer
                %s4217 = sadd.s32 1, %s4213
              $region92: #{tpu_custom_call.1} parent=85 // loop_footer_branch
                %4212 = sbr.rel target = $region88
              $region93: #{tpu_custom_call.1} parent=85 // loop_exit
                _
            $region86: #{tpu_custom_call.1} parent=81 // pred_fallthru
              _
            // Predicated region
            $region94: #{tpu_custom_call.1} parent=81 // pred_check
              _
            $region95: #{tpu_custom_call.1} parent=81 // pred_check_branch
              %4263 = sbr.rel target = $region97
            $region96: #{tpu_custom_call.1} parent=81 // pred_region
              _
            $region97: #{tpu_custom_call.1} parent=81 // pred_fallthru
              _
          $region82: #{tpu_custom_call.1} parent=77 // pred_fallthru
            _
          %4264 = vnop
        $region78: #{tpu_custom_call.1} parent=65 // pred_fallthru
          _
      $region66: #{tpu_custom_call.1} parent=5 // pred_fallthru
        _
      %p4265 = scmp.le.s32.totalorder 2, %s8
      // Predicated region
      $region98: #{tpu_custom_call.1} parent=5 // pred_check
        %p4266 = pneg %p4265
      $region99: #{tpu_custom_call.1} parent=5 // pred_check_branch
        %4268 = sbr.rel (%p4266) target = $region101
      $region100: #{tpu_custom_call.1} parent=5 // pred_region
        %s4269 = ssub.s32 %s8, 2
        // Predicated region
        $region102: #{tpu_custom_call.1} parent=100 // pred_check
          %p4270 = pneg %p105
        $region103: #{tpu_custom_call.1} parent=100 // pred_check_branch
          %4272 = sbr.rel (%p4270) target = $region105
        $region104: #{tpu_custom_call.1} parent=100 // pred_region
          %s4273 = sand.u32 %s90, 1
          %s4274 = sand.u32 %s90, 1
          %s4275 = smul.addr %s4274, 168
          %s4276 = scalar_lea.vmem [#allocation4], %s4275
        $region105: #{tpu_custom_call.1} parent=100 // pred_fallthru
          _
      $region101: #{tpu_custom_call.1} parent=5 // pred_fallthru
        _
    $region6: #{tpu_custom_call.1} parent=1 // loop_footer
      %s12 = sadd.s32 1, %s8
    $region7: #{tpu_custom_call.1} parent=1 // loop_footer_branch
      %7 = sbr.rel target = $region3
    $region8: #{tpu_custom_call.1} parent=1 // loop_exit
      _

</llo_original>
